<compile_context>
chip_gen: v7x
topology: tpu7x:2x2x1
jax: 0.10.0
libtpu: 0.0.40
codegen_flags: <defaults>
</compile_context>

<pallas_src>
import functools

import jax
import jax.numpy as jnp
from jax.experimental import pallas as pl
from jax.experimental.pallas import tpu as pltpu


# Scoped-VMEM limit requested from Mosaic: raises v5e's 16 MiB default while
# leaving headroom under v7x's 64 MiB physical VMEM per TensorCore.
_VMEM_LIMIT_BYTES = 48 * 1024 * 1024
# Budget for the double-buffered row-tiled pipeline blocks of kernel 1.
_ROW_BLOCK_BUDGET = 24 * 1024 * 1024


# ------------------------------- tiling helper ------------------------------

def _pick_tm(M, bytes_per_row, fixed_bytes, *, budget=_ROW_BLOCK_BUDGET, cap=1024):
    """Row tile for kernel 1: largest divisor of M that is a multiple of 8 (or
    == M), <= cap, whose double-buffered row blocks plus the (double-buffered)
    grid-invariant weight blocks fit `budget`; prefer >= 2 grid steps so the
    second TensorCore gets work on megacore parts."""
    cands = [d for d in range(1, M + 1)
             if M % d == 0 and d <= cap and (d % 8 == 0 or d == M)]
    if not cands:
        return M
    fits = [d for d in cands if fixed_bytes + 2 * d * bytes_per_row <= budget]
    if not fits:
        fits = [min(cands)]
    multi = [d for d in fits if M // d >= 2]
    return max(multi) if multi else max(fits)


# ------------------------- kernel 1: x-consuming fuse ------------------------

def _fused_in_kernel(x_ref, w1_ref, b1_ref, ws_ref, bs_ref, wqkv_ref,
                     qkv_ref, sc_ref):
    x = x_ref[...]                                         # bf16 (cast in glue)
    # contraction 1x1 conv + BN1 + ReLU (BN scale folded into w1)
    y = jnp.dot(x, w1_ref[...], preferred_element_type=jnp.float32)
    y = jnp.maximum(y + b1_ref[...], 0.0)
    # shortcut 1x1 conv + BN + ReLU (separate dot keeps both outputs lane-dense)
    s = jnp.dot(x, ws_ref[...], preferred_element_type=jnp.float32)
    sc_ref[...] = jnp.maximum(s + bs_ref[...], 0.0).astype(sc_ref.dtype)
    # to_qkv 1x1 conv (no BN / bias); y never leaves VMEM
    qkv = jnp.dot(y.astype(jnp.bfloat16), wqkv_ref[...],
                  preferred_element_type=jnp.float32)
    qkv_ref[...] = qkv.astype(qkv_ref.dtype)


def fused_contract_qkv_shortcut(x, w1, b1, ws, bs, wqkv, *, tm):
    M, Cin = x.shape
    bott = w1.shape[1]
    Cout = ws.shape[1]
    Cqkv = wqkv.shape[1]
    assert M % tm == 0, "row tile must divide B*H*W"
    return pl.pallas_call(
        _fused_in_kernel,
        out_shape=(jax.ShapeDtypeStruct((M, Cqkv), jnp.bfloat16),   # qkv (bf16)
                   jax.ShapeDtypeStruct((M, Cout), jnp.bfloat16)),  # shortcut
        grid=(M // tm,),
        in_specs=[
            pl.BlockSpec((tm, Cin), lambda i: (i, 0)),
            pl.BlockSpec((Cin, bott), lambda i: (0, 0)),
            pl.BlockSpec((1, bott), lambda i: (0, 0)),
            pl.BlockSpec((Cin, Cout), lambda i: (0, 0)),
            pl.BlockSpec((1, Cout), lambda i: (0, 0)),
            pl.BlockSpec((bott, Cqkv), lambda i: (0, 0)),
        ],
        out_specs=(
            pl.BlockSpec((tm, Cqkv), lambda i: (i, 0)),
            pl.BlockSpec((tm, Cout), lambda i: (i, 0)),
        ),
        compiler_params=pltpu.CompilerParams(
            dimension_semantics=("parallel",),
            vmem_limit_bytes=_VMEM_LIMIT_BYTES),
    )(x, w1, b1, ws, bs, wqkv)


# ----------------- kernel 2: attention + BN2/ReLU/expand/residual -----------

def _attn_tail_kernel(qkv_ref, pos_ref, sc_ref, s2_ref, b2_ref, wexp_ref,
                      b3_ref, o_ref, *, heads, dh, H, W):
    # qkv_ref: (1, T, 3*heads*dh) bf16, columns ordered (q | k | v), (h, d)-major.
    # The softmax scale is pre-folded into the K columns; the rel-pos bias comes
    # from UNSCALED q (exactly like the reference) so it is just added.
    hd = heads * dh
    qkv = qkv_ref[0]                                       # (T, 3hd) bf16
    outs = []
    for h in range(heads):                                 # all heads per step
        q = qkv[:, h * dh:(h + 1) * dh]
        k = qkv[:, hd + h * dh:hd + (h + 1) * dh]
        v = qkv[:, 2 * hd + h * dh:2 * hd + (h + 1) * dh]
        logits = jax.lax.dot_general(q, k, (((1,), (1,)), ((), ())),
                                     preferred_element_type=jnp.float32)
        # compact (T, W) bias; full bias is its broadcast along the key-x axis
        pc = pos_ref[0, h].astype(jnp.float32)
        logits = logits + jnp.concatenate([pc] * H, axis=-1)
        m = jnp.max(logits, axis=-1, keepdims=True)
        p = jnp.exp(logits - m)
        denom = jnp.sum(p, axis=-1, keepdims=True)
        attn = p * pl.reciprocal(denom, approx=True)       # EUP, not a VALU divide
        outs.append(jnp.dot(attn.astype(jnp.bfloat16), v,
                            preferred_element_type=jnp.float32))
    a = jnp.concatenate(outs, axis=-1)                     # (T, hd), '(h d)' order
    # BN2 + ReLU (f32 epilogue math)
    a = jnp.maximum(a * s2_ref[...] + b2_ref[...], 0.0)
    # expansion 1x1 conv (BN3 scale folded) + BN3 bias + residual add
    # (reference has NO activation after the residual add)
    y = jnp.dot(a.astype(jnp.bfloat16), wexp_ref[...],
                preferred_element_type=jnp.float32)
    o_ref[0] = (y + b3_ref[...] + sc_ref[0].astype(jnp.float32)).astype(o_ref.dtype)


def fused_attention_tail(qkv, pos_c, shortcut, s2, b2, w_exp, b3,
                         *, heads, dh, H, W):
    B, T, c3 = qkv.shape
    hd = heads * dh
    Cout = w_exp.shape[1]
    kernel = functools.partial(_attn_tail_kernel, heads=heads, dh=dh, H=H, W=W)
    return pl.pallas_call(
        kernel,
        out_shape=jax.ShapeDtypeStruct((B, T, Cout), jnp.float32),
        grid=(B,),
        in_specs=[
            pl.BlockSpec((1, T, c3), lambda b: (b, 0, 0)),
            pl.BlockSpec((1, heads, T, W), lambda b: (b, 0, 0, 0)),
            pl.BlockSpec((1, T, Cout), lambda b: (b, 0, 0)),
            pl.BlockSpec((1, hd), lambda b: (0, 0)),
            pl.BlockSpec((1, hd), lambda b: (0, 0)),
            pl.BlockSpec((hd, Cout), lambda b: (0, 0)),
            pl.BlockSpec((1, Cout), lambda b: (0, 0)),
        ],
        out_specs=pl.BlockSpec((1, T, Cout), lambda b: (b, 0, 0)),
        compiler_params=pltpu.CompilerParams(
            dimension_semantics=("parallel",),
            vmem_limit_bytes=_VMEM_LIMIT_BYTES),
    )(qkv, pos_c, shortcut, s2, b2, w_exp, b3)


# --------------------- relative positional embedding (glue) ----------------

def relative_to_absolute(q):
    b, h, l, r = q.shape  # r == 2*l - 1
    col_pad = jnp.zeros((b, h, l, 1), q.dtype)
    x = jnp.concatenate([q, col_pad], axis=3)
    flat_x = x.reshape(b, h, l * (r + 1))
    flat_pad = jnp.zeros((b, h, l - 1), q.dtype)
    flat_x_padded = jnp.concatenate([flat_x, flat_pad], axis=2)
    final_x = flat_x_padded.reshape(b, h, l + 1, 2 * l - 1)
    return final_x[:, :, :l, l - 1:]


def rel_pos_emb_1d(q, rel_emb):
    # shared-heads variant: 'b h t d, r d -> b h t r'  (small O(T*W*d) tensors)
    emb = jnp.einsum('bhtd,rd->bhtr', q.astype(jnp.float32), rel_emb)
    return relative_to_absolute(emb)


def pos_emb_2d_compact(q, rel_w, rel_h, H, W):
    """Compact 2-D relative positional bias.

    The reference expands r_h and r_w with an identical broadcast pattern
    ('b (h x) i j -> b h x () i j', expand over x2), so the full (heads, T, T)
    bias satisfies  pos[h, i, j] == (r_h + r_w)[h, i // W, i % W, j % W]:
    a broadcast along the key-x axis of a (heads, T, W) tensor.  Only that
    compact tensor is returned (bf16) and tiled inside the attention kernel,
    cutting the O(T^2) HBM bias traffic and VMEM block by a factor of H.
    Requires H == W (the reference implicitly does too).
    """
    b, heads, T, d = q.shape
    q5 = q.reshape(b, heads, H, W, d)
    q_h = q5.reshape(b, heads * H, W, d)                           # 'b h (x y) d -> b (h x) y d'
    q_w = q5.transpose(0, 1, 3, 2, 4).reshape(b, heads * W, H, d)  # 'b h (x y) d -> b (h y) x d'
    r_h = rel_pos_emb_1d(q_h, rel_w)   # (b, heads*H, W, W)
    r_w = rel_pos_emb_1d(q_w, rel_h)   # (b, heads*W, H, H)
    r = r_h + r_w                      # H == W
    return r.reshape(b, heads, T, W).astype(jnp.bfloat16)


# ------------------------------ parameters ----------------------------------

def bn_fold(gamma, beta, mean, var, eps=1e-5):
    s = gamma * jax.lax.rsqrt(var + eps)
    return s, beta - mean * s


def init_params(key, in_channels, out_channels, proj_factor, heads, fmap_size):
    Hs, Ws = fmap_size
    bott = out_channels // proj_factor
    dh = bott // heads
    mhsa_out = bott
    keys = jax.random.split(key, 10)

    def bn(k, c):
        k1, k2, k3, k4 = jax.random.split(k, 4)
        gamma = jax.random.uniform(k1, (c,), jnp.float32, 0.5, 1.5)
        beta = jax.random.normal(k2, (c,), jnp.float32) * 0.1
        mean = jax.random.normal(k3, (c,), jnp.float32) * 0.1
        var = jax.random.uniform(k4, (c,), jnp.float32, 0.5, 1.5)
        return gamma, beta, mean, var

    return {
        'w_contr': jax.random.normal(keys[0], (bott, in_channels), jnp.float32) * 0.1,
        'bn1': bn(keys[1], bott),
        'w_qkv': jax.random.normal(keys[2], (3 * heads * dh, bott), jnp.float32) * 0.1,
        'rel_w': jax.random.normal(keys[3], (2 * Hs - 1, dh), jnp.float32) * (dh ** -0.5),
        'rel_h': jax.random.normal(keys[4], (2 * Ws - 1, dh), jnp.float32) * (dh ** -0.5),
        'bn2': bn(keys[5], mhsa_out),
        'w_exp': jax.random.normal(keys[6], (out_channels, mhsa_out), jnp.float32) * 0.1,
        'bn3': bn(keys[7], out_channels),
        'w_short': jax.random.normal(keys[8], (out_channels, in_channels), jnp.float32) * 0.1,
        'bn_s': bn(keys[9], out_channels),
    }


def prepare_params(p, *, heads):
    """One-time offline prep: fold BN scales into conv weights, permute w_qkv
    rows '(d k h) -> (k h d)', fold the softmax scale into K, and pre-cast all
    MXU weights to bf16."""
    bott = p['w_contr'].shape[0]
    dh = bott // heads
    hd = heads * dh
    scale = dh ** -0.5

    s1, b1 = bn_fold(*p['bn1'])
    ss, bs = bn_fold(*p['bn_s'])
    s2, b2 = bn_fold(*p['bn2'])
    s3, b3 = bn_fold(*p['bn3'])

    w1 = (p['w_contr'].T * s1[None, :]).astype(jnp.bfloat16)   # (Cin, bott)
    ws = (p['w_short'].T * ss[None, :]).astype(jnp.bfloat16)   # (Cin, Cout)

    # reorder to_qkv output channels '(d k h)' -> '(k h d)' and fold scale into K
    wq = p['w_qkv'].reshape(dh, 3, heads, bott).transpose(1, 2, 0, 3)  # (3, heads, dh, bott)
    wq = wq.at[1].multiply(scale)            # reference: softmax(scale*QK^T + pos(q))
    wq = wq.reshape(3 * hd, bott).T          # (bott, 3*hd)

    we = (p['w_exp'].T * s3[None, :]).astype(jnp.bfloat16)     # (hd, Cout), BN3 scale folded

    return {
        'w1': w1,
        'b1': b1[None, :].astype(jnp.float32),
        'ws': ws,
        'bs': bs[None, :].astype(jnp.float32),
        'w_qkv': wq.astype(jnp.bfloat16),
        's2': s2[None, :].astype(jnp.float32),
        'b2': b2[None, :].astype(jnp.float32),
        'w_exp': we,
        'b3': b3[None, :].astype(jnp.float32),
        'rel_w': p['rel_w'],
        'rel_h': p['rel_h'],
    }


# ------------------------------ module forward ------------------------------

def bottleneck_block_forward(x_nchw, pp, *, heads):
    B, Cin, H, W = x_nchw.shape
    assert H == W, "RelPosEmb2D in the reference implicitly requires H == W"
    T = H * W
    M = B * T
    bott = pp['w1'].shape[1]
    hd = pp['w_qkv'].shape[1] // 3
    dh = hd // heads
    Cout = pp['w_exp'].shape[1]

    # x is cast to bf16 here so kernel 1's largest DMA (and VMEM block) is half-width
    xf = x_nchw.transpose(0, 2, 3, 1).reshape(M, Cin).astype(jnp.bfloat16)

    # row tile sized to a per-generation-safe VMEM budget (bf16 in/out rows)
    bytes_per_row = 2 * Cin + 2 * (3 * hd) + 2 * Cout
    fixed_bytes = 2 * (2 * Cin * bott + 2 * Cin * Cout + 2 * bott * 3 * hd
                       + 4 * bott + 4 * Cout)
    tm = _pick_tm(M, bytes_per_row, fixed_bytes)

    # one x-consuming kernel: contraction+BN1+ReLU, shortcut conv+BN+ReLU, to_qkv
    qkv_flat, shortcut = fused_contract_qkv_shortcut(
        xf, pp['w1'], pp['b1'], pp['ws'], pp['bs'], pp['w_qkv'], tm=tm)

    # compact relative 2-D positional bias from UNSCALED q (scale lives in K cols)
    q4 = qkv_flat[:, :hd].reshape(B, T, heads, dh).transpose(0, 2, 1, 3)
    pos_c = pos_emb_2d_compact(q4, pp['rel_w'], pp['rel_h'], H, W)  # (B, heads, T, W) bf16

    # attention + BN2 + ReLU + expansion conv + BN3 bias + residual, all fused
    out = fused_attention_tail(qkv_flat.reshape(B, T, 3 * hd), pos_c,
                               shortcut.reshape(B, T, Cout),
                               pp['s2'], pp['b2'], pp['w_exp'], pp['b3'],
                               heads=heads, dh=dh, H=H, W=W)        # (B, T, Cout) f32

    return out.reshape(B, H, W, Cout).transpose(0, 3, 1, 2)         # NCHW


# ---------------------------------- main ------------------------------------

if __name__ == "__main__":
    key = jax.random.PRNGKey(0)
    kx, kp = jax.random.split(key)

    B, Cin, H, W = 2, 32, 8, 8          # small NCHW input
    out_channels, proj_factor, heads = 64, 4, 4

    x = jax.random.normal(kx, (B, Cin, H, W), jnp.float32)
    raw_params = init_params(kp, Cin, out_channels, proj_factor, heads, (H, W))
    prepped = prepare_params(raw_params, heads=heads)

    fwd = jax.jit(lambda xx, pp: bottleneck_block_forward(xx, pp, heads=heads))
    y = fwd(x, prepped)
    jax.block_until_ready(y)
    assert y.shape == (B, out_channels, H, W)
    assert jnp.all(jnp.isfinite(y))
    print("KERNEL_OK")
</pallas_src>

<mosaic_0001>
module attributes {stable_mosaic.version = 11 : i64} {
  func.func @_fused_in_kernel(%arg0: i32, %arg1: memref<64x32xbf16, #tpu.memory_space<vmem>>, %arg2: memref<32x16xbf16, #tpu.memory_space<vmem>>, %arg3: memref<1x16xf32, #tpu.memory_space<vmem>>, %arg4: memref<32x64xbf16, #tpu.memory_space<vmem>>, %arg5: memref<1x64xf32, #tpu.memory_space<vmem>>, %arg6: memref<16x48xbf16, #tpu.memory_space<vmem>>, %arg7: memref<64x48xbf16, #tpu.memory_space<vmem>>, %arg8: memref<64x64xbf16, #tpu.memory_space<vmem>>) attributes {dimension_semantics = [#tpu.dimension_semantics<parallel>], iteration_bounds = array<i64: 2>, scalar_prefetch = 0 : i64, scratch_operands = 0 : i64, tpu.core_type = #tpu.core_type<tc>, window_params = [{transform_indices = @transform_0, window_bounds = array<i64: 64, 32>}, {pipeline_mode = #tpu.pipeline_mode<synchronous>, transform_indices = @transform_1, window_bounds = array<i64: 32, 16>}, {pipeline_mode = #tpu.pipeline_mode<synchronous>, transform_indices = @transform_2, window_bounds = array<i64: 1, 16>}, {pipeline_mode = #tpu.pipeline_mode<synchronous>, transform_indices = @transform_3, window_bounds = array<i64: 32, 64>}, {pipeline_mode = #tpu.pipeline_mode<synchronous>, transform_indices = @transform_4, window_bounds = array<i64: 1, 64>}, {pipeline_mode = #tpu.pipeline_mode<synchronous>, transform_indices = @transform_5, window_bounds = array<i64: 16, 48>}, {transform_indices = @transform_6, window_bounds = array<i64: 64, 48>}, {transform_indices = @transform_7, window_bounds = array<i64: 64, 64>}]} {
    %c0 = arith.constant 0 : index
    %c0_0 = arith.constant 0 : index
    %0 = vector.load %arg1[%c0, %c0_0] : memref<64x32xbf16, #tpu.memory_space<vmem>>, vector<64x32xbf16>
    %c0_1 = arith.constant 0 : index
    %c0_2 = arith.constant 0 : index
    %1 = vector.load %arg2[%c0_1, %c0_2] : memref<32x16xbf16, #tpu.memory_space<vmem>>, vector<32x16xbf16>
    %cst = arith.constant dense<0.000000e+00> : vector<64x16xf32>
    %2 = tpu.matmul %0, %1, %cst {dimension_numbers = #tpu.dot_dimension_numbers<[1], [0], [0], [1], [0, 0, 1, 1], [], []>} : vector<64x32xbf16>, vector<32x16xbf16>, vector<64x16xf32> -> vector<64x16xf32>
    %c0_3 = arith.constant 0 : index
    %c0_4 = arith.constant 0 : index
    %3 = vector.load %arg3[%c0_3, %c0_4] : memref<1x16xf32, #tpu.memory_space<vmem>>, vector<1x16xf32>
    %4 = vector.broadcast %3 : vector<1x16xf32> to vector<64x16xf32>
    %5 = arith.addf %2, %4 : vector<64x16xf32>
    %cst_5 = arith.constant 0.000000e+00 : f32
    %6 = vector.broadcast %cst_5 : f32 to vector<64x16xf32>
    %7 = arith.maximumf %5, %6 : vector<64x16xf32>
    %c0_6 = arith.constant 0 : index
    %c0_7 = arith.constant 0 : index
    %8 = vector.load %arg4[%c0_6, %c0_7] : memref<32x64xbf16, #tpu.memory_space<vmem>>, vector<32x64xbf16>
    %cst_8 = arith.constant dense<0.000000e+00> : vector<64x64xf32>
    %9 = tpu.matmul %0, %8, %cst_8 {dimension_numbers = #tpu.dot_dimension_numbers<[1], [0], [0], [1], [0, 0, 1, 1], [], []>} : vector<64x32xbf16>, vector<32x64xbf16>, vector<64x64xf32> -> vector<64x64xf32>
    %c0_9 = arith.constant 0 : index
    %c0_10 = arith.constant 0 : index
    %10 = vector.load %arg5[%c0_9, %c0_10] : memref<1x64xf32, #tpu.memory_space<vmem>>, vector<1x64xf32>
    %11 = vector.broadcast %10 : vector<1x64xf32> to vector<64x64xf32>
    %12 = arith.addf %9, %11 : vector<64x64xf32>
    %cst_11 = arith.constant 0.000000e+00 : f32
    %13 = vector.broadcast %cst_11 : f32 to vector<64x64xf32>
    %14 = arith.maximumf %12, %13 : vector<64x64xf32>
    %15 = arith.truncf %14 : vector<64x64xf32> to vector<64x64xbf16>
    %c0_12 = arith.constant 0 : index
    %c0_13 = arith.constant 0 : index
    %16 = vector.load %arg8[%c0_12, %c0_13] : memref<64x64xbf16, #tpu.memory_space<vmem>>, vector<64x64xbf16>
    tpu.vector_store %arg8[%c0_12, %c0_13], %15 {strides = array<i32>} : memref<64x64xbf16, #tpu.memory_space<vmem>>, vector<64x64xbf16>,
    %17 = arith.truncf %7 : vector<64x16xf32> to vector<64x16xbf16>
    %c0_14 = arith.constant 0 : index
    %c0_15 = arith.constant 0 : index
    %18 = vector.load %arg6[%c0_14, %c0_15] : memref<16x48xbf16, #tpu.memory_space<vmem>>, vector<16x48xbf16>
    %cst_16 = arith.constant dense<0.000000e+00> : vector<64x48xf32>
    %19 = tpu.matmul %17, %18, %cst_16 {dimension_numbers = #tpu.dot_dimension_numbers<[1], [0], [0], [1], [0, 0, 1, 1], [], []>} : vector<64x16xbf16>, vector<16x48xbf16>, vector<64x48xf32> -> vector<64x48xf32>
    %20 = arith.truncf %19 : vector<64x48xf32> to vector<64x48xbf16>
    %c0_17 = arith.constant 0 : index
    %c0_18 = arith.constant 0 : index
    %21 = vector.load %arg7[%c0_17, %c0_18] : memref<64x48xbf16, #tpu.memory_space<vmem>>, vector<64x48xbf16>
    tpu.vector_store %arg7[%c0_17, %c0_18], %20 {strides = array<i32>} : memref<64x48xbf16, #tpu.memory_space<vmem>>, vector<64x48xbf16>,
    return
  }
  func.func @transform_0(%arg0: i32) -> (i32, i32) {
    %c0_i32 = arith.constant 0 : i32
    %c0_i32_0 = arith.constant 0 : i32
    return %arg0, %c0_i32 : i32, i32
  }
  func.func @transform_1(%arg0: i32) -> (i32, i32) {
    %c0_i32 = arith.constant 0 : i32
    %c0_i32_0 = arith.constant 0 : i32
    %c0_i32_1 = arith.constant 0 : i32
    return %c0_i32, %c0_i32_0 : i32, i32
  }
  func.func @transform_2(%arg0: i32) -> (i32, i32) {
    %c0_i32 = arith.constant 0 : i32
    %c0_i32_0 = arith.constant 0 : i32
    %c0_i32_1 = arith.constant 0 : i32
    return %c0_i32, %c0_i32_0 : i32, i32
  }
  func.func @transform_3(%arg0: i32) -> (i32, i32) {
    %c0_i32 = arith.constant 0 : i32
    %c0_i32_0 = arith.constant 0 : i32
    %c0_i32_1 = arith.constant 0 : i32
    return %c0_i32, %c0_i32_0 : i32, i32
  }
  func.func @transform_4(%arg0: i32) -> (i32, i32) {
    %c0_i32 = arith.constant 0 : i32
    %c0_i32_0 = arith.constant 0 : i32
    %c0_i32_1 = arith.constant 0 : i32
    return %c0_i32, %c0_i32_0 : i32, i32
  }
  func.func @transform_5(%arg0: i32) -> (i32, i32) {
    %c0_i32 = arith.constant 0 : i32
    %c0_i32_0 = arith.constant 0 : i32
    %c0_i32_1 = arith.constant 0 : i32
    return %c0_i32, %c0_i32_0 : i32, i32
  }
  func.func @transform_6(%arg0: i32) -> (i32, i32) {
    %c0_i32 = arith.constant 0 : i32
    %c0_i32_0 = arith.constant 0 : i32
    return %arg0, %c0_i32 : i32, i32
  }
  func.func @transform_7(%arg0: i32) -> (i32, i32) {
    %c0_i32 = arith.constant 0 : i32
    %c0_i32_0 = arith.constant 0 : i32
    return %arg0, %c0_i32 : i32, i32
  }
}

module attributes {stable_mosaic.version = 11 : i64} {
  func.func @_attn_tail_kernel(%arg0: i32, %arg1: memref<1x64x48xbf16, #tpu.memory_space<vmem>>, %arg2: memref<1x4x64x8xbf16, #tpu.memory_space<vmem>>, %arg3: memref<1x64x64xbf16, #tpu.memory_space<vmem>>, %arg4: memref<1x16xf32, #tpu.memory_space<vmem>>, %arg5: memref<1x16xf32, #tpu.memory_space<vmem>>, %arg6: memref<16x64xbf16, #tpu.memory_space<vmem>>, %arg7: memref<1x64xf32, #tpu.memory_space<vmem>>, %arg8: memref<1x64x64xf32, #tpu.memory_space<vmem>>) attributes {dimension_semantics = [#tpu.dimension_semantics<parallel>], iteration_bounds = array<i64: 2>, scalar_prefetch = 0 : i64, scratch_operands = 0 : i64, tpu.core_type = #tpu.core_type<tc>, window_params = [{transform_indices = @transform_0, window_bounds = array<i64: 1, 64, 48>}, {transform_indices = @transform_1, window_bounds = array<i64: 1, 4, 64, 8>}, {transform_indices = @transform_2, window_bounds = array<i64: 1, 64, 64>}, {pipeline_mode = #tpu.pipeline_mode<synchronous>, transform_indices = @transform_3, window_bounds = array<i64: 1, 16>}, {pipeline_mode = #tpu.pipeline_mode<synchronous>, transform_indices = @transform_4, window_bounds = array<i64: 1, 16>}, {pipeline_mode = #tpu.pipeline_mode<synchronous>, transform_indices = @transform_5, window_bounds = array<i64: 16, 64>}, {pipeline_mode = #tpu.pipeline_mode<synchronous>, transform_indices = @transform_6, window_bounds = array<i64: 1, 64>}, {transform_indices = @transform_7, window_bounds = array<i64: 1, 64, 64>}]} {
    %c0 = arith.constant 0 : index
    %c0_0 = arith.constant 0 : index
    %c0_1 = arith.constant 0 : index
    %0 = vector.load %arg1[%c0, %c0_0, %c0_1] : memref<1x64x48xbf16, #tpu.memory_space<vmem>>, vector<1x64x48xbf16>
    %1 = vector.shape_cast %0 : vector<1x64x48xbf16> to vector<64x48xbf16>
    %2 = vector.extract_strided_slice %1 {offsets = [0, 0], sizes = [64, 4], strides = [1, 1]} : vector<64x48xbf16> to vector<64x4xbf16>
    %3 = vector.extract_strided_slice %1 {offsets = [0, 16], sizes = [64, 4], strides = [1, 1]} : vector<64x48xbf16> to vector<64x4xbf16>
    %4 = vector.extract_strided_slice %1 {offsets = [0, 32], sizes = [64, 4], strides = [1, 1]} : vector<64x48xbf16> to vector<64x4xbf16>
    %cst = arith.constant dense<0.000000e+00> : vector<64x64xf32>
    %5 = tpu.matmul %2, %3, %cst {dimension_numbers = #tpu.dot_dimension_numbers<[1], [1], [0], [0], [0, 0, 1, 0], [], []>} : vector<64x4xbf16>, vector<64x4xbf16>, vector<64x64xf32> -> vector<64x64xf32>
    %c0_2 = arith.constant 0 : index
    %c0_3 = arith.constant 0 : index
    %c0_4 = arith.constant 0 : index
    %c0_5 = arith.constant 0 : index
    %6 = vector.load %arg2[%c0_2, %c0_3, %c0_4, %c0_5] : memref<1x4x64x8xbf16, #tpu.memory_space<vmem>>, vector<1x1x64x8xbf16>
    %7 = vector.shape_cast %6 : vector<1x1x64x8xbf16> to vector<64x8xbf16>
    %8 = arith.extf %7 : vector<64x8xbf16> to vector<64x8xf32>
    %9 = tpu.concatenate %8, %8, %8, %8, %8, %8, %8, %8 in 1 : vector<64x8xf32>, vector<64x8xf32>, vector<64x8xf32>, vector<64x8xf32>, vector<64x8xf32>, vector<64x8xf32>, vector<64x8xf32>, vector<64x8xf32> -> vector<64x64xf32>
    %10 = arith.addf %5, %9 : vector<64x64xf32>
    %cst_6 = arith.constant dense<0xFF800000> : vector<64xf32>
    %11 = vector.multi_reduction <maximumf>, %10, %cst_6 [1] : vector<64x64xf32> to vector<64xf32>
    %12 = vector.shape_cast %11 : vector<64xf32> to vector<64x1xf32>
    %13 = vector.broadcast %12 : vector<64x1xf32> to vector<64x64xf32>
    %14 = arith.subf %10, %13 : vector<64x64xf32>
    %15 = math.exp %14 : vector<64x64xf32>
    %cst_7 = arith.constant dense<0.000000e+00> : vector<64xf32>
    %16 = vector.multi_reduction <add>, %15, %cst_7 [1] : vector<64x64xf32> to vector<64xf32>
    %17 = vector.shape_cast %16 : vector<64xf32> to vector<64x1xf32>
    %18 = tpu.reciprocal %17 {approx = true} : vector<64x1xf32> -> vector<64x1xf32>
    %19 = vector.broadcast %18 : vector<64x1xf32> to vector<64x64xf32>
    %20 = arith.mulf %15, %19 : vector<64x64xf32>
    %21 = arith.truncf %20 : vector<64x64xf32> to vector<64x64xbf16>
    %cst_8 = arith.constant dense<0.000000e+00> : vector<64x4xf32>
    %22 = tpu.matmul %21, %4, %cst_8 {dimension_numbers = #tpu.dot_dimension_numbers<[1], [0], [0], [1], [0, 0, 1, 1], [], []>} : vector<64x64xbf16>, vector<64x4xbf16>, vector<64x4xf32> -> vector<64x4xf32>
    %23 = vector.extract_strided_slice %1 {offsets = [0, 4], sizes = [64, 4], strides = [1, 1]} : vector<64x48xbf16> to vector<64x4xbf16>
    %24 = vector.extract_strided_slice %1 {offsets = [0, 20], sizes = [64, 4], strides = [1, 1]} : vector<64x48xbf16> to vector<64x4xbf16>
    %25 = vector.extract_strided_slice %1 {offsets = [0, 36], sizes = [64, 4], strides = [1, 1]} : vector<64x48xbf16> to vector<64x4xbf16>
    %cst_9 = arith.constant dense<0.000000e+00> : vector<64x64xf32>
    %26 = tpu.matmul %23, %24, %cst_9 {dimension_numbers = #tpu.dot_dimension_numbers<[1], [1], [0], [0], [0, 0, 1, 0], [], []>} : vector<64x4xbf16>, vector<64x4xbf16>, vector<64x64xf32> -> vector<64x64xf32>
    %c0_10 = arith.constant 0 : index
    %c1 = arith.constant 1 : index
    %c0_11 = arith.constant 0 : index
    %c0_12 = arith.constant 0 : index
    %27 = vector.load %arg2[%c0_10, %c1, %c0_11, %c0_12] : memref<1x4x64x8xbf16, #tpu.memory_space<vmem>>, vector<1x1x64x8xbf16>
    %28 = vector.shape_cast %27 : vector<1x1x64x8xbf16> to vector<64x8xbf16>
    %29 = arith.extf %28 : vector<64x8xbf16> to vector<64x8xf32>
    %30 = tpu.concatenate %29, %29, %29, %29, %29, %29, %29, %29 in 1 : vector<64x8xf32>, vector<64x8xf32>, vector<64x8xf32>, vector<64x8xf32>, vector<64x8xf32>, vector<64x8xf32>, vector<64x8xf32>, vector<64x8xf32> -> vector<64x64xf32>
    %31 = arith.addf %26, %30 : vector<64x64xf32>
    %cst_13 = arith.constant dense<0xFF800000> : vector<64xf32>
    %32 = vector.multi_reduction <maximumf>, %31, %cst_13 [1] : vector<64x64xf32> to vector<64xf32>
    %33 = vector.shape_cast %32 : vector<64xf32> to vector<64x1xf32>
    %34 = vector.broadcast %33 : vector<64x1xf32> to vector<64x64xf32>
    %35 = arith.subf %31, %34 : vector<64x64xf32>
    %36 = math.exp %35 : vector<64x64xf32>
    %cst_14 = arith.constant dense<0.000000e+00> : vector<64xf32>
    %37 = vector.multi_reduction <add>, %36, %cst_14 [1] : vector<64x64xf32> to vector<64xf32>
    %38 = vector.shape_cast %37 : vector<64xf32> to vector<64x1xf32>
    %39 = tpu.reciprocal %38 {approx = true} : vector<64x1xf32> -> vector<64x1xf32>
    %40 = vector.broadcast %39 : vector<64x1xf32> to vector<64x64xf32>
    %41 = arith.mulf %36, %40 : vector<64x64xf32>
    %42 = arith.truncf %41 : vector<64x64xf32> to vector<64x64xbf16>
    %cst_15 = arith.constant dense<0.000000e+00> : vector<64x4xf32>
    %43 = tpu.matmul %42, %25, %cst_15 {dimension_numbers = #tpu.dot_dimension_numbers<[1], [0], [0], [1], [0, 0, 1, 1], [], []>} : vector<64x64xbf16>, vector<64x4xbf16>, vector<64x4xf32> -> vector<64x4xf32>
    %44 = vector.extract_strided_slice %1 {offsets = [0, 8], sizes = [64, 4], strides = [1, 1]} : vector<64x48xbf16> to vector<64x4xbf16>
    %45 = vector.extract_strided_slice %1 {offsets = [0, 24], sizes = [64, 4], strides = [1, 1]} : vector<64x48xbf16> to vector<64x4xbf16>
    %46 = vector.extract_strided_slice %1 {offsets = [0, 40], sizes = [64, 4], strides = [1, 1]} : vector<64x48xbf16> to vector<64x4xbf16>
    %cst_16 = arith.constant dense<0.000000e+00> : vector<64x64xf32>
    %47 = tpu.matmul %44, %45, %cst_16 {dimension_numbers = #tpu.dot_dimension_numbers<[1], [1], [0], [0], [0, 0, 1, 0], [], []>} : vector<64x4xbf16>, vector<64x4xbf16>, vector<64x64xf32> -> vector<64x64xf32>
    %c0_17 = arith.constant 0 : index
    %c2 = arith.constant 2 : index
    %c0_18 = arith.constant 0 : index
    %c0_19 = arith.constant 0 : index
    %48 = vector.load %arg2[%c0_17, %c2, %c0_18, %c0_19] : memref<1x4x64x8xbf16, #tpu.memory_space<vmem>>, vector<1x1x64x8xbf16>
    %49 = vector.shape_cast %48 : vector<1x1x64x8xbf16> to vector<64x8xbf16>
    %50 = arith.extf %49 : vector<64x8xbf16> to vector<64x8xf32>
    %51 = tpu.concatenate %50, %50, %50, %50, %50, %50, %50, %50 in 1 : vector<64x8xf32>, vector<64x8xf32>, vector<64x8xf32>, vector<64x8xf32>, vector<64x8xf32>, vector<64x8xf32>, vector<64x8xf32>, vector<64x8xf32> -> vector<64x64xf32>
    %52 = arith.addf %47, %51 : vector<64x64xf32>
    %cst_20 = arith.constant dense<0xFF800000> : vector<64xf32>
    %53 = vector.multi_reduction <maximumf>, %52, %cst_20 [1] : vector<64x64xf32> to vector<64xf32>
    %54 = vector.shape_cast %53 : vector<64xf32> to vector<64x1xf32>
    %55 = vector.broadcast %54 : vector<64x1xf32> to vector<64x64xf32>
    %56 = arith.subf %52, %55 : vector<64x64xf32>
    %57 = math.exp %56 : vector<64x64xf32>
    %cst_21 = arith.constant dense<0.000000e+00> : vector<64xf32>
    %58 = vector.multi_reduction <add>, %57, %cst_21 [1] : vector<64x64xf32> to vector<64xf32>
    %59 = vector.shape_cast %58 : vector<64xf32> to vector<64x1xf32>
    %60 = tpu.reciprocal %59 {approx = true} : vector<64x1xf32> -> vector<64x1xf32>
    %61 = vector.broadcast %60 : vector<64x1xf32> to vector<64x64xf32>
    %62 = arith.mulf %57, %61 : vector<64x64xf32>
    %63 = arith.truncf %62 : vector<64x64xf32> to vector<64x64xbf16>
    %cst_22 = arith.constant dense<0.000000e+00> : vector<64x4xf32>
    %64 = tpu.matmul %63, %46, %cst_22 {dimension_numbers = #tpu.dot_dimension_numbers<[1], [0], [0], [1], [0, 0, 1, 1], [], []>} : vector<64x64xbf16>, vector<64x4xbf16>, vector<64x4xf32> -> vector<64x4xf32>
    %65 = vector.extract_strided_slice %1 {offsets = [0, 12], sizes = [64, 4], strides = [1, 1]} : vector<64x48xbf16> to vector<64x4xbf16>
    %66 = vector.extract_strided_slice %1 {offsets = [0, 28], sizes = [64, 4], strides = [1, 1]} : vector<64x48xbf16> to vector<64x4xbf16>
    %67 = vector.extract_strided_slice %1 {offsets = [0, 44], sizes = [64, 4], strides = [1, 1]} : vector<64x48xbf16> to vector<64x4xbf16>
    %cst_23 = arith.constant dense<0.000000e+00> : vector<64x64xf32>
    %68 = tpu.matmul %65, %66, %cst_23 {dimension_numbers = #tpu.dot_dimension_numbers<[1], [1], [0], [0], [0, 0, 1, 0], [], []>} : vector<64x4xbf16>, vector<64x4xbf16>, vector<64x64xf32> -> vector<64x64xf32>
    %c0_24 = arith.constant 0 : index
    %c3 = arith.constant 3 : index
    %c0_25 = arith.constant 0 : index
    %c0_26 = arith.constant 0 : index
    %69 = vector.load %arg2[%c0_24, %c3, %c0_25, %c0_26] : memref<1x4x64x8xbf16, #tpu.memory_space<vmem>>, vector<1x1x64x8xbf16>
    %70 = vector.shape_cast %69 : vector<1x1x64x8xbf16> to vector<64x8xbf16>
    %71 = arith.extf %70 : vector<64x8xbf16> to vector<64x8xf32>
    %72 = tpu.concatenate %71, %71, %71, %71, %71, %71, %71, %71 in 1 : vector<64x8xf32>, vector<64x8xf32>, vector<64x8xf32>, vector<64x8xf32>, vector<64x8xf32>, vector<64x8xf32>, vector<64x8xf32>, vector<64x8xf32> -> vector<64x64xf32>
    %73 = arith.addf %68, %72 : vector<64x64xf32>
    %cst_27 = arith.constant dense<0xFF800000> : vector<64xf32>
    %74 = vector.multi_reduction <maximumf>, %73, %cst_27 [1] : vector<64x64xf32> to vector<64xf32>
    %75 = vector.shape_cast %74 : vector<64xf32> to vector<64x1xf32>
    %76 = vector.broadcast %75 : vector<64x1xf32> to vector<64x64xf32>
    %77 = arith.subf %73, %76 : vector<64x64xf32>
    %78 = math.exp %77 : vector<64x64xf32>
    %cst_28 = arith.constant dense<0.000000e+00> : vector<64xf32>
    %79 = vector.multi_reduction <add>, %78, %cst_28 [1] : vector<64x64xf32> to vector<64xf32>
    %80 = vector.shape_cast %79 : vector<64xf32> to vector<64x1xf32>
    %81 = tpu.reciprocal %80 {approx = true} : vector<64x1xf32> -> vector<64x1xf32>
    %82 = vector.broadcast %81 : vector<64x1xf32> to vector<64x64xf32>
    %83 = arith.mulf %78, %82 : vector<64x64xf32>
    %84 = arith.truncf %83 : vector<64x64xf32> to vector<64x64xbf16>
    %cst_29 = arith.constant dense<0.000000e+00> : vector<64x4xf32>
    %85 = tpu.matmul %84, %67, %cst_29 {dimension_numbers = #tpu.dot_dimension_numbers<[1], [0], [0], [1], [0, 0, 1, 1], [], []>} : vector<64x64xbf16>, vector<64x4xbf16>, vector<64x4xf32> -> vector<64x4xf32>
    %86 = tpu.concatenate %22, %43, %64, %85 in 1 : vector<64x4xf32>, vector<64x4xf32>, vector<64x4xf32>, vector<64x4xf32> -> vector<64x16xf32>
    %c0_30 = arith.constant 0 : index
    %c0_31 = arith.constant 0 : index
    %87 = vector.load %arg4[%c0_30, %c0_31] : memref<1x16xf32, #tpu.memory_space<vmem>>, vector<1x16xf32>
    %88 = vector.broadcast %87 : vector<1x16xf32> to vector<64x16xf32>
    %89 = arith.mulf %86, %88 : vector<64x16xf32>
    %c0_32 = arith.constant 0 : index
    %c0_33 = arith.constant 0 : index
    %90 = vector.load %arg5[%c0_32, %c0_33] : memref<1x16xf32, #tpu.memory_space<vmem>>, vector<1x16xf32>
    %91 = vector.broadcast %90 : vector<1x16xf32> to vector<64x16xf32>
    %92 = arith.addf %89, %91 : vector<64x16xf32>
    %cst_34 = arith.constant 0.000000e+00 : f32
    %93 = vector.broadcast %cst_34 : f32 to vector<64x16xf32>
    %94 = arith.maximumf %92, %93 : vector<64x16xf32>
    %95 = arith.truncf %94 : vector<64x16xf32> to vector<64x16xbf16>
    %c0_35 = arith.constant 0 : index
    %c0_36 = arith.constant 0 : index
    %96 = vector.load %arg6[%c0_35, %c0_36] : memref<16x64xbf16, #tpu.memory_space<vmem>>, vector<16x64xbf16>
    %cst_37 = arith.constant dense<0.000000e+00> : vector<64x64xf32>
    %97 = tpu.matmul %95, %96, %cst_37 {dimension_numbers = #tpu.dot_dimension_numbers<[1], [0], [0], [1], [0, 0, 1, 1], [], []>} : vector<64x16xbf16>, vector<16x64xbf16>, vector<64x64xf32> -> vector<64x64xf32>
    %c0_38 = arith.constant 0 : index
    %c0_39 = arith.constant 0 : index
    %98 = vector.load %arg7[%c0_38, %c0_39] : memref<1x64xf32, #tpu.memory_space<vmem>>, vector<1x64xf32>
    %99 = vector.broadcast %98 : vector<1x64xf32> to vector<64x64xf32>
    %100 = arith.addf %97, %99 : vector<64x64xf32>
    %c0_40 = arith.constant 0 : index
    %c0_41 = arith.constant 0 : index
    %c0_42 = arith.constant 0 : index
    %101 = vector.load %arg3[%c0_40, %c0_41, %c0_42] : memref<1x64x64xbf16, #tpu.memory_space<vmem>>, vector<1x64x64xbf16>
    %102 = vector.shape_cast %101 : vector<1x64x64xbf16> to vector<64x64xbf16>
    %103 = arith.extf %102 : vector<64x64xbf16> to vector<64x64xf32>
    %104 = arith.addf %100, %103 : vector<64x64xf32>
    %c0_43 = arith.constant 0 : index
    %c0_44 = arith.constant 0 : index
    %c0_45 = arith.constant 0 : index
    %105 = vector.load %arg8[%c0_43, %c0_44, %c0_45] : memref<1x64x64xf32, #tpu.memory_space<vmem>>, vector<1x64x64xf32>
    %106 = vector.shape_cast %105 : vector<1x64x64xf32> to vector<64x64xf32>
    %107 = vector.shape_cast %104 : vector<64x64xf32> to vector<1x64x64xf32>
    tpu.vector_store %arg8[%c0_43, %c0_44, %c0_45], %107 {strides = array<i32>} : memref<1x64x64xf32, #tpu.memory_space<vmem>>, vector<1x64x64xf32>,
    return
  }
  func.func @transform_0(%arg0: i32) -> (i32, i32, i32) {
    %c0_i32 = arith.constant 0 : i32
    %c0_i32_0 = arith.constant 0 : i32
    %c0_i32_1 = arith.constant 0 : i32
    return %arg0, %c0_i32, %c0_i32_0 : i32, i32, i32
  }
  func.func @transform_1(%arg0: i32) -> (i32, i32, i32, i32) {
    %c0_i32 = arith.constant 0 : i32
    %c0_i32_0 = arith.constant 0 : i32
    %c0_i32_1 = arith.constant 0 : i32
    %c0_i32_2 = arith.constant 0 : i32
    return %arg0, %c0_i32, %c0_i32_0, %c0_i32_1 : i32, i32, i32, i32
  }
  func.func @transform_2(%arg0: i32) -> (i32, i32, i32) {
    %c0_i32 = arith.constant 0 : i32
    %c0_i32_0 = arith.constant 0 : i32
    %c0_i32_1 = arith.constant 0 : i32
    return %arg0, %c0_i32, %c0_i32_0 : i32, i32, i32
  }
  func.func @transform_3(%arg0: i32) -> (i32, i32) {
    %c0_i32 = arith.constant 0 : i32
    %c0_i32_0 = arith.constant 0 : i32
    %c0_i32_1 = arith.constant 0 : i32
    return %c0_i32, %c0_i32_0 : i32, i32
  }
  func.func @transform_4(%arg0: i32) -> (i32, i32) {
    %c0_i32 = arith.constant 0 : i32
    %c0_i32_0 = arith.constant 0 : i32
    %c0_i32_1 = arith.constant 0 : i32
    return %c0_i32, %c0_i32_0 : i32, i32
  }
  func.func @transform_5(%arg0: i32) -> (i32, i32) {
    %c0_i32 = arith.constant 0 : i32
    %c0_i32_0 = arith.constant 0 : i32
    %c0_i32_1 = arith.constant 0 : i32
    return %c0_i32, %c0_i32_0 : i32, i32
  }
  func.func @transform_6(%arg0: i32) -> (i32, i32) {
    %c0_i32 = arith.constant 0 : i32
    %c0_i32_0 = arith.constant 0 : i32
    %c0_i32_1 = arith.constant 0 : i32
    return %c0_i32, %c0_i32_0 : i32, i32
  }
  func.func @transform_7(%arg0: i32) -> (i32, i32, i32) {
    %c0_i32 = arith.constant 0 : i32
    %c0_i32_0 = arith.constant 0 : i32
    %c0_i32_1 = arith.constant 0 : i32
    return %arg0, %c0_i32, %c0_i32_0 : i32, i32, i32
  }
}

</mosaic_0001>

<llo_original>
// kernel: _lambda_.2
$region0: #{_lambda_.2}
  #allocation0 [shape = 'u32[]', space=smem, size = 0x4, offset = 0x4, fixed_abs, tag = 'smem constant byte address 0x4 - core index']
  #allocation1 [shape = 'u32[144,128]{1,0:T(1,128)}', space=vmem, size = 0x12000, scoped, tag = 'internal scratch']
  %s0 = inlined_call_operand.vmem [shape: bf16[128,32], index: 0, kind: input, shape index: {}]
  %s1 = inlined_call_operand.vmem [shape: bf16[32,16], index: 1, kind: input, shape index: {}]
  %s2 = inlined_call_operand.vmem [shape: f32[1,16], index: 2, kind: input, shape index: {}]
  %s3 = inlined_call_operand.vmem [shape: bf16[32,64], index: 3, kind: input, shape index: {}]
  %s4 = inlined_call_operand.vmem [shape: f32[1,64], index: 4, kind: input, shape index: {}]
  %s5 = inlined_call_operand.vmem [shape: bf16[16,48], index: 5, kind: input, shape index: {}]
  %s6 = inlined_call_operand.vmem [shape: bf16[128,48], index: 6, kind: output, shape index: {0}]
  %s7 = inlined_call_operand.vmem [shape: bf16[128,64], index: 7, kind: output, shape index: {1}]
  %8 = xla_tuple %s6, %s7
  %s9 = sld [smem:[#allocation0]]
  $region65: #{_lambda_.2} parent=0
    _
  %s11 = ssub.s32 1, %s9
  %s12 = scalar_select 0, %s11, %s9
  loop: start=0, step=1, limit=4
  $region2: #{_lambda_.2} parent=0 // loop_pre_header
    _
  $region3: #{_lambda_.2} parent=0 // loop_header
    %s14 = sphi 0, %s18
    %p15 = scmp.ge.s32.totalorder %s14, 4
    %s24 = sphi 0, %s26
    %s27 = sphi 0, %s24
    %s28 = sphi 0, %s27
    %s44 = sphi 0, %s28
    %s48 = sphi 0, %s48
    %s50 = sphi 0, %s48
    %s51 = sphi 0, %s50
    %s65 = sphi 0, %s51
    %s69 = sphi 0, %s69
    %s71 = sphi 0, %s69
    %s72 = sphi 0, %s71
    %s86 = sphi 0, %s72
    %s90 = sphi 0, %s90
    %s92 = sphi 0, %s90
    %s93 = sphi 0, %s92
    %s107 = sphi 0, %s93
    %s111 = sphi 0, %s111
    %s113 = sphi 0, %s111
    %s114 = sphi 0, %s113
    %s128 = sphi 0, %s114
    %s132 = sphi 0, %s132
    %s134 = sphi 0, %s132
    %s135 = sphi 0, %s134
    %s149 = sphi 0, %s135
    %s155 = sphi 0, %s157
    %s158 = sphi 0, %s155
    %s159 = sphi 0, %s158
    %s175 = sphi 0, %s159
    %s181 = sphi 0, %s183
    %s184 = sphi 0, %s181
    %s185 = sphi 0, %s184
    %s201 = sphi 0, %s185
  $region4: #{_lambda_.2} parent=0 // loop_header_branch
    %17 = sbr.rel (%p15) target = $region8
  $region5: #{_lambda_.2} parent=0 // loop_body
    %s19 = ssub.s32 %s14, 1
    %s20 = ssub.s32 %s14, 2
    %s21 = sadd.s32 %s14, 1
    %s22 = ssub.s32 %s14, %s21
    %p23 = scmp.eq.s32.totalorder %s22, 0
    %s25 = sadd.s32 %s24, 1
    %s26 = scalar_select %p23, %s24, %s25
    %p29 = pneg %p23
    %p30 = scmp.eq.s32.totalorder %s14, 1
    %p31 = por %p29, %p30
    %p32 = scmp.ne.s32.totalorder %s24, %s27
    %p33 = scmp.eq.s32.totalorder %s14, 0
    %p34 = por %p32, %p33
    %p35 = scmp.ne.s32.totalorder %s24, %s27
    %p36 = scmp.eq.s32.totalorder %s19, 1
    %p37 = por %p35, %p36
    %p38 = scmp.ne.s32.totalorder %s27, %s28
    %p39 = scmp.eq.s32.totalorder %s19, 0
    %p40 = por %p38, %p39
    %p41 = scmp.ne.s32.totalorder %s27, %s28
    %p42 = scmp.eq.s32.totalorder %s20, 1
    %p43 = por %p41, %p42
    %p45 = scmp.ne.s32.totalorder %s28, %s44
    %p46 = scmp.eq.s32.totalorder %s20, 0
    %p47 = por %p45, %p46
    %s49 = sadd.s32 %s48, 1
    %p52 = scmp.eq.s32.totalorder %s14, 1
    %p53 = scmp.ne.s32.totalorder %s48, %s50
    %p54 = scmp.eq.s32.totalorder %s14, 0
    %p55 = por %p53, %p54
    %p56 = scmp.ne.s32.totalorder %s48, %s50
    %p57 = scmp.eq.s32.totalorder %s19, 1
    %p58 = por %p56, %p57
    %p59 = scmp.ne.s32.totalorder %s50, %s51
    %p60 = scmp.eq.s32.totalorder %s19, 0
    %p61 = por %p59, %p60
    %p62 = scmp.ne.s32.totalorder %s50, %s51
    %p63 = scmp.eq.s32.totalorder %s20, 1
    %p64 = por %p62, %p63
    %p66 = scmp.ne.s32.totalorder %s51, %s65
    %p67 = scmp.eq.s32.totalorder %s20, 0
    %p68 = por %p66, %p67
    %s70 = sadd.s32 %s69, 1
    %p73 = scmp.eq.s32.totalorder %s14, 1
    %p74 = scmp.ne.s32.totalorder %s69, %s71
    %p75 = scmp.eq.s32.totalorder %s14, 0
    %p76 = por %p74, %p75
    %p77 = scmp.ne.s32.totalorder %s69, %s71
    %p78 = scmp.eq.s32.totalorder %s19, 1
    %p79 = por %p77, %p78
    %p80 = scmp.ne.s32.totalorder %s71, %s72
    %p81 = scmp.eq.s32.totalorder %s19, 0
    %p82 = por %p80, %p81
    %p83 = scmp.ne.s32.totalorder %s71, %s72
    %p84 = scmp.eq.s32.totalorder %s20, 1
    %p85 = por %p83, %p84
    %p87 = scmp.ne.s32.totalorder %s72, %s86
    %p88 = scmp.eq.s32.totalorder %s20, 0
    %p89 = por %p87, %p88
    %s91 = sadd.s32 %s90, 1
    %p94 = scmp.eq.s32.totalorder %s14, 1
    %p95 = scmp.ne.s32.totalorder %s90, %s92
    %p96 = scmp.eq.s32.totalorder %s14, 0
    %p97 = por %p95, %p96
    %p98 = scmp.ne.s32.totalorder %s90, %s92
    %p99 = scmp.eq.s32.totalorder %s19, 1
    %p100 = por %p98, %p99
    %p101 = scmp.ne.s32.totalorder %s92, %s93
    %p102 = scmp.eq.s32.totalorder %s19, 0
    %p103 = por %p101, %p102
    %p104 = scmp.ne.s32.totalorder %s92, %s93
    %p105 = scmp.eq.s32.totalorder %s20, 1
    %p106 = por %p104, %p105
    %p108 = scmp.ne.s32.totalorder %s93, %s107
    %p109 = scmp.eq.s32.totalorder %s20, 0
    %p110 = por %p108, %p109
    %s112 = sadd.s32 %s111, 1
    %p115 = scmp.eq.s32.totalorder %s14, 1
    %p116 = scmp.ne.s32.totalorder %s111, %s113
    %p117 = scmp.eq.s32.totalorder %s14, 0
    %p118 = por %p116, %p117
    %p119 = scmp.ne.s32.totalorder %s111, %s113
    %p120 = scmp.eq.s32.totalorder %s19, 1
    %p121 = por %p119, %p120
    %p122 = scmp.ne.s32.totalorder %s113, %s114
    %p123 = scmp.eq.s32.totalorder %s19, 0
    %p124 = por %p122, %p123
    %p125 = scmp.ne.s32.totalorder %s113, %s114
    %p126 = scmp.eq.s32.totalorder %s20, 1
    %p127 = por %p125, %p126
    %p129 = scmp.ne.s32.totalorder %s114, %s128
    %p130 = scmp.eq.s32.totalorder %s20, 0
    %p131 = por %p129, %p130
    %s133 = sadd.s32 %s132, 1
    %p136 = scmp.eq.s32.totalorder %s14, 1
    %p137 = scmp.ne.s32.totalorder %s132, %s134
    %p138 = scmp.eq.s32.totalorder %s14, 0
    %p139 = por %p137, %p138
    %p140 = scmp.ne.s32.totalorder %s132, %s134
    %p141 = scmp.eq.s32.totalorder %s19, 1
    %p142 = por %p140, %p141
    %p143 = scmp.ne.s32.totalorder %s134, %s135
    %p144 = scmp.eq.s32.totalorder %s19, 0
    %p145 = por %p143, %p144
    %p146 = scmp.ne.s32.totalorder %s134, %s135
    %p147 = scmp.eq.s32.totalorder %s20, 1
    %p148 = por %p146, %p147
    %p150 = scmp.ne.s32.totalorder %s135, %s149
    %p151 = scmp.eq.s32.totalorder %s20, 0
    %p152 = por %p150, %p151
    %s153 = ssub.s32 %s14, %s21
    %p154 = scmp.eq.s32.totalorder %s153, 0
    %s156 = sadd.s32 %s155, 1
    %s157 = scalar_select %p154, %s155, %s156
    %p160 = pneg %p154
    %p161 = scmp.eq.s32.totalorder %s14, 1
    %p162 = por %p160, %p161
    %p163 = scmp.ne.s32.totalorder %s155, %s158
    %p164 = scmp.eq.s32.totalorder %s14, 0
    %p165 = por %p163, %p164
    %p166 = scmp.ne.s32.totalorder %s155, %s158
    %p167 = scmp.eq.s32.totalorder %s19, 1
    %p168 = por %p166, %p167
    %p169 = scmp.ne.s32.totalorder %s158, %s159
    %p170 = scmp.eq.s32.totalorder %s19, 0
    %p171 = por %p169, %p170
    %p172 = scmp.ne.s32.totalorder %s158, %s159
    %p173 = scmp.eq.s32.totalorder %s20, 1
    %p174 = por %p172, %p173
    %p176 = scmp.ne.s32.totalorder %s159, %s175
    %p177 = scmp.eq.s32.totalorder %s20, 0
    %p178 = por %p176, %p177
    %s179 = ssub.s32 %s14, %s21
    %p180 = scmp.eq.s32.totalorder %s179, 0
    %s182 = sadd.s32 %s181, 1
    %s183 = scalar_select %p180, %s181, %s182
    %p186 = pneg %p180
    %p187 = scmp.eq.s32.totalorder %s14, 1
    %p188 = por %p186, %p187
    %p189 = scmp.ne.s32.totalorder %s181, %s184
    %p190 = scmp.eq.s32.totalorder %s14, 0
    %p191 = por %p189, %p190
    %p192 = scmp.ne.s32.totalorder %s181, %s184
    %p193 = scmp.eq.s32.totalorder %s19, 1
    %p194 = por %p192, %p193
    %p195 = scmp.ne.s32.totalorder %s184, %s185
    %p196 = scmp.eq.s32.totalorder %s19, 0
    %p197 = por %p195, %p196
    %p198 = scmp.ne.s32.totalorder %s184, %s185
    %p199 = scmp.eq.s32.totalorder %s20, 1
    %p200 = por %p198, %p199
    %p202 = scmp.ne.s32.totalorder %s185, %s201
    %p203 = scmp.eq.s32.totalorder %s20, 0
    %p204 = por %p202, %p203
    %p205 = scmp.le.s32.totalorder 1, %s14
    %p206 = scmp.lt.s32.totalorder %s14, 3
    %p207 = pnand %p205, %p206
    %p208 = pneg %p207
    // Predicated region
    $region9: #{_lambda_.2} parent=5 // pred_check
      _
    $region10: #{_lambda_.2} parent=5 // pred_check_branch
      %210 = sbr.rel (%p207) target = $region12
    $region11: #{_lambda_.2} parent=5 // pred_region
      %s211 = ssub.s32 %s14, 1
      // Predicated region
      $region13: #{_lambda_.2} parent=11 // pred_check
        %p212 = pneg %p61
      $region14: #{_lambda_.2} parent=11 // pred_check_branch
        %214 = sbr.rel (%p212) target = $region16
      $region15: #{_lambda_.2} parent=11 // pred_region
        _
      $region16: #{_lambda_.2} parent=11 // pred_fallthru
        _
      // Predicated region
      $region17: #{_lambda_.2} parent=11 // pred_check
        %p215 = pneg %p82
      $region18: #{_lambda_.2} parent=11 // pred_check_branch
        %217 = sbr.rel (%p215) target = $region20
      $region19: #{_lambda_.2} parent=11 // pred_region
        _
      $region20: #{_lambda_.2} parent=11 // pred_fallthru
        _
      // Predicated region
      $region21: #{_lambda_.2} parent=11 // pred_check
        %p218 = pneg %p103
      $region22: #{_lambda_.2} parent=11 // pred_check_branch
        %220 = sbr.rel (%p218) target = $region24
      $region23: #{_lambda_.2} parent=11 // pred_region
        _
      $region24: #{_lambda_.2} parent=11 // pred_fallthru
        _
      // Predicated region
      $region25: #{_lambda_.2} parent=11 // pred_check
        %p221 = pneg %p124
      $region26: #{_lambda_.2} parent=11 // pred_check_branch
        %223 = sbr.rel (%p221) target = $region28
      $region27: #{_lambda_.2} parent=11 // pred_region
        _
      $region28: #{_lambda_.2} parent=11 // pred_fallthru
        _
      // Predicated region
      $region29: #{_lambda_.2} parent=11 // pred_check
        %p224 = pneg %p145
      $region30: #{_lambda_.2} parent=11 // pred_check_branch
        %226 = sbr.rel (%p224) target = $region32
      $region31: #{_lambda_.2} parent=11 // pred_region
        _
      $region32: #{_lambda_.2} parent=11 // pred_fallthru
        _
    $region12: #{_lambda_.2} parent=5 // pred_fallthru
      _
    %p227 = scmp.lt.s32.totalorder %s14, 2
    // Predicated region
    $region33: #{_lambda_.2} parent=5 // pred_check
      %p228 = pneg %p227
    $region34: #{_lambda_.2} parent=5 // pred_check_branch
      %230 = sbr.rel (%p228) target = $region36
    $region35: #{_lambda_.2} parent=5 // pred_region
      // Predicated region
      $region37: #{_lambda_.2} parent=35 // pred_check
        %p231 = pneg %p34
      $region38: #{_lambda_.2} parent=35 // pred_check_branch
        %233 = sbr.rel (%p231) target = $region40
      $region39: #{_lambda_.2} parent=35 // pred_region
        %s234 = smul.u32 8, %s14
        %p235 = scmp.lt.s32.totalorder %s234, 15
        %s236 = scalar_select %p235, %s234, 15
        %s237 = smul.addr %s236, 4
        %s238 = scalar_lea.vmem %s0, %s237
        %s239 = smul.u32 8, %s14
      $region40: #{_lambda_.2} parent=35 // pred_fallthru
        _
    $region36: #{_lambda_.2} parent=5 // pred_fallthru
      _
    %p240 = scmp.le.s32.totalorder 1, %s14
    %p241 = scmp.lt.s32.totalorder %s14, 3
    %p242 = pnand %p240, %p241
    %p243 = pneg %p242
    // Predicated region
    $region41: #{_lambda_.2} parent=5 // pred_check
      _
    $region42: #{_lambda_.2} parent=5 // pred_check_branch
      %245 = sbr.rel (%p242) target = $region44
    $region43: #{_lambda_.2} parent=5 // pred_region
      %s246 = ssub.s32 %s14, 1
      %s247 = smul.u32 8, %s19
      %p248 = scmp.lt.s32.totalorder %s247, 15
      %s249 = scalar_select %p248, %s247, 15
      %s250 = smul.addr %s249, 4
      %s251 = scalar_lea.vmem %s0, %s250
      %p252 = pneg %p40
      %p253 = pneg %p37
      %p254 = pneg %p61
      %p255 = pneg %p58
      %p256 = pneg %p82
      %p257 = pneg %p79
      %p258 = pneg %p103
      %p259 = pneg %p100
      %p260 = pneg %p124
      %p261 = pneg %p121
      %p262 = pneg %p145
      %p263 = pneg %p142
      %p264 = pneg %p171
      %p265 = pneg %p168
      %s266 = smul.u32 8, %s19
      %p267 = scmp.lt.s32.totalorder %s266, 15
      %s268 = scalar_select %p267, %s266, 15
      %s269 = smul.addr %s268, 4
      %s270 = scalar_lea.vmem %s6, %s269
      %p271 = pneg %p197
      %p272 = pneg %p194
      %s273 = smul.u32 8, %s19
      %p274 = scmp.lt.s32.totalorder %s273, 15
      %s275 = scalar_select %p274, %s273, 15
      %s276 = smul.addr %s275, 4
      %s277 = scalar_lea.vmem %s7, %s276
      %s278 = smul.u32 8, %s19
      %p279 = scmp.lt.s32.totalorder %s278, 15
      %s280 = scalar_select %p279, %s278, 15
      %s281 = smul.addr %s280, 4
      %s282 = scalar_lea.vmem %s0, %s281
      %s283 = smul.u32 8, %s19
      %s284 = smul.u32 8, %s19
      %p285 = scmp.lt.s32.totalorder %s284, 15
      %s286 = scalar_select %p285, %s284, 15
      %s287 = smul.addr %s286, 4
      %s288 = scalar_lea.vmem %s6, %s287
      %s289 = smul.u32 8, %s19
      %s290 = smul.u32 8, %s19
      %p291 = scmp.lt.s32.totalorder %s290, 15
      %s292 = scalar_select %p291, %s290, 15
      %s293 = smul.addr %s292, 4
      %s294 = scalar_lea.vmem %s7, %s293
      %s295 = smul.u32 8, %s19
      %v297 = vld [vmem:[%s282] sm:$0xf]
      %v298 = vld [vmem:[%s282 + $0x4] sm:$0xf]
      %v299 = vld [vmem:[%s282 + $0x8] sm:$0xf]
      %v300 = vld [vmem:[%s282 + $0xc] sm:$0xf]
      %v301 = vld [vmem:[%s282 + $0x10] sm:$0xf]
      %v302 = vld [vmem:[%s282 + $0x14] sm:$0xf]
      %v303 = vld [vmem:[%s282 + $0x18] sm:$0xf]
      %v304 = vld [vmem:[%s282 + $0x1c] sm:$0xf]
      %v305 = vld [vmem:[%s1] sm:$0xf]
      %v306 = vld [vmem:[%s1 + $0x4] sm:$0xf]
      %v307 = vld [vmem:[%s1 + $0x8] sm:$0xf]
      %v308 = vld [vmem:[%s1 + $0xc] sm:$0xf]
      %v309 = vld [vmem:[%s2] sm:$0x1]
      %v311 = vlaneseq
      %v312 = vshrl.u32 %v311, 7
      %v313 = vsub.s32 0, %v312
      %v314 = vrot.slane %v309, %v313
      %v324 = vunpack.c.l.b16 %v297
      %v325 = vunpack.c.l.b16 %v298
      %v326 = vunpack.c.l.b16 %v299
      %v327 = vunpack.c.l.b16 %v300
      %v328 = vunpack.c.l.b16 %v301
      %v329 = vunpack.c.l.b16 %v302
      %v330 = vunpack.c.l.b16 %v303
      %v331 = vunpack.c.l.b16 %v304
      %v332 = vpack.c.b16 %v325, %v324
      %v333 = vpack.c.b16 %v327, %v326
      %v334 = vpack.c.b16 %v329, %v328
      %v335 = vpack.c.b16 %v331, %v330
      %v340 = vunpack.c.l.b16 %v305
      %v341 = vunpack.c.l.b16 %v306
      %v342 = vunpack.c.l.b16 %v307
      %v343 = vunpack.c.l.b16 %v308
      %v344 = vpack.c.b16 %v341, %v340
      %v345 = vpack.c.b16 %v343, %v342
      %vm348 = vcmask 261120
      %v350 = vsel %vm348, %v332, 0
      %v353 = vsel %vm348, %v333, 0
      %v356 = vsel %vm348, %v334, 0
      %v359 = vsel %vm348, %v335, 0
      %361 = vmatprep.subr.bf16.mxu0 0
      %362 = vmatpush1.bf16.msra.mxu0 %v344
      %363 = vmatprep.subr.bf16.mxu0 0
      %364 = vmatpush1.bf16.msra.mxu0 %v345
      %365 = vmatprep.subr.bf16.mxu0 0
      %366 = vmatpush1.bf16.msra.mxu0 0
      %367 = vmatprep.subr.bf16.mxu0 0
      %368 = vmatpush1.bf16.msra.mxu0 0
      %369 = vmatprep.subr.bf16.mxu0 0
      %370 = vmatpush1.bf16.msra.mxu0 0
      %371 = vmatprep.subr.bf16.mxu0 0
      %372 = vmatpush1.bf16.msra.mxu0 0
      %373 = vmatprep.subr.bf16.mxu0 0
      %374 = vmatpush1.bf16.msra.mxu0 0
      %375 = vmatprep.subr.bf16.mxu0 0
      %376 = vmatpush1.bf16.msra.mxu0 0
      %377 = vmatprep.subr.bf16.mxu0 0
      %378 = vmatpush1.bf16.msra.mxu0 0
      %379 = vmatprep.subr.bf16.mxu0 0
      %380 = vmatpush1.bf16.msra.mxu0 0
      %381 = vmatprep.subr.bf16.mxu0 0
      %382 = vmatpush1.bf16.msra.mxu0 0
      %383 = vmatprep.subr.bf16.mxu0 0
      %384 = vmatpush1.bf16.msra.mxu0 0
      %385 = vmatprep.subr.bf16.mxu0 0
      %386 = vmatpush1.bf16.msra.mxu0 0
      %387 = vmatprep.subr.bf16.mxu0 0
      %388 = vmatpush1.bf16.msra.mxu0 0
      %389 = vmatprep.subr.bf16.mxu0 0
      %390 = vmatpush1.bf16.msra.mxu0 0
      %391 = vmatprep.subr.bf16.mxu0 0
      %392 = vmatpush1.bf16.msra.mxu0 0
      %393 = vmatprep.mubr.bf16.mxu0 0
      %394 = vmatmul.mubr.bf16.gmra.mrb[0].mxu0 %v350
      %v395 = vpop.f32.mrb[0].mxu0
      %v396 = vadd.f32 %v314, %v395
      %v397 = vpop.f32.mrb[0].mxu0
      %v398 = vpop.f32.mrb[0].mxu0
      %v399 = vadd.f32 %v314, %v398
      %v400 = vpop.f32.mrb[0].mxu0
      %401 = vmatprep.mubr.bf16.mxu0 0
      %402 = vmatmul.mubr.bf16.gmra.mrb[0].mxu0 %v353
      %v403 = vpop.f32.mrb[0].mxu0
      %v404 = vadd.f32 %v314, %v403
      %v405 = vpop.f32.mrb[0].mxu0
      %v406 = vpop.f32.mrb[0].mxu0
      %v407 = vadd.f32 %v314, %v406
      %v408 = vpop.f32.mrb[0].mxu0
      %409 = vmatprep.mubr.bf16.mxu0 0
      %410 = vmatmul.mubr.bf16.gmra.mrb[0].mxu0 %v356
      %v411 = vpop.f32.mrb[0].mxu0
      %v412 = vadd.f32 %v314, %v411
      %v413 = vpop.f32.mrb[0].mxu0
      %v414 = vpop.f32.mrb[0].mxu0
      %v415 = vadd.f32 %v314, %v414
      %v416 = vpop.f32.mrb[0].mxu0
      %417 = vmatprep.mubr.bf16.mxu0 0
      %418 = vmatmul.mubr.bf16.gmra.mrb[0].mxu0 %v359
      %v419 = vpop.f32.mrb[0].mxu0
      %v420 = vadd.f32 %v314, %v419
      %v421 = vpop.f32.mrb[0].mxu0
      %v422 = vpop.f32.mrb[0].mxu0
      %v423 = vadd.f32 %v314, %v422
      %v424 = vpop.f32.mrb[0].mxu0
      %425 = vdwg.mxu0
      %v426 = vmax.f32 %v396, 0.0
      %v427 = vmax.f32 %v399, 0.0
      %v428 = vmax.f32 %v404, 0.0
      %v429 = vmax.f32 %v407, 0.0
      %v430 = vmax.f32 %v412, 0.0
      %v431 = vmax.f32 %v415, 0.0
      %v432 = vmax.f32 %v420, 0.0
      %v433 = vmax.f32 %v423, 0.0
      %v434 = vld [vmem:[%s3] sm:$0xf]
      %v435 = vld [vmem:[%s3 + $0x4] sm:$0xf]
      %v436 = vld [vmem:[%s3 + $0x8] sm:$0xf]
      %v437 = vld [vmem:[%s3 + $0xc] sm:$0xf]
      %v438 = vld [vmem:[%s4] sm:$0x1]
      %v440 = vlaneseq
      %v441 = vshrl.u32 %v440, 7
      %v442 = vsub.s32 0, %v441
      %v443 = vrot.slane %v438, %v442
      %v449 = vunpack.c.l.b16 %v434
      %v450 = vunpack.c.l.b16 %v435
      %v451 = vunpack.c.l.b16 %v436
      %v452 = vunpack.c.l.b16 %v437
      %v453 = vpack.c.b16 %v450, %v449
      %v454 = vpack.c.b16 %v452, %v451
      %457 = vmatprep.subr.bf16.mxu0 0
      %458 = vmatpush1.bf16.msra.mxu0 %v453
      %459 = vmatprep.subr.bf16.mxu0 0
      %460 = vmatpush1.bf16.msra.mxu0 %v454
      %461 = vmatprep.subr.bf16.mxu0 0
      %462 = vmatpush1.bf16.msra.mxu0 0
      %463 = vmatprep.subr.bf16.mxu0 0
      %464 = vmatpush1.bf16.msra.mxu0 0
      %465 = vmatprep.subr.bf16.mxu0 0
      %466 = vmatpush1.bf16.msra.mxu0 0
      %467 = vmatprep.subr.bf16.mxu0 0
      %468 = vmatpush1.bf16.msra.mxu0 0
      %469 = vmatprep.subr.bf16.mxu0 0
      %470 = vmatpush1.bf16.msra.mxu0 0
      %471 = vmatprep.subr.bf16.mxu0 0
      %472 = vmatpush1.bf16.msra.mxu0 0
      %473 = vmatprep.subr.bf16.mxu0 0
      %474 = vmatpush1.bf16.msra.mxu0 0
      %475 = vmatprep.subr.bf16.mxu0 0
      %476 = vmatpush1.bf16.msra.mxu0 0
      %477 = vmatprep.subr.bf16.mxu0 0
      %478 = vmatpush1.bf16.msra.mxu0 0
      %479 = vmatprep.subr.bf16.mxu0 0
      %480 = vmatpush1.bf16.msra.mxu0 0
      %481 = vmatprep.subr.bf16.mxu0 0
      %482 = vmatpush1.bf16.msra.mxu0 0
      %483 = vmatprep.subr.bf16.mxu0 0
      %484 = vmatpush1.bf16.msra.mxu0 0
      %485 = vmatprep.subr.bf16.mxu0 0
      %486 = vmatpush1.bf16.msra.mxu0 0
      %487 = vmatprep.subr.bf16.mxu0 0
      %488 = vmatpush1.bf16.msra.mxu0 0
      %489 = vmatprep.mubr.bf16.mxu0 0
      %490 = vmatmul.mubr.bf16.gmra.mrb[0].mxu0 %v350
      %v491 = vpop.f32.mrb[0].mxu0
      %v492 = vadd.f32 %v443, %v491
      %v493 = vpop.f32.mrb[0].mxu0
      %v494 = vpop.f32.mrb[0].mxu0
      %v495 = vadd.f32 %v443, %v494
      %v496 = vpop.f32.mrb[0].mxu0
      %497 = vmatprep.mubr.bf16.mxu0 0
      %498 = vmatmul.mubr.bf16.gmra.mrb[0].mxu0 %v353
      %v499 = vpop.f32.mrb[0].mxu0
      %v500 = vadd.f32 %v443, %v499
      %v501 = vpop.f32.mrb[0].mxu0
      %v502 = vpop.f32.mrb[0].mxu0
      %v503 = vadd.f32 %v443, %v502
      %v504 = vpop.f32.mrb[0].mxu0
      %505 = vmatprep.mubr.bf16.mxu0 0
      %506 = vmatmul.mubr.bf16.gmra.mrb[0].mxu0 %v356
      %v507 = vpop.f32.mrb[0].mxu0
      %v508 = vadd.f32 %v443, %v507
      %v509 = vpop.f32.mrb[0].mxu0
      %v510 = vpop.f32.mrb[0].mxu0
      %v511 = vadd.f32 %v443, %v510
      %v512 = vpop.f32.mrb[0].mxu0
      %513 = vmatprep.mubr.bf16.mxu0 0
      %514 = vmatmul.mubr.bf16.gmra.mrb[0].mxu0 %v359
      %v515 = vpop.f32.mrb[0].mxu0
      %v516 = vadd.f32 %v443, %v515
      %v517 = vpop.f32.mrb[0].mxu0
      %v518 = vpop.f32.mrb[0].mxu0
      %v519 = vadd.f32 %v443, %v518
      %v520 = vpop.f32.mrb[0].mxu0
      %521 = vdwg.mxu0
      %v522 = vmax.f32 %v492, 0.0
      %v523 = vmax.f32 %v495, 0.0
      %v524 = vmax.f32 %v500, 0.0
      %v525 = vmax.f32 %v503, 0.0
      %v526 = vmax.f32 %v508, 0.0
      %v527 = vmax.f32 %v511, 0.0
      %v528 = vmax.f32 %v516, 0.0
      %v529 = vmax.f32 %v519, 0.0
      %v530 = vpack.c.bf16 %v523, %v522
      %v531 = vpack.c.bf16 %v525, %v524
      %v532 = vpack.c.bf16 %v527, %v526
      %v533 = vpack.c.bf16 %v529, %v528
      %v538 = vunpack.c.l.b16 %v530
      %v539 = vunpack.c.h.b16 %v530
      %v540 = vunpack.c.l.b16 %v531
      %v541 = vunpack.c.h.b16 %v531
      %v542 = vunpack.c.l.b16 %v532
      %v543 = vunpack.c.h.b16 %v532
      %v544 = vunpack.c.l.b16 %v533
      %v545 = vunpack.c.h.b16 %v533
      %v546 = vpack.c.b16 %v538, %v538
      %v547 = vpack.c.b16 %v539, %v539
      %v548 = vpack.c.b16 %v540, %v540
      %v549 = vpack.c.b16 %v541, %v541
      %v550 = vpack.c.b16 %v542, %v542
      %v551 = vpack.c.b16 %v543, %v543
      %v552 = vpack.c.b16 %v544, %v544
      %v553 = vpack.c.b16 %v545, %v545
      %vm562 = vcmask 519168
      %563 = vst.msk [vmem:[%s294] sm:$0xf] %vm562, %v546
      %564 = vst.msk [vmem:[%s294 + $0x4] sm:$0xf] %vm562, %v547
      %565 = vst.msk [vmem:[%s294 + $0x8] sm:$0xf] %vm562, %v548
      %566 = vst.msk [vmem:[%s294 + $0xc] sm:$0xf] %vm562, %v549
      %567 = vst.msk [vmem:[%s294 + $0x10] sm:$0xf] %vm562, %v550
      %568 = vst.msk [vmem:[%s294 + $0x14] sm:$0xf] %vm562, %v551
      %569 = vst.msk [vmem:[%s294 + $0x18] sm:$0xf] %vm562, %v552
      %570 = vst.msk [vmem:[%s294 + $0x1c] sm:$0xf] %vm562, %v553
      %v571 = vpack.c.bf16 %v427, %v426
      %v572 = vpack.c.bf16 %v429, %v428
      %v573 = vpack.c.bf16 %v431, %v430
      %v574 = vpack.c.bf16 %v433, %v432
      %v575 = vld [vmem:[%s5] sm:$0xf]
      %v576 = vld [vmem:[%s5 + $0x4] sm:$0xf]
      %v579 = vunpack.c.l.b16 %v575
      %v580 = vunpack.c.l.b16 %v576
      %v581 = vpack.c.b16 %v580, %v579
      %vm583 = vcmask 130048
      %v585 = vsel %vm583, %v571, 0
      %v588 = vsel %vm583, %v572, 0
      %v591 = vsel %vm583, %v573, 0
      %v594 = vsel %vm583, %v574, 0
      %596 = vmatprep.subr.bf16.mxu0 0
      %597 = vmatpush1.bf16.msra.mxu0 %v581
      %598 = vmatprep.subr.bf16.mxu0 0
      %599 = vmatpush1.bf16.msra.mxu0 0
      %600 = vmatprep.subr.bf16.mxu0 0
      %601 = vmatpush1.bf16.msra.mxu0 0
      %602 = vmatprep.subr.bf16.mxu0 0
      %603 = vmatpush1.bf16.msra.mxu0 0
      %604 = vmatprep.subr.bf16.mxu0 0
      %605 = vmatpush1.bf16.msra.mxu0 0
      %606 = vmatprep.subr.bf16.mxu0 0
      %607 = vmatpush1.bf16.msra.mxu0 0
      %608 = vmatprep.subr.bf16.mxu0 0
      %609 = vmatpush1.bf16.msra.mxu0 0
      %610 = vmatprep.subr.bf16.mxu0 0
      %611 = vmatpush1.bf16.msra.mxu0 0
      %612 = vmatprep.subr.bf16.mxu0 0
      %613 = vmatpush1.bf16.msra.mxu0 0
      %614 = vmatprep.subr.bf16.mxu0 0
      %615 = vmatpush1.bf16.msra.mxu0 0
      %616 = vmatprep.subr.bf16.mxu0 0
      %617 = vmatpush1.bf16.msra.mxu0 0
      %618 = vmatprep.subr.bf16.mxu0 0
      %619 = vmatpush1.bf16.msra.mxu0 0
      %620 = vmatprep.subr.bf16.mxu0 0
      %621 = vmatpush1.bf16.msra.mxu0 0
      %622 = vmatprep.subr.bf16.mxu0 0
      %623 = vmatpush1.bf16.msra.mxu0 0
      %624 = vmatprep.subr.bf16.mxu0 0
      %625 = vmatpush1.bf16.msra.mxu0 0
      %626 = vmatprep.subr.bf16.mxu0 0
      %627 = vmatpush1.bf16.msra.mxu0 0
      %628 = vmatprep.mubr.bf16.mxu0 0
      %629 = vmatmul.mubr.bf16.gmra.mrb[0].mxu0 %v585
      %v630 = vpop.f32.mrb[0].mxu0
      %v631 = vadd.f32 0.0, %v630
      %v632 = vpop.f32.mrb[0].mxu0
      %v633 = vpop.f32.mrb[0].mxu0
      %v634 = vadd.f32 0.0, %v633
      %v635 = vpop.f32.mrb[0].mxu0
      %636 = vmatprep.mubr.bf16.mxu0 0
      %637 = vmatmul.mubr.bf16.gmra.mrb[0].mxu0 %v588
      %v638 = vpop.f32.mrb[0].mxu0
      %v639 = vadd.f32 0.0, %v638
      %v640 = vpop.f32.mrb[0].mxu0
      %v641 = vpop.f32.mrb[0].mxu0
      %v642 = vadd.f32 0.0, %v641
      %v643 = vpop.f32.mrb[0].mxu0
      %644 = vmatprep.mubr.bf16.mxu0 0
      %645 = vmatmul.mubr.bf16.gmra.mrb[0].mxu0 %v591
      %v646 = vpop.f32.mrb[0].mxu0
      %v647 = vadd.f32 0.0, %v646
      %v648 = vpop.f32.mrb[0].mxu0
      %v649 = vpop.f32.mrb[0].mxu0
      %v650 = vadd.f32 0.0, %v649
      %v651 = vpop.f32.mrb[0].mxu0
      %652 = vmatprep.mubr.bf16.mxu0 0
      %653 = vmatmul.mubr.bf16.gmra.mrb[0].mxu0 %v594
      %v654 = vpop.f32.mrb[0].mxu0
      %v655 = vadd.f32 0.0, %v654
      %v656 = vpop.f32.mrb[0].mxu0
      %v657 = vpop.f32.mrb[0].mxu0
      %v658 = vadd.f32 0.0, %v657
      %v659 = vpop.f32.mrb[0].mxu0
      %660 = vdwg.mxu0
      %v661 = vpack.c.bf16 %v634, %v631
      %v662 = vpack.c.bf16 %v642, %v639
      %v663 = vpack.c.bf16 %v650, %v647
      %v664 = vpack.c.bf16 %v658, %v655
      %v669 = vunpack.c.l.b16 %v661
      %v670 = vunpack.c.h.b16 %v661
      %v671 = vunpack.c.l.b16 %v662
      %v672 = vunpack.c.h.b16 %v662
      %v673 = vunpack.c.l.b16 %v663
      %v674 = vunpack.c.h.b16 %v663
      %v675 = vunpack.c.l.b16 %v664
      %v676 = vunpack.c.h.b16 %v664
      %v677 = vpack.c.b16 %v669, %v669
      %v678 = vpack.c.b16 %v670, %v670
      %v679 = vpack.c.b16 %v671, %v671
      %v680 = vpack.c.b16 %v672, %v672
      %v681 = vpack.c.b16 %v673, %v673
      %v682 = vpack.c.b16 %v674, %v674
      %v683 = vpack.c.b16 %v675, %v675
      %v684 = vpack.c.b16 %v676, %v676
      %vm693 = vcmask 388096
      %694 = vst.msk [vmem:[%s288] sm:$0xf] %vm693, %v677
      %695 = vst.msk [vmem:[%s288 + $0x4] sm:$0xf] %vm693, %v678
      %696 = vst.msk [vmem:[%s288 + $0x8] sm:$0xf] %vm693, %v679
      %697 = vst.msk [vmem:[%s288 + $0xc] sm:$0xf] %vm693, %v680
      %698 = vst.msk [vmem:[%s288 + $0x10] sm:$0xf] %vm693, %v681
      %699 = vst.msk [vmem:[%s288 + $0x14] sm:$0xf] %vm693, %v682
      %700 = vst.msk [vmem:[%s288 + $0x18] sm:$0xf] %vm693, %v683
      %701 = vst.msk [vmem:[%s288 + $0x1c] sm:$0xf] %vm693, %v684
      %s702 = smul.u32 8, %s19
      %p703 = scmp.lt.s32.totalorder %s702, 15
      %s704 = scalar_select %p703, %s702, 15
      %s705 = smul.addr %s704, 4
      %s706 = scalar_lea.vmem %s6, %s705
      %s707 = smul.u32 8, %s19
      %p708 = scmp.lt.s32.totalorder %s707, 15
      %s709 = scalar_select %p708, %s707, 15
      %s710 = smul.addr %s709, 4
      %s711 = scalar_lea.vmem %s7, %s710
      // Predicated region
      $region45: #{_lambda_.2} parent=43 // pred_check
        %p712 = pneg %p168
      $region46: #{_lambda_.2} parent=43 // pred_check_branch
        %714 = sbr.rel (%p712) target = $region48
      $region47: #{_lambda_.2} parent=43 // pred_region
        %s715 = smul.u32 8, %s19
      $region48: #{_lambda_.2} parent=43 // pred_fallthru
        _
      // Predicated region
      $region49: #{_lambda_.2} parent=43 // pred_check
        %p716 = pneg %p194
      $region50: #{_lambda_.2} parent=43 // pred_check_branch
        %718 = sbr.rel (%p716) target = $region52
      $region51: #{_lambda_.2} parent=43 // pred_region
        %s719 = smul.u32 8, %s19
      $region52: #{_lambda_.2} parent=43 // pred_fallthru
        _
    $region44: #{_lambda_.2} parent=5 // pred_fallthru
      _
    %p720 = scmp.le.s32.totalorder 2, %s14
    // Predicated region
    $region53: #{_lambda_.2} parent=5 // pred_check
      %p721 = pneg %p720
    $region54: #{_lambda_.2} parent=5 // pred_check_branch
      %723 = sbr.rel (%p721) target = $region56
    $region55: #{_lambda_.2} parent=5 // pred_region
      %s724 = ssub.s32 %s14, 2
      // Predicated region
      $region57: #{_lambda_.2} parent=55 // pred_check
        %p725 = pneg %p174
      $region58: #{_lambda_.2} parent=55 // pred_check_branch
        %727 = sbr.rel (%p725) target = $region60
      $region59: #{_lambda_.2} parent=55 // pred_region
        %s728 = smul.u32 8, %s20
        %p729 = scmp.lt.s32.totalorder %s728, 15
        %s730 = scalar_select %p729, %s728, 15
        %s731 = smul.addr %s730, 4
        %s732 = scalar_lea.vmem %s6, %s731
      $region60: #{_lambda_.2} parent=55 // pred_fallthru
        _
      // Predicated region
      $region61: #{_lambda_.2} parent=55 // pred_check
        %p733 = pneg %p200
      $region62: #{_lambda_.2} parent=55 // pred_check_branch
        %735 = sbr.rel (%p733) target = $region64
      $region63: #{_lambda_.2} parent=55 // pred_region
        %s736 = smul.u32 8, %s20
        %p737 = scmp.lt.s32.totalorder %s736, 15
        %s738 = scalar_select %p737, %s736, 15
        %s739 = smul.addr %s738, 4
        %s740 = scalar_lea.vmem %s7, %s739
      $region64: #{_lambda_.2} parent=55 // pred_fallthru
        _
    $region56: #{_lambda_.2} parent=5 // pred_fallthru
      _
  $region6: #{_lambda_.2} parent=0 // loop_footer
    %s18 = sadd.s32 1, %s14
  $region7: #{_lambda_.2} parent=0 // loop_footer_branch
    %13 = sbr.rel target = $region3
  $region8: #{_lambda_.2} parent=0 // loop_exit
    _

// kernel: _lambda_.3
$region0: #{_lambda_.3}
  #allocation0 [shape = 'u32[]', space=smem, size = 0x4, offset = 0x4, fixed_abs, tag = 'smem constant byte address 0x4 - core index']
  #allocation1 [shape = 'u32[144,128]{1,0:T(1,128)}', space=vmem, size = 0x12000, scoped, tag = 'internal scratch']
  %s0 = inlined_call_operand.vmem [shape: bf16[2,64,48], index: 0, kind: input, shape index: {}]
  %s1 = inlined_call_operand.vmem [shape: bf16[2,4,64,8], index: 1, kind: input, shape index: {}]
  %s2 = inlined_call_operand.vmem [shape: bf16[2,64,64], index: 2, kind: input, shape index: {}]
  %s3 = inlined_call_operand.vmem [shape: f32[1,16], index: 3, kind: input, shape index: {}]
  %s4 = inlined_call_operand.vmem [shape: f32[1,16], index: 4, kind: input, shape index: {}]
  %s5 = inlined_call_operand.vmem [shape: bf16[16,64], index: 5, kind: input, shape index: {}]
  %s6 = inlined_call_operand.vmem [shape: f32[1,64], index: 6, kind: input, shape index: {}]
  %s7 = inlined_call_operand.hbm [shape: f32[2,64,64], index: 7, kind: output, shape index: {}]
  %s8 = sld [smem:[#allocation0]]
  $region61: #{_lambda_.3} parent=0
    _
  %s10 = ssub.s32 1, %s8
  %s11 = scalar_select 0, %s10, %s8
  $region1: #{_lambda_.3} parent=0
    #allocation2 [shape = 'u8[65536]{0}', space=vmem, size = 0x10000, scoped, tag = 'output window, operand 0']
    #allocation3 [shape = 's32[2]{0}', space=sflag, size = 0x8, scoped, tag = 'scoped memory for _lambda_.3']
    %12 = vsyncpa [#allocation3], 0
    %s13 = scalar_lea.sflag [#allocation3], 1
    %14 = vsyncpa %s13, 0
    loop: start=0, step=1, limit=4
    $region2: #{_lambda_.3} parent=1 // loop_pre_header
      _
    $region3: #{_lambda_.3} parent=1 // loop_header
      %s16 = sphi 0, %s20
      %p17 = scmp.ge.s32.totalorder %s16, 4
      %s26 = sphi 0, %s28
      %s29 = sphi 0, %s26
      %s30 = sphi 0, %s29
      %s46 = sphi 0, %s30
      %s52 = sphi 0, %s54
      %s55 = sphi 0, %s52
      %s56 = sphi 0, %s55
      %s72 = sphi 0, %s56
      %s78 = sphi 0, %s80
      %s81 = sphi 0, %s78
      %s82 = sphi 0, %s81
      %s98 = sphi 0, %s82
      %s102 = sphi 0, %s102
      %s104 = sphi 0, %s102
      %s105 = sphi 0, %s104
      %s119 = sphi 0, %s105
      %s123 = sphi 0, %s123
      %s125 = sphi 0, %s123
      %s126 = sphi 0, %s125
      %s140 = sphi 0, %s126
      %s144 = sphi 0, %s144
      %s146 = sphi 0, %s144
      %s147 = sphi 0, %s146
      %s161 = sphi 0, %s147
      %s165 = sphi 0, %s165
      %s167 = sphi 0, %s165
      %s168 = sphi 0, %s167
      %s182 = sphi 0, %s168
      %s188 = sphi 0, %s190
      %s191 = sphi 0, %s188
      %s192 = sphi 0, %s191
      %s208 = sphi 0, %s192
    $region4: #{_lambda_.3} parent=1 // loop_header_branch
      %19 = sbr.rel (%p17) target = $region8
    $region5: #{_lambda_.3} parent=1 // loop_body
      %s21 = ssub.s32 %s16, 1
      %s22 = ssub.s32 %s16, 2
      %s23 = sadd.s32 %s16, 1
      %s24 = ssub.s32 %s16, %s23
      %p25 = scmp.eq.s32.totalorder %s24, 0
      %s27 = sadd.s32 %s26, 1
      %s28 = scalar_select %p25, %s26, %s27
      %p31 = pneg %p25
      %p32 = scmp.eq.s32.totalorder %s16, 1
      %p33 = por %p31, %p32
      %p34 = scmp.ne.s32.totalorder %s26, %s29
      %p35 = scmp.eq.s32.totalorder %s16, 0
      %p36 = por %p34, %p35
      %p37 = scmp.ne.s32.totalorder %s26, %s29
      %p38 = scmp.eq.s32.totalorder %s21, 1
      %p39 = por %p37, %p38
      %p40 = scmp.ne.s32.totalorder %s29, %s30
      %p41 = scmp.eq.s32.totalorder %s21, 0
      %p42 = por %p40, %p41
      %p43 = scmp.ne.s32.totalorder %s29, %s30
      %p44 = scmp.eq.s32.totalorder %s22, 1
      %p45 = por %p43, %p44
      %p47 = scmp.ne.s32.totalorder %s30, %s46
      %p48 = scmp.eq.s32.totalorder %s22, 0
      %p49 = por %p47, %p48
      %s50 = ssub.s32 %s16, %s23
      %p51 = scmp.eq.s32.totalorder %s50, 0
      %s53 = sadd.s32 %s52, 1
      %s54 = scalar_select %p51, %s52, %s53
      %p57 = pneg %p51
      %p58 = scmp.eq.s32.totalorder %s16, 1
      %p59 = por %p57, %p58
      %p60 = scmp.ne.s32.totalorder %s52, %s55
      %p61 = scmp.eq.s32.totalorder %s16, 0
      %p62 = por %p60, %p61
      %p63 = scmp.ne.s32.totalorder %s52, %s55
      %p64 = scmp.eq.s32.totalorder %s21, 1
      %p65 = por %p63, %p64
      %p66 = scmp.ne.s32.totalorder %s55, %s56
      %p67 = scmp.eq.s32.totalorder %s21, 0
      %p68 = por %p66, %p67
      %p69 = scmp.ne.s32.totalorder %s55, %s56
      %p70 = scmp.eq.s32.totalorder %s22, 1
      %p71 = por %p69, %p70
      %p73 = scmp.ne.s32.totalorder %s56, %s72
      %p74 = scmp.eq.s32.totalorder %s22, 0
      %p75 = por %p73, %p74
      %s76 = ssub.s32 %s16, %s23
      %p77 = scmp.eq.s32.totalorder %s76, 0
      %s79 = sadd.s32 %s78, 1
      %s80 = scalar_select %p77, %s78, %s79
      %p83 = pneg %p77
      %p84 = scmp.eq.s32.totalorder %s16, 1
      %p85 = por %p83, %p84
      %p86 = scmp.ne.s32.totalorder %s78, %s81
      %p87 = scmp.eq.s32.totalorder %s16, 0
      %p88 = por %p86, %p87
      %p89 = scmp.ne.s32.totalorder %s78, %s81
      %p90 = scmp.eq.s32.totalorder %s21, 1
      %p91 = por %p89, %p90
      %p92 = scmp.ne.s32.totalorder %s81, %s82
      %p93 = scmp.eq.s32.totalorder %s21, 0
      %p94 = por %p92, %p93
      %p95 = scmp.ne.s32.totalorder %s81, %s82
      %p96 = scmp.eq.s32.totalorder %s22, 1
      %p97 = por %p95, %p96
      %p99 = scmp.ne.s32.totalorder %s82, %s98
      %p100 = scmp.eq.s32.totalorder %s22, 0
      %p101 = por %p99, %p100
      %s103 = sadd.s32 %s102, 1
      %p106 = scmp.eq.s32.totalorder %s16, 1
      %p107 = scmp.ne.s32.totalorder %s102, %s104
      %p108 = scmp.eq.s32.totalorder %s16, 0
      %p109 = por %p107, %p108
      %p110 = scmp.ne.s32.totalorder %s102, %s104
      %p111 = scmp.eq.s32.totalorder %s21, 1
      %p112 = por %p110, %p111
      %p113 = scmp.ne.s32.totalorder %s104, %s105
      %p114 = scmp.eq.s32.totalorder %s21, 0
      %p115 = por %p113, %p114
      %p116 = scmp.ne.s32.totalorder %s104, %s105
      %p117 = scmp.eq.s32.totalorder %s22, 1
      %p118 = por %p116, %p117
      %p120 = scmp.ne.s32.totalorder %s105, %s119
      %p121 = scmp.eq.s32.totalorder %s22, 0
      %p122 = por %p120, %p121
      %s124 = sadd.s32 %s123, 1
      %p127 = scmp.eq.s32.totalorder %s16, 1
      %p128 = scmp.ne.s32.totalorder %s123, %s125
      %p129 = scmp.eq.s32.totalorder %s16, 0
      %p130 = por %p128, %p129
      %p131 = scmp.ne.s32.totalorder %s123, %s125
      %p132 = scmp.eq.s32.totalorder %s21, 1
      %p133 = por %p131, %p132
      %p134 = scmp.ne.s32.totalorder %s125, %s126
      %p135 = scmp.eq.s32.totalorder %s21, 0
      %p136 = por %p134, %p135
      %p137 = scmp.ne.s32.totalorder %s125, %s126
      %p138 = scmp.eq.s32.totalorder %s22, 1
      %p139 = por %p137, %p138
      %p141 = scmp.ne.s32.totalorder %s126, %s140
      %p142 = scmp.eq.s32.totalorder %s22, 0
      %p143 = por %p141, %p142
      %s145 = sadd.s32 %s144, 1
      %p148 = scmp.eq.s32.totalorder %s16, 1
      %p149 = scmp.ne.s32.totalorder %s144, %s146
      %p150 = scmp.eq.s32.totalorder %s16, 0
      %p151 = por %p149, %p150
      %p152 = scmp.ne.s32.totalorder %s144, %s146
      %p153 = scmp.eq.s32.totalorder %s21, 1
      %p154 = por %p152, %p153
      %p155 = scmp.ne.s32.totalorder %s146, %s147
      %p156 = scmp.eq.s32.totalorder %s21, 0
      %p157 = por %p155, %p156
      %p158 = scmp.ne.s32.totalorder %s146, %s147
      %p159 = scmp.eq.s32.totalorder %s22, 1
      %p160 = por %p158, %p159
      %p162 = scmp.ne.s32.totalorder %s147, %s161
      %p163 = scmp.eq.s32.totalorder %s22, 0
      %p164 = por %p162, %p163
      %s166 = sadd.s32 %s165, 1
      %p169 = scmp.eq.s32.totalorder %s16, 1
      %p170 = scmp.ne.s32.totalorder %s165, %s167
      %p171 = scmp.eq.s32.totalorder %s16, 0
      %p172 = por %p170, %p171
      %p173 = scmp.ne.s32.totalorder %s165, %s167
      %p174 = scmp.eq.s32.totalorder %s21, 1
      %p175 = por %p173, %p174
      %p176 = scmp.ne.s32.totalorder %s167, %s168
      %p177 = scmp.eq.s32.totalorder %s21, 0
      %p178 = por %p176, %p177
      %p179 = scmp.ne.s32.totalorder %s167, %s168
      %p180 = scmp.eq.s32.totalorder %s22, 1
      %p181 = por %p179, %p180
      %p183 = scmp.ne.s32.totalorder %s168, %s182
      %p184 = scmp.eq.s32.totalorder %s22, 0
      %p185 = por %p183, %p184
      %s186 = ssub.s32 %s16, %s23
      %p187 = scmp.eq.s32.totalorder %s186, 0
      %s189 = sadd.s32 %s188, 1
      %s190 = scalar_select %p187, %s188, %s189
      %p193 = pneg %p187
      %p194 = scmp.eq.s32.totalorder %s16, 1
      %p195 = por %p193, %p194
      %p196 = scmp.ne.s32.totalorder %s188, %s191
      %p197 = scmp.eq.s32.totalorder %s16, 0
      %p198 = por %p196, %p197
      %p199 = scmp.ne.s32.totalorder %s188, %s191
      %p200 = scmp.eq.s32.totalorder %s21, 1
      %p201 = por %p199, %p200
      %p202 = scmp.ne.s32.totalorder %s191, %s192
      %p203 = scmp.eq.s32.totalorder %s21, 0
      %p204 = por %p202, %p203
      %p205 = scmp.ne.s32.totalorder %s191, %s192
      %p206 = scmp.eq.s32.totalorder %s22, 1
      %p207 = por %p205, %p206
      %p209 = scmp.ne.s32.totalorder %s192, %s208
      %p210 = scmp.eq.s32.totalorder %s22, 0
      %p211 = por %p209, %p210
      %p212 = scmp.le.s32.totalorder 1, %s16
      %p213 = scmp.lt.s32.totalorder %s16, 3
      %p214 = pnand %p212, %p213
      %p215 = pneg %p214
      // Predicated region
      $region9: #{_lambda_.3} parent=5 // pred_check
        _
      $region10: #{_lambda_.3} parent=5 // pred_check_branch
        %217 = sbr.rel (%p214) target = $region12
      $region11: #{_lambda_.3} parent=5 // pred_region
        %s218 = ssub.s32 %s16, 1
        // Predicated region
        $region13: #{_lambda_.3} parent=11 // pred_check
          %p219 = pneg %p115
        $region14: #{_lambda_.3} parent=11 // pred_check_branch
          %221 = sbr.rel (%p219) target = $region16
        $region15: #{_lambda_.3} parent=11 // pred_region
          _
        $region16: #{_lambda_.3} parent=11 // pred_fallthru
          _
        // Predicated region
        $region17: #{_lambda_.3} parent=11 // pred_check
          %p222 = pneg %p136
        $region18: #{_lambda_.3} parent=11 // pred_check_branch
          %224 = sbr.rel (%p222) target = $region20
        $region19: #{_lambda_.3} parent=11 // pred_region
          _
        $region20: #{_lambda_.3} parent=11 // pred_fallthru
          _
        // Predicated region
        $region21: #{_lambda_.3} parent=11 // pred_check
          %p225 = pneg %p157
        $region22: #{_lambda_.3} parent=11 // pred_check_branch
          %227 = sbr.rel (%p225) target = $region24
        $region23: #{_lambda_.3} parent=11 // pred_region
          _
        $region24: #{_lambda_.3} parent=11 // pred_fallthru
          _
        // Predicated region
        $region25: #{_lambda_.3} parent=11 // pred_check
          %p228 = pneg %p178
        $region26: #{_lambda_.3} parent=11 // pred_check_branch
          %230 = sbr.rel (%p228) target = $region28
        $region27: #{_lambda_.3} parent=11 // pred_region
          _
        $region28: #{_lambda_.3} parent=11 // pred_fallthru
          _
      $region12: #{_lambda_.3} parent=5 // pred_fallthru
        _
      %p231 = scmp.lt.s32.totalorder %s16, 2
      // Predicated region
      $region29: #{_lambda_.3} parent=5 // pred_check
        %p232 = pneg %p231
      $region30: #{_lambda_.3} parent=5 // pred_check_branch
        %234 = sbr.rel (%p232) target = $region32
      $region31: #{_lambda_.3} parent=5 // pred_region
        // Predicated region
        $region33: #{_lambda_.3} parent=31 // pred_check
          %p235 = pneg %p36
        $region34: #{_lambda_.3} parent=31 // pred_check_branch
          %237 = sbr.rel (%p235) target = $region36
        $region35: #{_lambda_.3} parent=31 // pred_region
          %p238 = scmp.lt.s32.totalorder %s16, 1
          %s239 = scalar_select %p238, %s16, 1
          %s240 = smul.addr %s239, 8
          %s241 = smul.addr %s240, 4
          %s242 = scalar_lea.vmem %s0, %s241
        $region36: #{_lambda_.3} parent=31 // pred_fallthru
          _
        // Predicated region
        $region37: #{_lambda_.3} parent=31 // pred_check
          %p243 = pneg %p62
        $region38: #{_lambda_.3} parent=31 // pred_check_branch
          %245 = sbr.rel (%p243) target = $region40
        $region39: #{_lambda_.3} parent=31 // pred_region
          %p246 = scmp.lt.s32.totalorder %s16, 1
          %s247 = scalar_select %p246, %s16, 1
          %s248 = smul.addr %s247, 32
          %s249 = smul.addr %s248, 4
          %s250 = scalar_lea.vmem %s1, %s249
        $region40: #{_lambda_.3} parent=31 // pred_fallthru
          _
        // Predicated region
        $region41: #{_lambda_.3} parent=31 // pred_check
          %p251 = pneg %p88
        $region42: #{_lambda_.3} parent=31 // pred_check_branch
          %253 = sbr.rel (%p251) target = $region44
        $region43: #{_lambda_.3} parent=31 // pred_region
          %p254 = scmp.lt.s32.totalorder %s16, 1
          %s255 = scalar_select %p254, %s16, 1
          %s256 = smul.addr %s255, 8
          %s257 = smul.addr %s256, 4
          %s258 = scalar_lea.vmem %s2, %s257
        $region44: #{_lambda_.3} parent=31 // pred_fallthru
          _
      $region32: #{_lambda_.3} parent=5 // pred_fallthru
        _
      %p259 = scmp.le.s32.totalorder 1, %s16
      %p260 = scmp.lt.s32.totalorder %s16, 3
      %p261 = pnand %p259, %p260
      %p262 = pneg %p261
      // Predicated region
      $region45: #{_lambda_.3} parent=5 // pred_check
        _
      $region46: #{_lambda_.3} parent=5 // pred_check_branch
        %264 = sbr.rel (%p261) target = $region48
      $region47: #{_lambda_.3} parent=5 // pred_region
        %s265 = ssub.s32 %s16, 1
        %p266 = scmp.lt.s32.totalorder %s21, 1
        %s267 = scalar_select %p266, %s21, 1
        %s268 = smul.addr %s267, 8
        %s269 = smul.addr %s268, 4
        %s270 = scalar_lea.vmem %s0, %s269
        %p271 = pneg %p42
        %p272 = pneg %p39
        %p273 = scmp.lt.s32.totalorder %s21, 1
        %s274 = scalar_select %p273, %s21, 1
        %s275 = smul.addr %s274, 32
        %s276 = smul.addr %s275, 4
        %s277 = scalar_lea.vmem %s1, %s276
        %p278 = pneg %p68
        %p279 = pneg %p65
        %p280 = scmp.lt.s32.totalorder %s21, 1
        %s281 = scalar_select %p280, %s21, 1
        %s282 = smul.addr %s281, 8
        %s283 = smul.addr %s282, 4
        %s284 = scalar_lea.vmem %s2, %s283
        %p285 = pneg %p94
        %p286 = pneg %p91
        %p287 = pneg %p115
        %p288 = pneg %p112
        %p289 = pneg %p136
        %p290 = pneg %p133
        %p291 = pneg %p157
        %p292 = pneg %p154
        %p293 = pneg %p178
        %p294 = pneg %p175
        %p295 = pneg %p204
        %p296 = pneg %p201
        %s297 = sand.u32 %s191, 1
        %s298 = scalar_lea.sflag [#allocation3], %s297
        %s299 = sand.u32 %s191, 1
        %s300 = smul.addr %s299, 64
        %s301 = scalar_lea.vmem [#allocation2], %s300
        %p302 = scmp.lt.s32.totalorder %s21, 1
        %s303 = scalar_select %p302, %s21, 1
        %s304 = smul.addr %s303, 8
        %s305 = smul.addr %s304, 4
        %s306 = scalar_lea.vmem %s0, %s305
        %p307 = scmp.lt.s32.totalorder %s21, 1
        %s308 = scalar_select %p307, %s21, 1
        %s309 = smul.addr %s308, 32
        %s310 = smul.addr %s309, 4
        %s311 = scalar_lea.vmem %s1, %s310
        %p312 = scmp.lt.s32.totalorder %s21, 1
        %s313 = scalar_select %p312, %s21, 1
        %s314 = smul.addr %s313, 8
        %s315 = smul.addr %s314, 4
        %s316 = scalar_lea.vmem %s2, %s315
        %v318 = vld [vmem:[%s306] sm:$0xf]
        %v319 = vld [vmem:[%s306 + $0x4] sm:$0xf]
        %v320 = vld [vmem:[%s306 + $0x8] sm:$0xf]
        %v321 = vld [vmem:[%s306 + $0xc] sm:$0xf]
        %v322 = vld [vmem:[%s306 + $0x10] sm:$0xf]
        %v323 = vld [vmem:[%s306 + $0x14] sm:$0xf]
        %v324 = vld [vmem:[%s306 + $0x18] sm:$0xf]
        %v325 = vld [vmem:[%s306 + $0x1c] sm:$0xf]
        %v326 = vld [vmem:[%s311] sm:$0xf]
        %v327 = vld [vmem:[%s311 + $0x4] sm:$0xf]
        %v328 = vld [vmem:[%s311 + $0x8] sm:$0xf]
        %v329 = vld [vmem:[%s311 + $0xc] sm:$0xf]
        %v330 = vld [vmem:[%s311 + $0x10] sm:$0xf]
        %v331 = vld [vmem:[%s311 + $0x14] sm:$0xf]
        %v332 = vld [vmem:[%s311 + $0x18] sm:$0xf]
        %v333 = vld [vmem:[%s311 + $0x1c] sm:$0xf]
        %v334 = vunpack.c.l.bf16 %v326
        %v335 = vunpack.c.l.bf16 %v327
        %v336 = vunpack.c.l.bf16 %v328
        %v337 = vunpack.c.l.bf16 %v329
        %v338 = vunpack.c.l.bf16 %v330
        %v339 = vunpack.c.l.bf16 %v331
        %v340 = vunpack.c.l.bf16 %v332
        %v341 = vunpack.c.l.bf16 %v333
        %350 = vrot.lane.b32.xlu0 %v334, 8
        %v351 = vpop.permute.xlu0 %350
        %352 = vrot.lane.b32.xlu0 %v335, 8
        %v353 = vpop.permute.xlu0 %352
        %354 = vrot.lane.b32.xlu0 %v336, 8
        %v355 = vpop.permute.xlu0 %354
        %356 = vrot.lane.b32.xlu0 %v337, 8
        %v357 = vpop.permute.xlu0 %356
        %358 = vrot.lane.b32.xlu0 %v338, 8
        %v359 = vpop.permute.xlu0 %358
        %360 = vrot.lane.b32.xlu0 %v339, 8
        %v361 = vpop.permute.xlu0 %360
        %362 = vrot.lane.b32.xlu0 %v340, 8
        %v363 = vpop.permute.xlu0 %362
        %364 = vrot.lane.b32.xlu0 %v341, 8
        %v365 = vpop.permute.xlu0 %364
        %374 = vrot.lane.b32.xlu0 %v334, 16
        %v375 = vpop.permute.xlu0 %374
        %376 = vrot.lane.b32.xlu0 %v335, 16
        %v377 = vpop.permute.xlu0 %376
        %378 = vrot.lane.b32.xlu0 %v336, 16
        %v379 = vpop.permute.xlu0 %378
        %380 = vrot.lane.b32.xlu0 %v337, 16
        %v381 = vpop.permute.xlu0 %380
        %382 = vrot.lane.b32.xlu0 %v338, 16
        %v383 = vpop.permute.xlu0 %382
        %384 = vrot.lane.b32.xlu0 %v339, 16
        %v385 = vpop.permute.xlu0 %384
        %386 = vrot.lane.b32.xlu0 %v340, 16
        %v387 = vpop.permute.xlu0 %386
        %388 = vrot.lane.b32.xlu0 %v341, 16
        %v389 = vpop.permute.xlu0 %388
        %398 = vrot.lane.b32.xlu0 %v334, 24
        %v399 = vpop.permute.xlu0 %398
        %400 = vrot.lane.b32.xlu0 %v335, 24
        %v401 = vpop.permute.xlu0 %400
        %402 = vrot.lane.b32.xlu0 %v336, 24
        %v403 = vpop.permute.xlu0 %402
        %404 = vrot.lane.b32.xlu0 %v337, 24
        %v405 = vpop.permute.xlu0 %404
        %406 = vrot.lane.b32.xlu0 %v338, 24
        %v407 = vpop.permute.xlu0 %406
        %408 = vrot.lane.b32.xlu0 %v339, 24
        %v409 = vpop.permute.xlu0 %408
        %410 = vrot.lane.b32.xlu0 %v340, 24
        %v411 = vpop.permute.xlu0 %410
        %412 = vrot.lane.b32.xlu0 %v341, 24
        %v413 = vpop.permute.xlu0 %412
        %422 = vrot.lane.b32.xlu0 %v334, 32
        %v423 = vpop.permute.xlu0 %422
        %424 = vrot.lane.b32.xlu0 %v335, 32
        %v425 = vpop.permute.xlu0 %424
        %426 = vrot.lane.b32.xlu0 %v336, 32
        %v427 = vpop.permute.xlu0 %426
        %428 = vrot.lane.b32.xlu0 %v337, 32
        %v429 = vpop.permute.xlu0 %428
        %430 = vrot.lane.b32.xlu0 %v338, 32
        %v431 = vpop.permute.xlu0 %430
        %432 = vrot.lane.b32.xlu0 %v339, 32
        %v433 = vpop.permute.xlu0 %432
        %434 = vrot.lane.b32.xlu0 %v340, 32
        %v435 = vpop.permute.xlu0 %434
        %436 = vrot.lane.b32.xlu0 %v341, 32
        %v437 = vpop.permute.xlu0 %436
        %446 = vrot.lane.b32.xlu0 %v334, 40
        %v447 = vpop.permute.xlu0 %446
        %448 = vrot.lane.b32.xlu0 %v335, 40
        %v449 = vpop.permute.xlu0 %448
        %450 = vrot.lane.b32.xlu0 %v336, 40
        %v451 = vpop.permute.xlu0 %450
        %452 = vrot.lane.b32.xlu0 %v337, 40
        %v453 = vpop.permute.xlu0 %452
        %454 = vrot.lane.b32.xlu0 %v338, 40
        %v455 = vpop.permute.xlu0 %454
        %456 = vrot.lane.b32.xlu0 %v339, 40
        %v457 = vpop.permute.xlu0 %456
        %458 = vrot.lane.b32.xlu0 %v340, 40
        %v459 = vpop.permute.xlu0 %458
        %460 = vrot.lane.b32.xlu0 %v341, 40
        %v461 = vpop.permute.xlu0 %460
        %470 = vrot.lane.b32.xlu0 %v334, 48
        %v471 = vpop.permute.xlu0 %470
        %472 = vrot.lane.b32.xlu0 %v335, 48
        %v473 = vpop.permute.xlu0 %472
        %474 = vrot.lane.b32.xlu0 %v336, 48
        %v475 = vpop.permute.xlu0 %474
        %476 = vrot.lane.b32.xlu0 %v337, 48
        %v477 = vpop.permute.xlu0 %476
        %478 = vrot.lane.b32.xlu0 %v338, 48
        %v479 = vpop.permute.xlu0 %478
        %480 = vrot.lane.b32.xlu0 %v339, 48
        %v481 = vpop.permute.xlu0 %480
        %482 = vrot.lane.b32.xlu0 %v340, 48
        %v483 = vpop.permute.xlu0 %482
        %484 = vrot.lane.b32.xlu0 %v341, 48
        %v485 = vpop.permute.xlu0 %484
        %494 = vrot.lane.b32.xlu0 %v334, 56
        %v495 = vpop.permute.xlu0 %494
        %496 = vrot.lane.b32.xlu0 %v335, 56
        %v497 = vpop.permute.xlu0 %496
        %498 = vrot.lane.b32.xlu0 %v336, 56
        %v499 = vpop.permute.xlu0 %498
        %500 = vrot.lane.b32.xlu0 %v337, 56
        %v501 = vpop.permute.xlu0 %500
        %502 = vrot.lane.b32.xlu0 %v338, 56
        %v503 = vpop.permute.xlu0 %502
        %504 = vrot.lane.b32.xlu0 %v339, 56
        %v505 = vpop.permute.xlu0 %504
        %506 = vrot.lane.b32.xlu0 %v340, 56
        %v507 = vpop.permute.xlu0 %506
        %508 = vrot.lane.b32.xlu0 %v341, 56
        %v509 = vpop.permute.xlu0 %508
        %vm518 = vcmask 64512
        %v519 = vsel %vm518, %v334, %v351
        %v520 = vsel %vm518, %v335, %v353
        %v521 = vsel %vm518, %v336, %v355
        %v522 = vsel %vm518, %v337, %v357
        %v523 = vsel %vm518, %v338, %v359
        %v524 = vsel %vm518, %v339, %v361
        %v525 = vsel %vm518, %v340, %v363
        %v526 = vsel %vm518, %v341, %v365
        %vm527 = vcmask 130048
        %v528 = vsel %vm527, %v519, %v375
        %v529 = vsel %vm527, %v520, %v377
        %v530 = vsel %vm527, %v521, %v379
        %v531 = vsel %vm527, %v522, %v381
        %v532 = vsel %vm527, %v523, %v383
        %v533 = vsel %vm527, %v524, %v385
        %v534 = vsel %vm527, %v525, %v387
        %v535 = vsel %vm527, %v526, %v389
        %vm536 = vcmask 195584
        %v537 = vsel %vm536, %v528, %v399
        %v538 = vsel %vm536, %v529, %v401
        %v539 = vsel %vm536, %v530, %v403
        %v540 = vsel %vm536, %v531, %v405
        %v541 = vsel %vm536, %v532, %v407
        %v542 = vsel %vm536, %v533, %v409
        %v543 = vsel %vm536, %v534, %v411
        %v544 = vsel %vm536, %v535, %v413
        %vm545 = vcmask 261120
        %v546 = vsel %vm545, %v537, %v423
        %v547 = vsel %vm545, %v538, %v425
        %v548 = vsel %vm545, %v539, %v427
        %v549 = vsel %vm545, %v540, %v429
        %v550 = vsel %vm545, %v541, %v431
        %v551 = vsel %vm545, %v542, %v433
        %v552 = vsel %vm545, %v543, %v435
        %v553 = vsel %vm545, %v544, %v437
        %vm554 = vcmask 326656
        %v555 = vsel %vm554, %v546, %v447
        %v556 = vsel %vm554, %v547, %v449
        %v557 = vsel %vm554, %v548, %v451
        %v558 = vsel %vm554, %v549, %v453
        %v559 = vsel %vm554, %v550, %v455
        %v560 = vsel %vm554, %v551, %v457
        %v561 = vsel %vm554, %v552, %v459
        %v562 = vsel %vm554, %v553, %v461
        %vm563 = vcmask 392192
        %v564 = vsel %vm563, %v555, %v471
        %v565 = vsel %vm563, %v556, %v473
        %v566 = vsel %vm563, %v557, %v475
        %v567 = vsel %vm563, %v558, %v477
        %v568 = vsel %vm563, %v559, %v479
        %v569 = vsel %vm563, %v560, %v481
        %v570 = vsel %vm563, %v561, %v483
        %v571 = vsel %vm563, %v562, %v485
        %vm572 = vcmask 457728
        %v573 = vsel %vm572, %v564, %v495
        %v574 = vsel %vm572, %v565, %v497
        %v575 = vsel %vm572, %v566, %v499
        %v576 = vsel %vm572, %v567, %v501
        %v577 = vsel %vm572, %v568, %v503
        %v578 = vsel %vm572, %v569, %v505
        %v579 = vsel %vm572, %v570, %v507
        %v580 = vsel %vm572, %v571, %v509
        %v589 = vunpack.c.l.b16 %v318
        %v590 = vunpack.c.l.b16 %v319
        %v591 = vunpack.c.l.b16 %v320
        %v592 = vunpack.c.l.b16 %v321
        %v593 = vunpack.c.l.b16 %v322
        %v594 = vunpack.c.l.b16 %v323
        %v595 = vunpack.c.l.b16 %v324
        %v596 = vunpack.c.l.b16 %v325
        %v597 = vpack.c.b16 %v590, %v589
        %v598 = vpack.c.b16 %v592, %v591
        %v599 = vpack.c.b16 %v594, %v593
        %v600 = vpack.c.b16 %v596, %v595
        %601 = vrot.lane.b32.xlu0 %v597, 112
        %v602 = vpop.permute.xlu0 %601
        %603 = vrot.lane.b32.xlu0 %v598, 112
        %v604 = vpop.permute.xlu0 %603
        %605 = vrot.lane.b32.xlu0 %v599, 112
        %v606 = vpop.permute.xlu0 %605
        %607 = vrot.lane.b32.xlu0 %v600, 112
        %v608 = vpop.permute.xlu0 %607
        %vm609 = vcmask 31744
        %v611 = vsel %vm609, %v597, 0
        %v614 = vsel %vm609, %v598, 0
        %v617 = vsel %vm609, %v599, 0
        %v620 = vsel %vm609, %v600, 0
        %v623 = vsel %vm609, %v602, 0
        %v626 = vsel %vm609, %v604, 0
        %v629 = vsel %vm609, %v606, 0
        %v632 = vsel %vm609, %v608, 0
        %634 = vmatprep.subr.bf16.mxu0 0
        %635 = vmatpush1.bf16.xpose.msra.mxu0 %v623
        %636 = vmatprep.subr.bf16.mxu0 0
        %637 = vmatpush1.bf16.xpose.msra.mxu0 %v626
        %638 = vmatprep.subr.bf16.mxu0 0
        %639 = vmatpush1.bf16.xpose.msra.mxu0 %v629
        %640 = vmatprep.subr.bf16.mxu0 0
        %641 = vmatpush1.bf16.xpose.msra.mxu0 %v632
        %642 = vmatprep.subr.bf16.mxu0 0
        %643 = vmatpush1.bf16.xpose.msra.mxu0 0
        %644 = vmatprep.subr.bf16.mxu0 0
        %645 = vmatpush1.bf16.xpose.msra.mxu0 0
        %646 = vmatprep.subr.bf16.mxu0 0
        %647 = vmatpush1.bf16.xpose.msra.mxu0 0
        %648 = vmatprep.subr.bf16.mxu0 0
        %649 = vmatpush1.bf16.xpose.msra.mxu0 0
        %650 = vmatprep.subr.bf16.mxu0 0
        %651 = vmatpush1.bf16.xpose.msra.mxu0 0
        %652 = vmatprep.subr.bf16.mxu0 0
        %653 = vmatpush1.bf16.xpose.msra.mxu0 0
        %654 = vmatprep.subr.bf16.mxu0 0
        %655 = vmatpush1.bf16.xpose.msra.mxu0 0
        %656 = vmatprep.subr.bf16.mxu0 0
        %657 = vmatpush1.bf16.xpose.msra.mxu0 0
        %658 = vmatprep.subr.bf16.mxu0 0
        %659 = vmatpush1.bf16.xpose.msra.mxu0 0
        %660 = vmatprep.subr.bf16.mxu0 0
        %661 = vmatpush1.bf16.xpose.msra.mxu0 0
        %662 = vmatprep.subr.bf16.mxu0 0
        %663 = vmatpush1.bf16.xpose.msra.mxu0 0
        %664 = vmatprep.subr.bf16.mxu0 0
        %665 = vmatpush1.bf16.xpose.msra.mxu0 0
        %666 = vmatprep.mubr.bf16.mxu0 0
        %667 = vmatmul.mubr.bf16.gmra.mrb[0].mxu0 %v611
        %v668 = vpop.f32.mrb[0].mxu0
        %v669 = vadd.f32 %v573, %v668
        %v670 = vpop.f32.mrb[0].mxu0
        %v671 = vpop.f32.mrb[0].mxu0
        %v672 = vadd.f32 %v574, %v671
        %v673 = vpop.f32.mrb[0].mxu0
        %674 = vmatprep.mubr.bf16.mxu0 0
        %675 = vmatmul.mubr.bf16.gmra.mrb[0].mxu0 %v614
        %v676 = vpop.f32.mrb[0].mxu0
        %v677 = vadd.f32 %v575, %v676
        %v678 = vpop.f32.mrb[0].mxu0
        %v679 = vpop.f32.mrb[0].mxu0
        %v680 = vadd.f32 %v576, %v679
        %v681 = vpop.f32.mrb[0].mxu0
        %682 = vmatprep.mubr.bf16.mxu0 0
        %683 = vmatmul.mubr.bf16.gmra.mrb[0].mxu0 %v617
        %v684 = vpop.f32.mrb[0].mxu0
        %v685 = vadd.f32 %v577, %v684
        %v686 = vpop.f32.mrb[0].mxu0
        %v687 = vpop.f32.mrb[0].mxu0
        %v688 = vadd.f32 %v578, %v687
        %v689 = vpop.f32.mrb[0].mxu0
        %690 = vmatprep.mubr.bf16.mxu0 0
        %691 = vmatmul.mubr.bf16.gmra.mrb[0].mxu0 %v620
        %v692 = vpop.f32.mrb[0].mxu0
        %v693 = vadd.f32 %v579, %v692
        %v694 = vpop.f32.mrb[0].mxu0
        %v695 = vpop.f32.mrb[0].mxu0
        %v696 = vadd.f32 %v580, %v695
        %v697 = vpop.f32.mrb[0].mxu0
        %698 = vdwg.mxu0
        %vm699 = vcmask 523264
        %v700 = vsel %vm699, %v669, -inf
        %701 = vmax.xlane.f32.xlu0 %v700
        %v702 = vpop.xlane.xlu0 %701
        %v703 = vsel %vm699, %v672, -inf
        %704 = vmax.xlane.f32.xlu0 %v703
        %v705 = vpop.xlane.xlu0 %704
        %v706 = vsel %vm699, %v677, -inf
        %707 = vmax.xlane.f32.xlu0 %v706
        %v708 = vpop.xlane.xlu0 %707
        %v709 = vsel %vm699, %v680, -inf
        %710 = vmax.xlane.f32.xlu0 %v709
        %v711 = vpop.xlane.xlu0 %710
        %v712 = vsel %vm699, %v685, -inf
        %713 = vmax.xlane.f32.xlu0 %v712
        %v714 = vpop.xlane.xlu0 %713
        %v715 = vsel %vm699, %v688, -inf
        %716 = vmax.xlane.f32.xlu0 %v715
        %v717 = vpop.xlane.xlu0 %716
        %v718 = vsel %vm699, %v693, -inf
        %719 = vmax.xlane.f32.xlu0 %v718
        %v720 = vpop.xlane.xlu0 %719
        %v721 = vsel %vm699, %v696, -inf
        %722 = vmax.xlane.f32.xlu0 %v721
        %v723 = vpop.xlane.xlu0 %722
        %v724 = vsub.f32 %v669, %v702
        %v725 = vsub.f32 %v672, %v705
        %v726 = vsub.f32 %v677, %v708
        %v727 = vsub.f32 %v680, %v711
        %v728 = vsub.f32 %v685, %v714
        %v729 = vsub.f32 %v688, %v717
        %v730 = vsub.f32 %v693, %v720
        %v731 = vsub.f32 %v696, %v723
        %v732 = vmul.f32 %v724, 1.442695
        %v733 = vpow.pop %v732
        %v734 = vmul.f32 %v725, 1.442695
        %v735 = vpow.pop %v734
        %v736 = vmul.f32 %v726, 1.442695
        %v737 = vpow.pop %v736
        %v738 = vmul.f32 %v727, 1.442695
        %v739 = vpow.pop %v738
        %v740 = vmul.f32 %v728, 1.442695
        %v741 = vpow.pop %v740
        %v742 = vmul.f32 %v729, 1.442695
        %v743 = vpow.pop %v742
        %v744 = vmul.f32 %v730, 1.442695
        %v745 = vpow.pop %v744
        %v746 = vmul.f32 %v731, 1.442695
        %v747 = vpow.pop %v746
        %v748 = vsel %vm699, %v733, 0.0
        %749 = vadd.xlane.f32.xlu0 %v748
        %v750 = vpop.xlane.xlu0 %749
        %v751 = vsel %vm699, %v735, 0.0
        %752 = vadd.xlane.f32.xlu0 %v751
        %v753 = vpop.xlane.xlu0 %752
        %v754 = vsel %vm699, %v737, 0.0
        %755 = vadd.xlane.f32.xlu0 %v754
        %v756 = vpop.xlane.xlu0 %755
        %v757 = vsel %vm699, %v739, 0.0
        %758 = vadd.xlane.f32.xlu0 %v757
        %v759 = vpop.xlane.xlu0 %758
        %v760 = vsel %vm699, %v741, 0.0
        %761 = vadd.xlane.f32.xlu0 %v760
        %v762 = vpop.xlane.xlu0 %761
        %v763 = vsel %vm699, %v743, 0.0
        %764 = vadd.xlane.f32.xlu0 %v763
        %v765 = vpop.xlane.xlu0 %764
        %v766 = vsel %vm699, %v745, 0.0
        %767 = vadd.xlane.f32.xlu0 %v766
        %v768 = vpop.xlane.xlu0 %767
        %v769 = vsel %vm699, %v747, 0.0
        %770 = vadd.xlane.f32.xlu0 %v769
        %v771 = vpop.xlane.xlu0 %770
        %v772 = vrcp.pop %v750
        %v773 = vrcp.pop %v753
        %v774 = vrcp.pop %v756
        %v775 = vrcp.pop %v759
        %v776 = vrcp.pop %v762
        %v777 = vrcp.pop %v765
        %v778 = vrcp.pop %v768
        %v779 = vrcp.pop %v771
        %v780 = vmul.f32 %v733, %v772
        %v781 = vmul.f32 %v735, %v773
        %v782 = vmul.f32 %v737, %v774
        %v783 = vmul.f32 %v739, %v775
        %v784 = vmul.f32 %v741, %v776
        %v785 = vmul.f32 %v743, %v777
        %v786 = vmul.f32 %v745, %v778
        %v787 = vmul.f32 %v747, %v779
        %v788 = vpack.c.bf16 %v781, %v780
        %v789 = vpack.c.bf16 %v783, %v782
        %v790 = vpack.c.bf16 %v785, %v784
        %v791 = vpack.c.bf16 %v787, %v786
        %792 = vrot.lane.b32.xlu0 %v597, 96
        %v793 = vpop.permute.xlu0 %792
        %794 = vrot.lane.b32.xlu0 %v598, 96
        %v795 = vpop.permute.xlu0 %794
        %796 = vrot.lane.b32.xlu0 %v599, 96
        %v797 = vpop.permute.xlu0 %796
        %798 = vrot.lane.b32.xlu0 %v600, 96
        %v799 = vpop.permute.xlu0 %798
        %v805 = vsel %vm699, %v788, 0
        %v808 = vsel %vm699, %v789, 0
        %v811 = vsel %vm699, %v790, 0
        %v814 = vsel %vm699, %v791, 0
        %816 = vmatprep.subr.bf16.mxu0 0
        %817 = vmatpush1.bf16.msra.mxu0 %v793
        %818 = vmatprep.subr.bf16.mxu0 0
        %819 = vmatpush1.bf16.msra.mxu0 %v795
        %820 = vmatprep.subr.bf16.mxu0 0
        %821 = vmatpush1.bf16.msra.mxu0 %v797
        %822 = vmatprep.subr.bf16.mxu0 0
        %823 = vmatpush1.bf16.msra.mxu0 %v799
        %824 = vmatprep.subr.bf16.mxu0 0
        %825 = vmatpush1.bf16.msra.mxu0 0
        %826 = vmatprep.subr.bf16.mxu0 0
        %827 = vmatpush1.bf16.msra.mxu0 0
        %828 = vmatprep.subr.bf16.mxu0 0
        %829 = vmatpush1.bf16.msra.mxu0 0
        %830 = vmatprep.subr.bf16.mxu0 0
        %831 = vmatpush1.bf16.msra.mxu0 0
        %832 = vmatprep.subr.bf16.mxu0 0
        %833 = vmatpush1.bf16.msra.mxu0 0
        %834 = vmatprep.subr.bf16.mxu0 0
        %835 = vmatpush1.bf16.msra.mxu0 0
        %836 = vmatprep.subr.bf16.mxu0 0
        %837 = vmatpush1.bf16.msra.mxu0 0
        %838 = vmatprep.subr.bf16.mxu0 0
        %839 = vmatpush1.bf16.msra.mxu0 0
        %840 = vmatprep.subr.bf16.mxu0 0
        %841 = vmatpush1.bf16.msra.mxu0 0
        %842 = vmatprep.subr.bf16.mxu0 0
        %843 = vmatpush1.bf16.msra.mxu0 0
        %844 = vmatprep.subr.bf16.mxu0 0
        %845 = vmatpush1.bf16.msra.mxu0 0
        %846 = vmatprep.subr.bf16.mxu0 0
        %847 = vmatpush1.bf16.msra.mxu0 0
        %848 = vmatprep.mubr.bf16.mxu0 0
        %849 = vmatmul.mubr.bf16.gmra.mrb[0].mxu0 %v805
        %v850 = vpop.f32.mrb[0].mxu0
        %v851 = vadd.f32 0.0, %v850
        %v852 = vpop.f32.mrb[0].mxu0
        %v853 = vpop.f32.mrb[0].mxu0
        %v854 = vadd.f32 0.0, %v853
        %v855 = vpop.f32.mrb[0].mxu0
        %856 = vmatprep.mubr.bf16.mxu0 0
        %857 = vmatmul.mubr.bf16.gmra.mrb[0].mxu0 %v808
        %v858 = vpop.f32.mrb[0].mxu0
        %v859 = vadd.f32 0.0, %v858
        %v860 = vpop.f32.mrb[0].mxu0
        %v861 = vpop.f32.mrb[0].mxu0
        %v862 = vadd.f32 0.0, %v861
        %v863 = vpop.f32.mrb[0].mxu0
        %864 = vmatprep.mubr.bf16.mxu0 0
        %865 = vmatmul.mubr.bf16.gmra.mrb[0].mxu0 %v811
        %v866 = vpop.f32.mrb[0].mxu0
        %v867 = vadd.f32 0.0, %v866
        %v868 = vpop.f32.mrb[0].mxu0
        %v869 = vpop.f32.mrb[0].mxu0
        %v870 = vadd.f32 0.0, %v869
        %v871 = vpop.f32.mrb[0].mxu0
        %872 = vmatprep.mubr.bf16.mxu0 0
        %873 = vmatmul.mubr.bf16.gmra.mrb[0].mxu0 %v814
        %v874 = vpop.f32.mrb[0].mxu0
        %v875 = vadd.f32 0.0, %v874
        %v876 = vpop.f32.mrb[0].mxu0
        %v877 = vpop.f32.mrb[0].mxu0
        %v878 = vadd.f32 0.0, %v877
        %v879 = vpop.f32.mrb[0].mxu0
        %880 = vdwg.mxu0
        %s881 = scalar_lea.vmem %s311, 32
        %v882 = vld [vmem:[%s881] sm:$0xf]
        %v883 = vld [vmem:[%s881 + $0x4] sm:$0xf]
        %v884 = vld [vmem:[%s881 + $0x8] sm:$0xf]
        %v885 = vld [vmem:[%s881 + $0xc] sm:$0xf]
        %v886 = vld [vmem:[%s881 + $0x10] sm:$0xf]
        %v887 = vld [vmem:[%s881 + $0x14] sm:$0xf]
        %v888 = vld [vmem:[%s881 + $0x18] sm:$0xf]
        %v889 = vld [vmem:[%s881 + $0x1c] sm:$0xf]
        %v890 = vunpack.c.l.bf16 %v882
        %v891 = vunpack.c.l.bf16 %v883
        %v892 = vunpack.c.l.bf16 %v884
        %v893 = vunpack.c.l.bf16 %v885
        %v894 = vunpack.c.l.bf16 %v886
        %v895 = vunpack.c.l.bf16 %v887
        %v896 = vunpack.c.l.bf16 %v888
        %v897 = vunpack.c.l.bf16 %v889
        %906 = vrot.lane.b32.xlu0 %v890, 8
        %v907 = vpop.permute.xlu0 %906
        %908 = vrot.lane.b32.xlu0 %v891, 8
        %v909 = vpop.permute.xlu0 %908
        %910 = vrot.lane.b32.xlu0 %v892, 8
        %v911 = vpop.permute.xlu0 %910
        %912 = vrot.lane.b32.xlu0 %v893, 8
        %v913 = vpop.permute.xlu0 %912
        %914 = vrot.lane.b32.xlu0 %v894, 8
        %v915 = vpop.permute.xlu0 %914
        %916 = vrot.lane.b32.xlu0 %v895, 8
        %v917 = vpop.permute.xlu0 %916
        %918 = vrot.lane.b32.xlu0 %v896, 8
        %v919 = vpop.permute.xlu0 %918
        %920 = vrot.lane.b32.xlu0 %v897, 8
        %v921 = vpop.permute.xlu0 %920
        %930 = vrot.lane.b32.xlu0 %v890, 16
        %v931 = vpop.permute.xlu0 %930
        %932 = vrot.lane.b32.xlu0 %v891, 16
        %v933 = vpop.permute.xlu0 %932
        %934 = vrot.lane.b32.xlu0 %v892, 16
        %v935 = vpop.permute.xlu0 %934
        %936 = vrot.lane.b32.xlu0 %v893, 16
        %v937 = vpop.permute.xlu0 %936
        %938 = vrot.lane.b32.xlu0 %v894, 16
        %v939 = vpop.permute.xlu0 %938
        %940 = vrot.lane.b32.xlu0 %v895, 16
        %v941 = vpop.permute.xlu0 %940
        %942 = vrot.lane.b32.xlu0 %v896, 16
        %v943 = vpop.permute.xlu0 %942
        %944 = vrot.lane.b32.xlu0 %v897, 16
        %v945 = vpop.permute.xlu0 %944
        %954 = vrot.lane.b32.xlu0 %v890, 24
        %v955 = vpop.permute.xlu0 %954
        %956 = vrot.lane.b32.xlu0 %v891, 24
        %v957 = vpop.permute.xlu0 %956
        %958 = vrot.lane.b32.xlu0 %v892, 24
        %v959 = vpop.permute.xlu0 %958
        %960 = vrot.lane.b32.xlu0 %v893, 24
        %v961 = vpop.permute.xlu0 %960
        %962 = vrot.lane.b32.xlu0 %v894, 24
        %v963 = vpop.permute.xlu0 %962
        %964 = vrot.lane.b32.xlu0 %v895, 24
        %v965 = vpop.permute.xlu0 %964
        %966 = vrot.lane.b32.xlu0 %v896, 24
        %v967 = vpop.permute.xlu0 %966
        %968 = vrot.lane.b32.xlu0 %v897, 24
        %v969 = vpop.permute.xlu0 %968
        %978 = vrot.lane.b32.xlu0 %v890, 32
        %v979 = vpop.permute.xlu0 %978
        %980 = vrot.lane.b32.xlu0 %v891, 32
        %v981 = vpop.permute.xlu0 %980
        %982 = vrot.lane.b32.xlu0 %v892, 32
        %v983 = vpop.permute.xlu0 %982
        %984 = vrot.lane.b32.xlu0 %v893, 32
        %v985 = vpop.permute.xlu0 %984
        %986 = vrot.lane.b32.xlu0 %v894, 32
        %v987 = vpop.permute.xlu0 %986
        %988 = vrot.lane.b32.xlu0 %v895, 32
        %v989 = vpop.permute.xlu0 %988
        %990 = vrot.lane.b32.xlu0 %v896, 32
        %v991 = vpop.permute.xlu0 %990
        %992 = vrot.lane.b32.xlu0 %v897, 32
        %v993 = vpop.permute.xlu0 %992
        %1002 = vrot.lane.b32.xlu0 %v890, 40
        %v1003 = vpop.permute.xlu0 %1002
        %1004 = vrot.lane.b32.xlu0 %v891, 40
        %v1005 = vpop.permute.xlu0 %1004
        %1006 = vrot.lane.b32.xlu0 %v892, 40
        %v1007 = vpop.permute.xlu0 %1006
        %1008 = vrot.lane.b32.xlu0 %v893, 40
        %v1009 = vpop.permute.xlu0 %1008
        %1010 = vrot.lane.b32.xlu0 %v894, 40
        %v1011 = vpop.permute.xlu0 %1010
        %1012 = vrot.lane.b32.xlu0 %v895, 40
        %v1013 = vpop.permute.xlu0 %1012
        %1014 = vrot.lane.b32.xlu0 %v896, 40
        %v1015 = vpop.permute.xlu0 %1014
        %1016 = vrot.lane.b32.xlu0 %v897, 40
        %v1017 = vpop.permute.xlu0 %1016
        %1026 = vrot.lane.b32.xlu0 %v890, 48
        %v1027 = vpop.permute.xlu0 %1026
        %1028 = vrot.lane.b32.xlu0 %v891, 48
        %v1029 = vpop.permute.xlu0 %1028
        %1030 = vrot.lane.b32.xlu0 %v892, 48
        %v1031 = vpop.permute.xlu0 %1030
        %1032 = vrot.lane.b32.xlu0 %v893, 48
        %v1033 = vpop.permute.xlu0 %1032
        %1034 = vrot.lane.b32.xlu0 %v894, 48
        %v1035 = vpop.permute.xlu0 %1034
        %1036 = vrot.lane.b32.xlu0 %v895, 48
        %v1037 = vpop.permute.xlu0 %1036
        %1038 = vrot.lane.b32.xlu0 %v896, 48
        %v1039 = vpop.permute.xlu0 %1038
        %1040 = vrot.lane.b32.xlu0 %v897, 48
        %v1041 = vpop.permute.xlu0 %1040
        %1050 = vrot.lane.b32.xlu0 %v890, 56
        %v1051 = vpop.permute.xlu0 %1050
        %1052 = vrot.lane.b32.xlu0 %v891, 56
        %v1053 = vpop.permute.xlu0 %1052
        %1054 = vrot.lane.b32.xlu0 %v892, 56
        %v1055 = vpop.permute.xlu0 %1054
        %1056 = vrot.lane.b32.xlu0 %v893, 56
        %v1057 = vpop.permute.xlu0 %1056
        %1058 = vrot.lane.b32.xlu0 %v894, 56
        %v1059 = vpop.permute.xlu0 %1058
        %1060 = vrot.lane.b32.xlu0 %v895, 56
        %v1061 = vpop.permute.xlu0 %1060
        %1062 = vrot.lane.b32.xlu0 %v896, 56
        %v1063 = vpop.permute.xlu0 %1062
        %1064 = vrot.lane.b32.xlu0 %v897, 56
        %v1065 = vpop.permute.xlu0 %1064
        %v1074 = vsel %vm518, %v890, %v907
        %v1075 = vsel %vm518, %v891, %v909
        %v1076 = vsel %vm518, %v892, %v911
        %v1077 = vsel %vm518, %v893, %v913
        %v1078 = vsel %vm518, %v894, %v915
        %v1079 = vsel %vm518, %v895, %v917
        %v1080 = vsel %vm518, %v896, %v919
        %v1081 = vsel %vm518, %v897, %v921
        %v1082 = vsel %vm527, %v1074, %v931
        %v1083 = vsel %vm527, %v1075, %v933
        %v1084 = vsel %vm527, %v1076, %v935
        %v1085 = vsel %vm527, %v1077, %v937
        %v1086 = vsel %vm527, %v1078, %v939
        %v1087 = vsel %vm527, %v1079, %v941
        %v1088 = vsel %vm527, %v1080, %v943
        %v1089 = vsel %vm527, %v1081, %v945
        %v1090 = vsel %vm536, %v1082, %v955
        %v1091 = vsel %vm536, %v1083, %v957
        %v1092 = vsel %vm536, %v1084, %v959
        %v1093 = vsel %vm536, %v1085, %v961
        %v1094 = vsel %vm536, %v1086, %v963
        %v1095 = vsel %vm536, %v1087, %v965
        %v1096 = vsel %vm536, %v1088, %v967
        %v1097 = vsel %vm536, %v1089, %v969
        %v1098 = vsel %vm545, %v1090, %v979
        %v1099 = vsel %vm545, %v1091, %v981
        %v1100 = vsel %vm545, %v1092, %v983
        %v1101 = vsel %vm545, %v1093, %v985
        %v1102 = vsel %vm545, %v1094, %v987
        %v1103 = vsel %vm545, %v1095, %v989
        %v1104 = vsel %vm545, %v1096, %v991
        %v1105 = vsel %vm545, %v1097, %v993
        %v1106 = vsel %vm554, %v1098, %v1003
        %v1107 = vsel %vm554, %v1099, %v1005
        %v1108 = vsel %vm554, %v1100, %v1007
        %v1109 = vsel %vm554, %v1101, %v1009
        %v1110 = vsel %vm554, %v1102, %v1011
        %v1111 = vsel %vm554, %v1103, %v1013
        %v1112 = vsel %vm554, %v1104, %v1015
        %v1113 = vsel %vm554, %v1105, %v1017
        %v1114 = vsel %vm563, %v1106, %v1027
        %v1115 = vsel %vm563, %v1107, %v1029
        %v1116 = vsel %vm563, %v1108, %v1031
        %v1117 = vsel %vm563, %v1109, %v1033
        %v1118 = vsel %vm563, %v1110, %v1035
        %v1119 = vsel %vm563, %v1111, %v1037
        %v1120 = vsel %vm563, %v1112, %v1039
        %v1121 = vsel %vm563, %v1113, %v1041
        %v1122 = vsel %vm572, %v1114, %v1051
        %v1123 = vsel %vm572, %v1115, %v1053
        %v1124 = vsel %vm572, %v1116, %v1055
        %v1125 = vsel %vm572, %v1117, %v1057
        %v1126 = vsel %vm572, %v1118, %v1059
        %v1127 = vsel %vm572, %v1119, %v1061
        %v1128 = vsel %vm572, %v1120, %v1063
        %v1129 = vsel %vm572, %v1121, %v1065
        %1130 = vrot.lane.b32.xlu0 %v597, 124
        %v1131 = vpop.permute.xlu0 %1130
        %1132 = vrot.lane.b32.xlu0 %v598, 124
        %v1133 = vpop.permute.xlu0 %1132
        %1134 = vrot.lane.b32.xlu0 %v599, 124
        %v1135 = vpop.permute.xlu0 %1134
        %1136 = vrot.lane.b32.xlu0 %v600, 124
        %v1137 = vpop.permute.xlu0 %1136
        %1138 = vrot.lane.b32.xlu0 %v597, 108
        %v1139 = vpop.permute.xlu0 %1138
        %1140 = vrot.lane.b32.xlu0 %v598, 108
        %v1141 = vpop.permute.xlu0 %1140
        %1142 = vrot.lane.b32.xlu0 %v599, 108
        %v1143 = vpop.permute.xlu0 %1142
        %1144 = vrot.lane.b32.xlu0 %v600, 108
        %v1145 = vpop.permute.xlu0 %1144
        %v1147 = vsel %vm609, %v1131, 0
        %v1150 = vsel %vm609, %v1133, 0
        %v1153 = vsel %vm609, %v1135, 0
        %v1156 = vsel %vm609, %v1137, 0
        %v1159 = vsel %vm609, %v1139, 0
        %v1162 = vsel %vm609, %v1141, 0
        %v1165 = vsel %vm609, %v1143, 0
        %v1168 = vsel %vm609, %v1145, 0
        %1170 = vmatprep.subr.bf16.mxu0 0
        %1171 = vmatpush1.bf16.xpose.msra.mxu0 %v1159
        %1172 = vmatprep.subr.bf16.mxu0 0
        %1173 = vmatpush1.bf16.xpose.msra.mxu0 %v1162
        %1174 = vmatprep.subr.bf16.mxu0 0
        %1175 = vmatpush1.bf16.xpose.msra.mxu0 %v1165
        %1176 = vmatprep.subr.bf16.mxu0 0
        %1177 = vmatpush1.bf16.xpose.msra.mxu0 %v1168
        %1178 = vmatprep.subr.bf16.mxu0 0
        %1179 = vmatpush1.bf16.xpose.msra.mxu0 0
        %1180 = vmatprep.subr.bf16.mxu0 0
        %1181 = vmatpush1.bf16.xpose.msra.mxu0 0
        %1182 = vmatprep.subr.bf16.mxu0 0
        %1183 = vmatpush1.bf16.xpose.msra.mxu0 0
        %1184 = vmatprep.subr.bf16.mxu0 0
        %1185 = vmatpush1.bf16.xpose.msra.mxu0 0
        %1186 = vmatprep.subr.bf16.mxu0 0
        %1187 = vmatpush1.bf16.xpose.msra.mxu0 0
        %1188 = vmatprep.subr.bf16.mxu0 0
        %1189 = vmatpush1.bf16.xpose.msra.mxu0 0
        %1190 = vmatprep.subr.bf16.mxu0 0
        %1191 = vmatpush1.bf16.xpose.msra.mxu0 0
        %1192 = vmatprep.subr.bf16.mxu0 0
        %1193 = vmatpush1.bf16.xpose.msra.mxu0 0
        %1194 = vmatprep.subr.bf16.mxu0 0
        %1195 = vmatpush1.bf16.xpose.msra.mxu0 0
        %1196 = vmatprep.subr.bf16.mxu0 0
        %1197 = vmatpush1.bf16.xpose.msra.mxu0 0
        %1198 = vmatprep.subr.bf16.mxu0 0
        %1199 = vmatpush1.bf16.xpose.msra.mxu0 0
        %1200 = vmatprep.subr.bf16.mxu0 0
        %1201 = vmatpush1.bf16.xpose.msra.mxu0 0
        %1202 = vmatprep.mubr.bf16.mxu0 0
        %1203 = vmatmul.mubr.bf16.gmra.mrb[0].mxu0 %v1147
        %v1204 = vpop.f32.mrb[0].mxu0
        %v1205 = vadd.f32 %v1122, %v1204
        %v1206 = vpop.f32.mrb[0].mxu0
        %v1207 = vpop.f32.mrb[0].mxu0
        %v1208 = vadd.f32 %v1123, %v1207
        %v1209 = vpop.f32.mrb[0].mxu0
        %1210 = vmatprep.mubr.bf16.mxu0 0
        %1211 = vmatmul.mubr.bf16.gmra.mrb[0].mxu0 %v1150
        %v1212 = vpop.f32.mrb[0].mxu0
        %v1213 = vadd.f32 %v1124, %v1212
        %v1214 = vpop.f32.mrb[0].mxu0
        %v1215 = vpop.f32.mrb[0].mxu0
        %v1216 = vadd.f32 %v1125, %v1215
        %v1217 = vpop.f32.mrb[0].mxu0
        %1218 = vmatprep.mubr.bf16.mxu0 0
        %1219 = vmatmul.mubr.bf16.gmra.mrb[0].mxu0 %v1153
        %v1220 = vpop.f32.mrb[0].mxu0
        %v1221 = vadd.f32 %v1126, %v1220
        %v1222 = vpop.f32.mrb[0].mxu0
        %v1223 = vpop.f32.mrb[0].mxu0
        %v1224 = vadd.f32 %v1127, %v1223
        %v1225 = vpop.f32.mrb[0].mxu0
        %1226 = vmatprep.mubr.bf16.mxu0 0
        %1227 = vmatmul.mubr.bf16.gmra.mrb[0].mxu0 %v1156
        %v1228 = vpop.f32.mrb[0].mxu0
        %v1229 = vadd.f32 %v1128, %v1228
        %v1230 = vpop.f32.mrb[0].mxu0
        %v1231 = vpop.f32.mrb[0].mxu0
        %v1232 = vadd.f32 %v1129, %v1231
        %v1233 = vpop.f32.mrb[0].mxu0
        %1234 = vdwg.mxu0
        %v1235 = vsel %vm699, %v1205, -inf
        %1236 = vmax.xlane.f32.xlu0 %v1235
        %v1237 = vpop.xlane.xlu0 %1236
        %v1238 = vsel %vm699, %v1208, -inf
        %1239 = vmax.xlane.f32.xlu0 %v1238
        %v1240 = vpop.xlane.xlu0 %1239
        %v1241 = vsel %vm699, %v1213, -inf
        %1242 = vmax.xlane.f32.xlu0 %v1241
        %v1243 = vpop.xlane.xlu0 %1242
        %v1244 = vsel %vm699, %v1216, -inf
        %1245 = vmax.xlane.f32.xlu0 %v1244
        %v1246 = vpop.xlane.xlu0 %1245
        %v1247 = vsel %vm699, %v1221, -inf
        %1248 = vmax.xlane.f32.xlu0 %v1247
        %v1249 = vpop.xlane.xlu0 %1248
        %v1250 = vsel %vm699, %v1224, -inf
        %1251 = vmax.xlane.f32.xlu0 %v1250
        %v1252 = vpop.xlane.xlu0 %1251
        %v1253 = vsel %vm699, %v1229, -inf
        %1254 = vmax.xlane.f32.xlu0 %v1253
        %v1255 = vpop.xlane.xlu0 %1254
        %v1256 = vsel %vm699, %v1232, -inf
        %1257 = vmax.xlane.f32.xlu0 %v1256
        %v1258 = vpop.xlane.xlu0 %1257
        %v1259 = vsub.f32 %v1205, %v1237
        %v1260 = vsub.f32 %v1208, %v1240
        %v1261 = vsub.f32 %v1213, %v1243
        %v1262 = vsub.f32 %v1216, %v1246
        %v1263 = vsub.f32 %v1221, %v1249
        %v1264 = vsub.f32 %v1224, %v1252
        %v1265 = vsub.f32 %v1229, %v1255
        %v1266 = vsub.f32 %v1232, %v1258
        %v1267 = vmul.f32 %v1259, 1.442695
        %v1268 = vpow.pop %v1267
        %v1269 = vmul.f32 %v1260, 1.442695
        %v1270 = vpow.pop %v1269
        %v1271 = vmul.f32 %v1261, 1.442695
        %v1272 = vpow.pop %v1271
        %v1273 = vmul.f32 %v1262, 1.442695
        %v1274 = vpow.pop %v1273
        %v1275 = vmul.f32 %v1263, 1.442695
        %v1276 = vpow.pop %v1275
        %v1277 = vmul.f32 %v1264, 1.442695
        %v1278 = vpow.pop %v1277
        %v1279 = vmul.f32 %v1265, 1.442695
        %v1280 = vpow.pop %v1279
        %v1281 = vmul.f32 %v1266, 1.442695
        %v1282 = vpow.pop %v1281
        %v1283 = vsel %vm699, %v1268, 0.0
        %1284 = vadd.xlane.f32.xlu0 %v1283
        %v1285 = vpop.xlane.xlu0 %1284
        %v1286 = vsel %vm699, %v1270, 0.0
        %1287 = vadd.xlane.f32.xlu0 %v1286
        %v1288 = vpop.xlane.xlu0 %1287
        %v1289 = vsel %vm699, %v1272, 0.0
        %1290 = vadd.xlane.f32.xlu0 %v1289
        %v1291 = vpop.xlane.xlu0 %1290
        %v1292 = vsel %vm699, %v1274, 0.0
        %1293 = vadd.xlane.f32.xlu0 %v1292
        %v1294 = vpop.xlane.xlu0 %1293
        %v1295 = vsel %vm699, %v1276, 0.0
        %1296 = vadd.xlane.f32.xlu0 %v1295
        %v1297 = vpop.xlane.xlu0 %1296
        %v1298 = vsel %vm699, %v1278, 0.0
        %1299 = vadd.xlane.f32.xlu0 %v1298
        %v1300 = vpop.xlane.xlu0 %1299
        %v1301 = vsel %vm699, %v1280, 0.0
        %1302 = vadd.xlane.f32.xlu0 %v1301
        %v1303 = vpop.xlane.xlu0 %1302
        %v1304 = vsel %vm699, %v1282, 0.0
        %1305 = vadd.xlane.f32.xlu0 %v1304
        %v1306 = vpop.xlane.xlu0 %1305
        %v1307 = vrcp.pop %v1285
        %v1308 = vrcp.pop %v1288
        %v1309 = vrcp.pop %v1291
        %v1310 = vrcp.pop %v1294
        %v1311 = vrcp.pop %v1297
        %v1312 = vrcp.pop %v1300
        %v1313 = vrcp.pop %v1303
        %v1314 = vrcp.pop %v1306
        %v1315 = vmul.f32 %v1268, %v1307
        %v1316 = vmul.f32 %v1270, %v1308
        %v1317 = vmul.f32 %v1272, %v1309
        %v1318 = vmul.f32 %v1274, %v1310
        %v1319 = vmul.f32 %v1276, %v1311
        %v1320 = vmul.f32 %v1278, %v1312
        %v1321 = vmul.f32 %v1280, %v1313
        %v1322 = vmul.f32 %v1282, %v1314
        %v1323 = vpack.c.bf16 %v1316, %v1315
        %v1324 = vpack.c.bf16 %v1318, %v1317
        %v1325 = vpack.c.bf16 %v1320, %v1319
        %v1326 = vpack.c.bf16 %v1322, %v1321
        %1327 = vrot.lane.b32.xlu0 %v597, 92
        %v1328 = vpop.permute.xlu0 %1327
        %1329 = vrot.lane.b32.xlu0 %v598, 92
        %v1330 = vpop.permute.xlu0 %1329
        %1331 = vrot.lane.b32.xlu0 %v599, 92
        %v1332 = vpop.permute.xlu0 %1331
        %1333 = vrot.lane.b32.xlu0 %v600, 92
        %v1334 = vpop.permute.xlu0 %1333
        %v1340 = vsel %vm699, %v1323, 0
        %v1343 = vsel %vm699, %v1324, 0
        %v1346 = vsel %vm699, %v1325, 0
        %v1349 = vsel %vm699, %v1326, 0
        %1351 = vmatprep.subr.bf16.mxu0 0
        %1352 = vmatpush1.bf16.msra.mxu0 %v1328
        %1353 = vmatprep.subr.bf16.mxu0 0
        %1354 = vmatpush1.bf16.msra.mxu0 %v1330
        %1355 = vmatprep.subr.bf16.mxu0 0
        %1356 = vmatpush1.bf16.msra.mxu0 %v1332
        %1357 = vmatprep.subr.bf16.mxu0 0
        %1358 = vmatpush1.bf16.msra.mxu0 %v1334
        %1359 = vmatprep.subr.bf16.mxu0 0
        %1360 = vmatpush1.bf16.msra.mxu0 0
        %1361 = vmatprep.subr.bf16.mxu0 0
        %1362 = vmatpush1.bf16.msra.mxu0 0
        %1363 = vmatprep.subr.bf16.mxu0 0
        %1364 = vmatpush1.bf16.msra.mxu0 0
        %1365 = vmatprep.subr.bf16.mxu0 0
        %1366 = vmatpush1.bf16.msra.mxu0 0
        %1367 = vmatprep.subr.bf16.mxu0 0
        %1368 = vmatpush1.bf16.msra.mxu0 0
        %1369 = vmatprep.subr.bf16.mxu0 0
        %1370 = vmatpush1.bf16.msra.mxu0 0
        %1371 = vmatprep.subr.bf16.mxu0 0
        %1372 = vmatpush1.bf16.msra.mxu0 0
        %1373 = vmatprep.subr.bf16.mxu0 0
        %1374 = vmatpush1.bf16.msra.mxu0 0
        %1375 = vmatprep.subr.bf16.mxu0 0
        %1376 = vmatpush1.bf16.msra.mxu0 0
        %1377 = vmatprep.subr.bf16.mxu0 0
        %1378 = vmatpush1.bf16.msra.mxu0 0
        %1379 = vmatprep.subr.bf16.mxu0 0
        %1380 = vmatpush1.bf16.msra.mxu0 0
        %1381 = vmatprep.subr.bf16.mxu0 0
        %1382 = vmatpush1.bf16.msra.mxu0 0
        %1383 = vmatprep.mubr.bf16.mxu0 0
        %1384 = vmatmul.mubr.bf16.gmra.mrb[0].mxu0 %v1340
        %v1385 = vpop.f32.mrb[0].mxu0
        %v1386 = vadd.f32 0.0, %v1385
        %v1387 = vpop.f32.mrb[0].mxu0
        %v1388 = vpop.f32.mrb[0].mxu0
        %v1389 = vadd.f32 0.0, %v1388
        %v1390 = vpop.f32.mrb[0].mxu0
        %1391 = vmatprep.mubr.bf16.mxu0 0
        %1392 = vmatmul.mubr.bf16.gmra.mrb[0].mxu0 %v1343
        %v1393 = vpop.f32.mrb[0].mxu0
        %v1394 = vadd.f32 0.0, %v1393
        %v1395 = vpop.f32.mrb[0].mxu0
        %v1396 = vpop.f32.mrb[0].mxu0
        %v1397 = vadd.f32 0.0, %v1396
        %v1398 = vpop.f32.mrb[0].mxu0
        %1399 = vmatprep.mubr.bf16.mxu0 0
        %1400 = vmatmul.mubr.bf16.gmra.mrb[0].mxu0 %v1346
        %v1401 = vpop.f32.mrb[0].mxu0
        %v1402 = vadd.f32 0.0, %v1401
        %v1403 = vpop.f32.mrb[0].mxu0
        %v1404 = vpop.f32.mrb[0].mxu0
        %v1405 = vadd.f32 0.0, %v1404
        %v1406 = vpop.f32.mrb[0].mxu0
        %1407 = vmatprep.mubr.bf16.mxu0 0
        %1408 = vmatmul.mubr.bf16.gmra.mrb[0].mxu0 %v1349
        %v1409 = vpop.f32.mrb[0].mxu0
        %v1410 = vadd.f32 0.0, %v1409
        %v1411 = vpop.f32.mrb[0].mxu0
        %v1412 = vpop.f32.mrb[0].mxu0
        %v1413 = vadd.f32 0.0, %v1412
        %v1414 = vpop.f32.mrb[0].mxu0
        %1415 = vdwg.mxu0
        %s1416 = scalar_lea.vmem %s311, 64
        %v1417 = vld [vmem:[%s1416] sm:$0xf]
        %v1418 = vld [vmem:[%s1416 + $0x4] sm:$0xf]
        %v1419 = vld [vmem:[%s1416 + $0x8] sm:$0xf]
        %v1420 = vld [vmem:[%s1416 + $0xc] sm:$0xf]
        %v1421 = vld [vmem:[%s1416 + $0x10] sm:$0xf]
        %v1422 = vld [vmem:[%s1416 + $0x14] sm:$0xf]
        %v1423 = vld [vmem:[%s1416 + $0x18] sm:$0xf]
        %v1424 = vld [vmem:[%s1416 + $0x1c] sm:$0xf]
        %v1425 = vunpack.c.l.bf16 %v1417
        %v1426 = vunpack.c.l.bf16 %v1418
        %v1427 = vunpack.c.l.bf16 %v1419
        %v1428 = vunpack.c.l.bf16 %v1420
        %v1429 = vunpack.c.l.bf16 %v1421
        %v1430 = vunpack.c.l.bf16 %v1422
        %v1431 = vunpack.c.l.bf16 %v1423
        %v1432 = vunpack.c.l.bf16 %v1424
        %1441 = vrot.lane.b32.xlu0 %v1425, 8
        %v1442 = vpop.permute.xlu0 %1441
        %1443 = vrot.lane.b32.xlu0 %v1426, 8
        %v1444 = vpop.permute.xlu0 %1443
        %1445 = vrot.lane.b32.xlu0 %v1427, 8
        %v1446 = vpop.permute.xlu0 %1445
        %1447 = vrot.lane.b32.xlu0 %v1428, 8
        %v1448 = vpop.permute.xlu0 %1447
        %1449 = vrot.lane.b32.xlu0 %v1429, 8
        %v1450 = vpop.permute.xlu0 %1449
        %1451 = vrot.lane.b32.xlu0 %v1430, 8
        %v1452 = vpop.permute.xlu0 %1451
        %1453 = vrot.lane.b32.xlu0 %v1431, 8
        %v1454 = vpop.permute.xlu0 %1453
        %1455 = vrot.lane.b32.xlu0 %v1432, 8
        %v1456 = vpop.permute.xlu0 %1455
        %1465 = vrot.lane.b32.xlu0 %v1425, 16
        %v1466 = vpop.permute.xlu0 %1465
        %1467 = vrot.lane.b32.xlu0 %v1426, 16
        %v1468 = vpop.permute.xlu0 %1467
        %1469 = vrot.lane.b32.xlu0 %v1427, 16
        %v1470 = vpop.permute.xlu0 %1469
        %1471 = vrot.lane.b32.xlu0 %v1428, 16
        %v1472 = vpop.permute.xlu0 %1471
        %1473 = vrot.lane.b32.xlu0 %v1429, 16
        %v1474 = vpop.permute.xlu0 %1473
        %1475 = vrot.lane.b32.xlu0 %v1430, 16
        %v1476 = vpop.permute.xlu0 %1475
        %1477 = vrot.lane.b32.xlu0 %v1431, 16
        %v1478 = vpop.permute.xlu0 %1477
        %1479 = vrot.lane.b32.xlu0 %v1432, 16
        %v1480 = vpop.permute.xlu0 %1479
        %1489 = vrot.lane.b32.xlu0 %v1425, 24
        %v1490 = vpop.permute.xlu0 %1489
        %1491 = vrot.lane.b32.xlu0 %v1426, 24
        %v1492 = vpop.permute.xlu0 %1491
        %1493 = vrot.lane.b32.xlu0 %v1427, 24
        %v1494 = vpop.permute.xlu0 %1493
        %1495 = vrot.lane.b32.xlu0 %v1428, 24
        %v1496 = vpop.permute.xlu0 %1495
        %1497 = vrot.lane.b32.xlu0 %v1429, 24
        %v1498 = vpop.permute.xlu0 %1497
        %1499 = vrot.lane.b32.xlu0 %v1430, 24
        %v1500 = vpop.permute.xlu0 %1499
        %1501 = vrot.lane.b32.xlu0 %v1431, 24
        %v1502 = vpop.permute.xlu0 %1501
        %1503 = vrot.lane.b32.xlu0 %v1432, 24
        %v1504 = vpop.permute.xlu0 %1503
        %1513 = vrot.lane.b32.xlu0 %v1425, 32
        %v1514 = vpop.permute.xlu0 %1513
        %1515 = vrot.lane.b32.xlu0 %v1426, 32
        %v1516 = vpop.permute.xlu0 %1515
        %1517 = vrot.lane.b32.xlu0 %v1427, 32
        %v1518 = vpop.permute.xlu0 %1517
        %1519 = vrot.lane.b32.xlu0 %v1428, 32
        %v1520 = vpop.permute.xlu0 %1519
        %1521 = vrot.lane.b32.xlu0 %v1429, 32
        %v1522 = vpop.permute.xlu0 %1521
        %1523 = vrot.lane.b32.xlu0 %v1430, 32
        %v1524 = vpop.permute.xlu0 %1523
        %1525 = vrot.lane.b32.xlu0 %v1431, 32
        %v1526 = vpop.permute.xlu0 %1525
        %1527 = vrot.lane.b32.xlu0 %v1432, 32
        %v1528 = vpop.permute.xlu0 %1527
        %1537 = vrot.lane.b32.xlu0 %v1425, 40
        %v1538 = vpop.permute.xlu0 %1537
        %1539 = vrot.lane.b32.xlu0 %v1426, 40
        %v1540 = vpop.permute.xlu0 %1539
        %1541 = vrot.lane.b32.xlu0 %v1427, 40
        %v1542 = vpop.permute.xlu0 %1541
        %1543 = vrot.lane.b32.xlu0 %v1428, 40
        %v1544 = vpop.permute.xlu0 %1543
        %1545 = vrot.lane.b32.xlu0 %v1429, 40
        %v1546 = vpop.permute.xlu0 %1545
        %1547 = vrot.lane.b32.xlu0 %v1430, 40
        %v1548 = vpop.permute.xlu0 %1547
        %1549 = vrot.lane.b32.xlu0 %v1431, 40
        %v1550 = vpop.permute.xlu0 %1549
        %1551 = vrot.lane.b32.xlu0 %v1432, 40
        %v1552 = vpop.permute.xlu0 %1551
        %1561 = vrot.lane.b32.xlu0 %v1425, 48
        %v1562 = vpop.permute.xlu0 %1561
        %1563 = vrot.lane.b32.xlu0 %v1426, 48
        %v1564 = vpop.permute.xlu0 %1563
        %1565 = vrot.lane.b32.xlu0 %v1427, 48
        %v1566 = vpop.permute.xlu0 %1565
        %1567 = vrot.lane.b32.xlu0 %v1428, 48
        %v1568 = vpop.permute.xlu0 %1567
        %1569 = vrot.lane.b32.xlu0 %v1429, 48
        %v1570 = vpop.permute.xlu0 %1569
        %1571 = vrot.lane.b32.xlu0 %v1430, 48
        %v1572 = vpop.permute.xlu0 %1571
        %1573 = vrot.lane.b32.xlu0 %v1431, 48
        %v1574 = vpop.permute.xlu0 %1573
        %1575 = vrot.lane.b32.xlu0 %v1432, 48
        %v1576 = vpop.permute.xlu0 %1575
        %1585 = vrot.lane.b32.xlu0 %v1425, 56
        %v1586 = vpop.permute.xlu0 %1585
        %1587 = vrot.lane.b32.xlu0 %v1426, 56
        %v1588 = vpop.permute.xlu0 %1587
        %1589 = vrot.lane.b32.xlu0 %v1427, 56
        %v1590 = vpop.permute.xlu0 %1589
        %1591 = vrot.lane.b32.xlu0 %v1428, 56
        %v1592 = vpop.permute.xlu0 %1591
        %1593 = vrot.lane.b32.xlu0 %v1429, 56
        %v1594 = vpop.permute.xlu0 %1593
        %1595 = vrot.lane.b32.xlu0 %v1430, 56
        %v1596 = vpop.permute.xlu0 %1595
        %1597 = vrot.lane.b32.xlu0 %v1431, 56
        %v1598 = vpop.permute.xlu0 %1597
        %1599 = vrot.lane.b32.xlu0 %v1432, 56
        %v1600 = vpop.permute.xlu0 %1599
        %v1609 = vsel %vm518, %v1425, %v1442
        %v1610 = vsel %vm518, %v1426, %v1444
        %v1611 = vsel %vm518, %v1427, %v1446
        %v1612 = vsel %vm518, %v1428, %v1448
        %v1613 = vsel %vm518, %v1429, %v1450
        %v1614 = vsel %vm518, %v1430, %v1452
        %v1615 = vsel %vm518, %v1431, %v1454
        %v1616 = vsel %vm518, %v1432, %v1456
        %v1617 = vsel %vm527, %v1609, %v1466
        %v1618 = vsel %vm527, %v1610, %v1468
        %v1619 = vsel %vm527, %v1611, %v1470
        %v1620 = vsel %vm527, %v1612, %v1472
        %v1621 = vsel %vm527, %v1613, %v1474
        %v1622 = vsel %vm527, %v1614, %v1476
        %v1623 = vsel %vm527, %v1615, %v1478
        %v1624 = vsel %vm527, %v1616, %v1480
        %v1625 = vsel %vm536, %v1617, %v1490
        %v1626 = vsel %vm536, %v1618, %v1492
        %v1627 = vsel %vm536, %v1619, %v1494
        %v1628 = vsel %vm536, %v1620, %v1496
        %v1629 = vsel %vm536, %v1621, %v1498
        %v1630 = vsel %vm536, %v1622, %v1500
        %v1631 = vsel %vm536, %v1623, %v1502
        %v1632 = vsel %vm536, %v1624, %v1504
        %v1633 = vsel %vm545, %v1625, %v1514
        %v1634 = vsel %vm545, %v1626, %v1516
        %v1635 = vsel %vm545, %v1627, %v1518
        %v1636 = vsel %vm545, %v1628, %v1520
        %v1637 = vsel %vm545, %v1629, %v1522
        %v1638 = vsel %vm545, %v1630, %v1524
        %v1639 = vsel %vm545, %v1631, %v1526
        %v1640 = vsel %vm545, %v1632, %v1528
        %v1641 = vsel %vm554, %v1633, %v1538
        %v1642 = vsel %vm554, %v1634, %v1540
        %v1643 = vsel %vm554, %v1635, %v1542
        %v1644 = vsel %vm554, %v1636, %v1544
        %v1645 = vsel %vm554, %v1637, %v1546
        %v1646 = vsel %vm554, %v1638, %v1548
        %v1647 = vsel %vm554, %v1639, %v1550
        %v1648 = vsel %vm554, %v1640, %v1552
        %v1649 = vsel %vm563, %v1641, %v1562
        %v1650 = vsel %vm563, %v1642, %v1564
        %v1651 = vsel %vm563, %v1643, %v1566
        %v1652 = vsel %vm563, %v1644, %v1568
        %v1653 = vsel %vm563, %v1645, %v1570
        %v1654 = vsel %vm563, %v1646, %v1572
        %v1655 = vsel %vm563, %v1647, %v1574
        %v1656 = vsel %vm563, %v1648, %v1576
        %v1657 = vsel %vm572, %v1649, %v1586
        %v1658 = vsel %vm572, %v1650, %v1588
        %v1659 = vsel %vm572, %v1651, %v1590
        %v1660 = vsel %vm572, %v1652, %v1592
        %v1661 = vsel %vm572, %v1653, %v1594
        %v1662 = vsel %vm572, %v1654, %v1596
        %v1663 = vsel %vm572, %v1655, %v1598
        %v1664 = vsel %vm572, %v1656, %v1600
        %1665 = vrot.lane.b32.xlu0 %v597, 120
        %v1666 = vpop.permute.xlu0 %1665
        %1667 = vrot.lane.b32.xlu0 %v598, 120
        %v1668 = vpop.permute.xlu0 %1667
        %1669 = vrot.lane.b32.xlu0 %v599, 120
        %v1670 = vpop.permute.xlu0 %1669
        %1671 = vrot.lane.b32.xlu0 %v600, 120
        %v1672 = vpop.permute.xlu0 %1671
        %1673 = vrot.lane.b32.xlu0 %v597, 104
        %v1674 = vpop.permute.xlu0 %1673
        %1675 = vrot.lane.b32.xlu0 %v598, 104
        %v1676 = vpop.permute.xlu0 %1675
        %1677 = vrot.lane.b32.xlu0 %v599, 104
        %v1678 = vpop.permute.xlu0 %1677
        %1679 = vrot.lane.b32.xlu0 %v600, 104
        %v1680 = vpop.permute.xlu0 %1679
        %v1682 = vsel %vm609, %v1666, 0
        %v1685 = vsel %vm609, %v1668, 0
        %v1688 = vsel %vm609, %v1670, 0
        %v1691 = vsel %vm609, %v1672, 0
        %v1694 = vsel %vm609, %v1674, 0
        %v1697 = vsel %vm609, %v1676, 0
        %v1700 = vsel %vm609, %v1678, 0
        %v1703 = vsel %vm609, %v1680, 0
        %1705 = vmatprep.subr.bf16.mxu0 0
        %1706 = vmatpush1.bf16.xpose.msra.mxu0 %v1694
        %1707 = vmatprep.subr.bf16.mxu0 0
        %1708 = vmatpush1.bf16.xpose.msra.mxu0 %v1697
        %1709 = vmatprep.subr.bf16.mxu0 0
        %1710 = vmatpush1.bf16.xpose.msra.mxu0 %v1700
        %1711 = vmatprep.subr.bf16.mxu0 0
        %1712 = vmatpush1.bf16.xpose.msra.mxu0 %v1703
        %1713 = vmatprep.subr.bf16.mxu0 0
        %1714 = vmatpush1.bf16.xpose.msra.mxu0 0
        %1715 = vmatprep.subr.bf16.mxu0 0
        %1716 = vmatpush1.bf16.xpose.msra.mxu0 0
        %1717 = vmatprep.subr.bf16.mxu0 0
        %1718 = vmatpush1.bf16.xpose.msra.mxu0 0
        %1719 = vmatprep.subr.bf16.mxu0 0
        %1720 = vmatpush1.bf16.xpose.msra.mxu0 0
        %1721 = vmatprep.subr.bf16.mxu0 0
        %1722 = vmatpush1.bf16.xpose.msra.mxu0 0
        %1723 = vmatprep.subr.bf16.mxu0 0
        %1724 = vmatpush1.bf16.xpose.msra.mxu0 0
        %1725 = vmatprep.subr.bf16.mxu0 0
        %1726 = vmatpush1.bf16.xpose.msra.mxu0 0
        %1727 = vmatprep.subr.bf16.mxu0 0
        %1728 = vmatpush1.bf16.xpose.msra.mxu0 0
        %1729 = vmatprep.subr.bf16.mxu0 0
        %1730 = vmatpush1.bf16.xpose.msra.mxu0 0
        %1731 = vmatprep.subr.bf16.mxu0 0
        %1732 = vmatpush1.bf16.xpose.msra.mxu0 0
        %1733 = vmatprep.subr.bf16.mxu0 0
        %1734 = vmatpush1.bf16.xpose.msra.mxu0 0
        %1735 = vmatprep.subr.bf16.mxu0 0
        %1736 = vmatpush1.bf16.xpose.msra.mxu0 0
        %1737 = vmatprep.mubr.bf16.mxu0 0
        %1738 = vmatmul.mubr.bf16.gmra.mrb[0].mxu0 %v1682
        %v1739 = vpop.f32.mrb[0].mxu0
        %v1740 = vadd.f32 %v1657, %v1739
        %v1741 = vpop.f32.mrb[0].mxu0
        %v1742 = vpop.f32.mrb[0].mxu0
        %v1743 = vadd.f32 %v1658, %v1742
        %v1744 = vpop.f32.mrb[0].mxu0
        %1745 = vmatprep.mubr.bf16.mxu0 0
        %1746 = vmatmul.mubr.bf16.gmra.mrb[0].mxu0 %v1685
        %v1747 = vpop.f32.mrb[0].mxu0
        %v1748 = vadd.f32 %v1659, %v1747
        %v1749 = vpop.f32.mrb[0].mxu0
        %v1750 = vpop.f32.mrb[0].mxu0
        %v1751 = vadd.f32 %v1660, %v1750
        %v1752 = vpop.f32.mrb[0].mxu0
        %1753 = vmatprep.mubr.bf16.mxu0 0
        %1754 = vmatmul.mubr.bf16.gmra.mrb[0].mxu0 %v1688
        %v1755 = vpop.f32.mrb[0].mxu0
        %v1756 = vadd.f32 %v1661, %v1755
        %v1757 = vpop.f32.mrb[0].mxu0
        %v1758 = vpop.f32.mrb[0].mxu0
        %v1759 = vadd.f32 %v1662, %v1758
        %v1760 = vpop.f32.mrb[0].mxu0
        %1761 = vmatprep.mubr.bf16.mxu0 0
        %1762 = vmatmul.mubr.bf16.gmra.mrb[0].mxu0 %v1691
        %v1763 = vpop.f32.mrb[0].mxu0
        %v1764 = vadd.f32 %v1663, %v1763
        %v1765 = vpop.f32.mrb[0].mxu0
        %v1766 = vpop.f32.mrb[0].mxu0
        %v1767 = vadd.f32 %v1664, %v1766
        %v1768 = vpop.f32.mrb[0].mxu0
        %1769 = vdwg.mxu0
        %v1770 = vsel %vm699, %v1740, -inf
        %1771 = vmax.xlane.f32.xlu0 %v1770
        %v1772 = vpop.xlane.xlu0 %1771
        %v1773 = vsel %vm699, %v1743, -inf
        %1774 = vmax.xlane.f32.xlu0 %v1773
        %v1775 = vpop.xlane.xlu0 %1774
        %v1776 = vsel %vm699, %v1748, -inf
        %1777 = vmax.xlane.f32.xlu0 %v1776
        %v1778 = vpop.xlane.xlu0 %1777
        %v1779 = vsel %vm699, %v1751, -inf
        %1780 = vmax.xlane.f32.xlu0 %v1779
        %v1781 = vpop.xlane.xlu0 %1780
        %v1782 = vsel %vm699, %v1756, -inf
        %1783 = vmax.xlane.f32.xlu0 %v1782
        %v1784 = vpop.xlane.xlu0 %1783
        %v1785 = vsel %vm699, %v1759, -inf
        %1786 = vmax.xlane.f32.xlu0 %v1785
        %v1787 = vpop.xlane.xlu0 %1786
        %v1788 = vsel %vm699, %v1764, -inf
        %1789 = vmax.xlane.f32.xlu0 %v1788
        %v1790 = vpop.xlane.xlu0 %1789
        %v1791 = vsel %vm699, %v1767, -inf
        %1792 = vmax.xlane.f32.xlu0 %v1791
        %v1793 = vpop.xlane.xlu0 %1792
        %v1794 = vsub.f32 %v1740, %v1772
        %v1795 = vsub.f32 %v1743, %v1775
        %v1796 = vsub.f32 %v1748, %v1778
        %v1797 = vsub.f32 %v1751, %v1781
        %v1798 = vsub.f32 %v1756, %v1784
        %v1799 = vsub.f32 %v1759, %v1787
        %v1800 = vsub.f32 %v1764, %v1790
        %v1801 = vsub.f32 %v1767, %v1793
        %v1802 = vmul.f32 %v1794, 1.442695
        %v1803 = vpow.pop %v1802
        %v1804 = vmul.f32 %v1795, 1.442695
        %v1805 = vpow.pop %v1804
        %v1806 = vmul.f32 %v1796, 1.442695
        %v1807 = vpow.pop %v1806
        %v1808 = vmul.f32 %v1797, 1.442695
        %v1809 = vpow.pop %v1808
        %v1810 = vmul.f32 %v1798, 1.442695
        %v1811 = vpow.pop %v1810
        %v1812 = vmul.f32 %v1799, 1.442695
        %v1813 = vpow.pop %v1812
        %v1814 = vmul.f32 %v1800, 1.442695
        %v1815 = vpow.pop %v1814
        %v1816 = vmul.f32 %v1801, 1.442695
        %v1817 = vpow.pop %v1816
        %v1818 = vsel %vm699, %v1803, 0.0
        %1819 = vadd.xlane.f32.xlu0 %v1818
        %v1820 = vpop.xlane.xlu0 %1819
        %v1821 = vsel %vm699, %v1805, 0.0
        %1822 = vadd.xlane.f32.xlu0 %v1821
        %v1823 = vpop.xlane.xlu0 %1822
        %v1824 = vsel %vm699, %v1807, 0.0
        %1825 = vadd.xlane.f32.xlu0 %v1824
        %v1826 = vpop.xlane.xlu0 %1825
        %v1827 = vsel %vm699, %v1809, 0.0
        %1828 = vadd.xlane.f32.xlu0 %v1827
        %v1829 = vpop.xlane.xlu0 %1828
        %v1830 = vsel %vm699, %v1811, 0.0
        %1831 = vadd.xlane.f32.xlu0 %v1830
        %v1832 = vpop.xlane.xlu0 %1831
        %v1833 = vsel %vm699, %v1813, 0.0
        %1834 = vadd.xlane.f32.xlu0 %v1833
        %v1835 = vpop.xlane.xlu0 %1834
        %v1836 = vsel %vm699, %v1815, 0.0
        %1837 = vadd.xlane.f32.xlu0 %v1836
        %v1838 = vpop.xlane.xlu0 %1837
        %v1839 = vsel %vm699, %v1817, 0.0
        %1840 = vadd.xlane.f32.xlu0 %v1839
        %v1841 = vpop.xlane.xlu0 %1840
        %v1842 = vrcp.pop %v1820
        %v1843 = vrcp.pop %v1823
        %v1844 = vrcp.pop %v1826
        %v1845 = vrcp.pop %v1829
        %v1846 = vrcp.pop %v1832
        %v1847 = vrcp.pop %v1835
        %v1848 = vrcp.pop %v1838
        %v1849 = vrcp.pop %v1841
        %v1850 = vmul.f32 %v1803, %v1842
        %v1851 = vmul.f32 %v1805, %v1843
        %v1852 = vmul.f32 %v1807, %v1844
        %v1853 = vmul.f32 %v1809, %v1845
        %v1854 = vmul.f32 %v1811, %v1846
        %v1855 = vmul.f32 %v1813, %v1847
        %v1856 = vmul.f32 %v1815, %v1848
        %v1857 = vmul.f32 %v1817, %v1849
        %v1858 = vpack.c.bf16 %v1851, %v1850
        %v1859 = vpack.c.bf16 %v1853, %v1852
        %v1860 = vpack.c.bf16 %v1855, %v1854
        %v1861 = vpack.c.bf16 %v1857, %v1856
        %1862 = vrot.lane.b32.xlu0 %v597, 88
        %v1863 = vpop.permute.xlu0 %1862
        %1864 = vrot.lane.b32.xlu0 %v598, 88
        %v1865 = vpop.permute.xlu0 %1864
        %1866 = vrot.lane.b32.xlu0 %v599, 88
        %v1867 = vpop.permute.xlu0 %1866
        %1868 = vrot.lane.b32.xlu0 %v600, 88
        %v1869 = vpop.permute.xlu0 %1868
        %v1875 = vsel %vm699, %v1858, 0
        %v1878 = vsel %vm699, %v1859, 0
        %v1881 = vsel %vm699, %v1860, 0
        %v1884 = vsel %vm699, %v1861, 0
        %1886 = vmatprep.subr.bf16.mxu0 0
        %1887 = vmatpush1.bf16.msra.mxu0 %v1863
        %1888 = vmatprep.subr.bf16.mxu0 0
        %1889 = vmatpush1.bf16.msra.mxu0 %v1865
        %1890 = vmatprep.subr.bf16.mxu0 0
        %1891 = vmatpush1.bf16.msra.mxu0 %v1867
        %1892 = vmatprep.subr.bf16.mxu0 0
        %1893 = vmatpush1.bf16.msra.mxu0 %v1869
        %1894 = vmatprep.subr.bf16.mxu0 0
        %1895 = vmatpush1.bf16.msra.mxu0 0
        %1896 = vmatprep.subr.bf16.mxu0 0
        %1897 = vmatpush1.bf16.msra.mxu0 0
        %1898 = vmatprep.subr.bf16.mxu0 0
        %1899 = vmatpush1.bf16.msra.mxu0 0
        %1900 = vmatprep.subr.bf16.mxu0 0
        %1901 = vmatpush1.bf16.msra.mxu0 0
        %1902 = vmatprep.subr.bf16.mxu0 0
        %1903 = vmatpush1.bf16.msra.mxu0 0
        %1904 = vmatprep.subr.bf16.mxu0 0
        %1905 = vmatpush1.bf16.msra.mxu0 0
        %1906 = vmatprep.subr.bf16.mxu0 0
        %1907 = vmatpush1.bf16.msra.mxu0 0
        %1908 = vmatprep.subr.bf16.mxu0 0
        %1909 = vmatpush1.bf16.msra.mxu0 0
        %1910 = vmatprep.subr.bf16.mxu0 0
        %1911 = vmatpush1.bf16.msra.mxu0 0
        %1912 = vmatprep.subr.bf16.mxu0 0
        %1913 = vmatpush1.bf16.msra.mxu0 0
        %1914 = vmatprep.subr.bf16.mxu0 0
        %1915 = vmatpush1.bf16.msra.mxu0 0
        %1916 = vmatprep.subr.bf16.mxu0 0
        %1917 = vmatpush1.bf16.msra.mxu0 0
        %1918 = vmatprep.mubr.bf16.mxu0 0
        %1919 = vmatmul.mubr.bf16.gmra.mrb[0].mxu0 %v1875
        %v1920 = vpop.f32.mrb[0].mxu0
        %v1921 = vadd.f32 0.0, %v1920
        %v1922 = vpop.f32.mrb[0].mxu0
        %v1923 = vpop.f32.mrb[0].mxu0
        %v1924 = vadd.f32 0.0, %v1923
        %v1925 = vpop.f32.mrb[0].mxu0
        %1926 = vmatprep.mubr.bf16.mxu0 0
        %1927 = vmatmul.mubr.bf16.gmra.mrb[0].mxu0 %v1878
        %v1928 = vpop.f32.mrb[0].mxu0
        %v1929 = vadd.f32 0.0, %v1928
        %v1930 = vpop.f32.mrb[0].mxu0
        %v1931 = vpop.f32.mrb[0].mxu0
        %v1932 = vadd.f32 0.0, %v1931
        %v1933 = vpop.f32.mrb[0].mxu0
        %1934 = vmatprep.mubr.bf16.mxu0 0
        %1935 = vmatmul.mubr.bf16.gmra.mrb[0].mxu0 %v1881
        %v1936 = vpop.f32.mrb[0].mxu0
        %v1937 = vadd.f32 0.0, %v1936
        %v1938 = vpop.f32.mrb[0].mxu0
        %v1939 = vpop.f32.mrb[0].mxu0
        %v1940 = vadd.f32 0.0, %v1939
        %v1941 = vpop.f32.mrb[0].mxu0
        %1942 = vmatprep.mubr.bf16.mxu0 0
        %1943 = vmatmul.mubr.bf16.gmra.mrb[0].mxu0 %v1884
        %v1944 = vpop.f32.mrb[0].mxu0
        %v1945 = vadd.f32 0.0, %v1944
        %v1946 = vpop.f32.mrb[0].mxu0
        %v1947 = vpop.f32.mrb[0].mxu0
        %v1948 = vadd.f32 0.0, %v1947
        %v1949 = vpop.f32.mrb[0].mxu0
        %1950 = vdwg.mxu0
        %s1951 = scalar_lea.vmem %s311, 96
        %v1952 = vld [vmem:[%s1951] sm:$0xf]
        %v1953 = vld [vmem:[%s1951 + $0x4] sm:$0xf]
        %v1954 = vld [vmem:[%s1951 + $0x8] sm:$0xf]
        %v1955 = vld [vmem:[%s1951 + $0xc] sm:$0xf]
        %v1956 = vld [vmem:[%s1951 + $0x10] sm:$0xf]
        %v1957 = vld [vmem:[%s1951 + $0x14] sm:$0xf]
        %v1958 = vld [vmem:[%s1951 + $0x18] sm:$0xf]
        %v1959 = vld [vmem:[%s1951 + $0x1c] sm:$0xf]
        %v1960 = vunpack.c.l.bf16 %v1952
        %v1961 = vunpack.c.l.bf16 %v1953
        %v1962 = vunpack.c.l.bf16 %v1954
        %v1963 = vunpack.c.l.bf16 %v1955
        %v1964 = vunpack.c.l.bf16 %v1956
        %v1965 = vunpack.c.l.bf16 %v1957
        %v1966 = vunpack.c.l.bf16 %v1958
        %v1967 = vunpack.c.l.bf16 %v1959
        %1976 = vrot.lane.b32.xlu0 %v1960, 8
        %v1977 = vpop.permute.xlu0 %1976
        %1978 = vrot.lane.b32.xlu0 %v1961, 8
        %v1979 = vpop.permute.xlu0 %1978
        %1980 = vrot.lane.b32.xlu0 %v1962, 8
        %v1981 = vpop.permute.xlu0 %1980
        %1982 = vrot.lane.b32.xlu0 %v1963, 8
        %v1983 = vpop.permute.xlu0 %1982
        %1984 = vrot.lane.b32.xlu0 %v1964, 8
        %v1985 = vpop.permute.xlu0 %1984
        %1986 = vrot.lane.b32.xlu0 %v1965, 8
        %v1987 = vpop.permute.xlu0 %1986
        %1988 = vrot.lane.b32.xlu0 %v1966, 8
        %v1989 = vpop.permute.xlu0 %1988
        %1990 = vrot.lane.b32.xlu0 %v1967, 8
        %v1991 = vpop.permute.xlu0 %1990
        %2000 = vrot.lane.b32.xlu0 %v1960, 16
        %v2001 = vpop.permute.xlu0 %2000
        %2002 = vrot.lane.b32.xlu0 %v1961, 16
        %v2003 = vpop.permute.xlu0 %2002
        %2004 = vrot.lane.b32.xlu0 %v1962, 16
        %v2005 = vpop.permute.xlu0 %2004
        %2006 = vrot.lane.b32.xlu0 %v1963, 16
        %v2007 = vpop.permute.xlu0 %2006
        %2008 = vrot.lane.b32.xlu0 %v1964, 16
        %v2009 = vpop.permute.xlu0 %2008
        %2010 = vrot.lane.b32.xlu0 %v1965, 16
        %v2011 = vpop.permute.xlu0 %2010
        %2012 = vrot.lane.b32.xlu0 %v1966, 16
        %v2013 = vpop.permute.xlu0 %2012
        %2014 = vrot.lane.b32.xlu0 %v1967, 16
        %v2015 = vpop.permute.xlu0 %2014
        %2024 = vrot.lane.b32.xlu0 %v1960, 24
        %v2025 = vpop.permute.xlu0 %2024
        %2026 = vrot.lane.b32.xlu0 %v1961, 24
        %v2027 = vpop.permute.xlu0 %2026
        %2028 = vrot.lane.b32.xlu0 %v1962, 24
        %v2029 = vpop.permute.xlu0 %2028
        %2030 = vrot.lane.b32.xlu0 %v1963, 24
        %v2031 = vpop.permute.xlu0 %2030
        %2032 = vrot.lane.b32.xlu0 %v1964, 24
        %v2033 = vpop.permute.xlu0 %2032
        %2034 = vrot.lane.b32.xlu0 %v1965, 24
        %v2035 = vpop.permute.xlu0 %2034
        %2036 = vrot.lane.b32.xlu0 %v1966, 24
        %v2037 = vpop.permute.xlu0 %2036
        %2038 = vrot.lane.b32.xlu0 %v1967, 24
        %v2039 = vpop.permute.xlu0 %2038
        %2048 = vrot.lane.b32.xlu0 %v1960, 32
        %v2049 = vpop.permute.xlu0 %2048
        %2050 = vrot.lane.b32.xlu0 %v1961, 32
        %v2051 = vpop.permute.xlu0 %2050
        %2052 = vrot.lane.b32.xlu0 %v1962, 32
        %v2053 = vpop.permute.xlu0 %2052
        %2054 = vrot.lane.b32.xlu0 %v1963, 32
        %v2055 = vpop.permute.xlu0 %2054
        %2056 = vrot.lane.b32.xlu0 %v1964, 32
        %v2057 = vpop.permute.xlu0 %2056
        %2058 = vrot.lane.b32.xlu0 %v1965, 32
        %v2059 = vpop.permute.xlu0 %2058
        %2060 = vrot.lane.b32.xlu0 %v1966, 32
        %v2061 = vpop.permute.xlu0 %2060
        %2062 = vrot.lane.b32.xlu0 %v1967, 32
        %v2063 = vpop.permute.xlu0 %2062
        %2072 = vrot.lane.b32.xlu0 %v1960, 40
        %v2073 = vpop.permute.xlu0 %2072
        %2074 = vrot.lane.b32.xlu0 %v1961, 40
        %v2075 = vpop.permute.xlu0 %2074
        %2076 = vrot.lane.b32.xlu0 %v1962, 40
        %v2077 = vpop.permute.xlu0 %2076
        %2078 = vrot.lane.b32.xlu0 %v1963, 40
        %v2079 = vpop.permute.xlu0 %2078
        %2080 = vrot.lane.b32.xlu0 %v1964, 40
        %v2081 = vpop.permute.xlu0 %2080
        %2082 = vrot.lane.b32.xlu0 %v1965, 40
        %v2083 = vpop.permute.xlu0 %2082
        %2084 = vrot.lane.b32.xlu0 %v1966, 40
        %v2085 = vpop.permute.xlu0 %2084
        %2086 = vrot.lane.b32.xlu0 %v1967, 40
        %v2087 = vpop.permute.xlu0 %2086
        %2096 = vrot.lane.b32.xlu0 %v1960, 48
        %v2097 = vpop.permute.xlu0 %2096
        %2098 = vrot.lane.b32.xlu0 %v1961, 48
        %v2099 = vpop.permute.xlu0 %2098
        %2100 = vrot.lane.b32.xlu0 %v1962, 48
        %v2101 = vpop.permute.xlu0 %2100
        %2102 = vrot.lane.b32.xlu0 %v1963, 48
        %v2103 = vpop.permute.xlu0 %2102
        %2104 = vrot.lane.b32.xlu0 %v1964, 48
        %v2105 = vpop.permute.xlu0 %2104
        %2106 = vrot.lane.b32.xlu0 %v1965, 48
        %v2107 = vpop.permute.xlu0 %2106
        %2108 = vrot.lane.b32.xlu0 %v1966, 48
        %v2109 = vpop.permute.xlu0 %2108
        %2110 = vrot.lane.b32.xlu0 %v1967, 48
        %v2111 = vpop.permute.xlu0 %2110
        %2120 = vrot.lane.b32.xlu0 %v1960, 56
        %v2121 = vpop.permute.xlu0 %2120
        %2122 = vrot.lane.b32.xlu0 %v1961, 56
        %v2123 = vpop.permute.xlu0 %2122
        %2124 = vrot.lane.b32.xlu0 %v1962, 56
        %v2125 = vpop.permute.xlu0 %2124
        %2126 = vrot.lane.b32.xlu0 %v1963, 56
        %v2127 = vpop.permute.xlu0 %2126
        %2128 = vrot.lane.b32.xlu0 %v1964, 56
        %v2129 = vpop.permute.xlu0 %2128
        %2130 = vrot.lane.b32.xlu0 %v1965, 56
        %v2131 = vpop.permute.xlu0 %2130
        %2132 = vrot.lane.b32.xlu0 %v1966, 56
        %v2133 = vpop.permute.xlu0 %2132
        %2134 = vrot.lane.b32.xlu0 %v1967, 56
        %v2135 = vpop.permute.xlu0 %2134
        %v2144 = vsel %vm518, %v1960, %v1977
        %v2145 = vsel %vm518, %v1961, %v1979
        %v2146 = vsel %vm518, %v1962, %v1981
        %v2147 = vsel %vm518, %v1963, %v1983
        %v2148 = vsel %vm518, %v1964, %v1985
        %v2149 = vsel %vm518, %v1965, %v1987
        %v2150 = vsel %vm518, %v1966, %v1989
        %v2151 = vsel %vm518, %v1967, %v1991
        %v2152 = vsel %vm527, %v2144, %v2001
        %v2153 = vsel %vm527, %v2145, %v2003
        %v2154 = vsel %vm527, %v2146, %v2005
        %v2155 = vsel %vm527, %v2147, %v2007
        %v2156 = vsel %vm527, %v2148, %v2009
        %v2157 = vsel %vm527, %v2149, %v2011
        %v2158 = vsel %vm527, %v2150, %v2013
        %v2159 = vsel %vm527, %v2151, %v2015
        %v2160 = vsel %vm536, %v2152, %v2025
        %v2161 = vsel %vm536, %v2153, %v2027
        %v2162 = vsel %vm536, %v2154, %v2029
        %v2163 = vsel %vm536, %v2155, %v2031
        %v2164 = vsel %vm536, %v2156, %v2033
        %v2165 = vsel %vm536, %v2157, %v2035
        %v2166 = vsel %vm536, %v2158, %v2037
        %v2167 = vsel %vm536, %v2159, %v2039
        %v2168 = vsel %vm545, %v2160, %v2049
        %v2169 = vsel %vm545, %v2161, %v2051
        %v2170 = vsel %vm545, %v2162, %v2053
        %v2171 = vsel %vm545, %v2163, %v2055
        %v2172 = vsel %vm545, %v2164, %v2057
        %v2173 = vsel %vm545, %v2165, %v2059
        %v2174 = vsel %vm545, %v2166, %v2061
        %v2175 = vsel %vm545, %v2167, %v2063
        %v2176 = vsel %vm554, %v2168, %v2073
        %v2177 = vsel %vm554, %v2169, %v2075
        %v2178 = vsel %vm554, %v2170, %v2077
        %v2179 = vsel %vm554, %v2171, %v2079
        %v2180 = vsel %vm554, %v2172, %v2081
        %v2181 = vsel %vm554, %v2173, %v2083
        %v2182 = vsel %vm554, %v2174, %v2085
        %v2183 = vsel %vm554, %v2175, %v2087
        %v2184 = vsel %vm563, %v2176, %v2097
        %v2185 = vsel %vm563, %v2177, %v2099
        %v2186 = vsel %vm563, %v2178, %v2101
        %v2187 = vsel %vm563, %v2179, %v2103
        %v2188 = vsel %vm563, %v2180, %v2105
        %v2189 = vsel %vm563, %v2181, %v2107
        %v2190 = vsel %vm563, %v2182, %v2109
        %v2191 = vsel %vm563, %v2183, %v2111
        %v2192 = vsel %vm572, %v2184, %v2121
        %v2193 = vsel %vm572, %v2185, %v2123
        %v2194 = vsel %vm572, %v2186, %v2125
        %v2195 = vsel %vm572, %v2187, %v2127
        %v2196 = vsel %vm572, %v2188, %v2129
        %v2197 = vsel %vm572, %v2189, %v2131
        %v2198 = vsel %vm572, %v2190, %v2133
        %v2199 = vsel %vm572, %v2191, %v2135
        %2200 = vrot.lane.b32.xlu0 %v597, 116
        %v2201 = vpop.permute.xlu0 %2200
        %2202 = vrot.lane.b32.xlu0 %v598, 116
        %v2203 = vpop.permute.xlu0 %2202
        %2204 = vrot.lane.b32.xlu0 %v599, 116
        %v2205 = vpop.permute.xlu0 %2204
        %2206 = vrot.lane.b32.xlu0 %v600, 116
        %v2207 = vpop.permute.xlu0 %2206
        %2208 = vrot.lane.b32.xlu0 %v597, 100
        %v2209 = vpop.permute.xlu0 %2208
        %2210 = vrot.lane.b32.xlu0 %v598, 100
        %v2211 = vpop.permute.xlu0 %2210
        %2212 = vrot.lane.b32.xlu0 %v599, 100
        %v2213 = vpop.permute.xlu0 %2212
        %2214 = vrot.lane.b32.xlu0 %v600, 100
        %v2215 = vpop.permute.xlu0 %2214
        %v2217 = vsel %vm609, %v2201, 0
        %v2220 = vsel %vm609, %v2203, 0
        %v2223 = vsel %vm609, %v2205, 0
        %v2226 = vsel %vm609, %v2207, 0
        %v2229 = vsel %vm609, %v2209, 0
        %v2232 = vsel %vm609, %v2211, 0
        %v2235 = vsel %vm609, %v2213, 0
        %v2238 = vsel %vm609, %v2215, 0
        %2240 = vmatprep.subr.bf16.mxu0 0
        %2241 = vmatpush1.bf16.xpose.msra.mxu0 %v2229
        %2242 = vmatprep.subr.bf16.mxu0 0
        %2243 = vmatpush1.bf16.xpose.msra.mxu0 %v2232
        %2244 = vmatprep.subr.bf16.mxu0 0
        %2245 = vmatpush1.bf16.xpose.msra.mxu0 %v2235
        %2246 = vmatprep.subr.bf16.mxu0 0
        %2247 = vmatpush1.bf16.xpose.msra.mxu0 %v2238
        %2248 = vmatprep.subr.bf16.mxu0 0
        %2249 = vmatpush1.bf16.xpose.msra.mxu0 0
        %2250 = vmatprep.subr.bf16.mxu0 0
        %2251 = vmatpush1.bf16.xpose.msra.mxu0 0
        %2252 = vmatprep.subr.bf16.mxu0 0
        %2253 = vmatpush1.bf16.xpose.msra.mxu0 0
        %2254 = vmatprep.subr.bf16.mxu0 0
        %2255 = vmatpush1.bf16.xpose.msra.mxu0 0
        %2256 = vmatprep.subr.bf16.mxu0 0
        %2257 = vmatpush1.bf16.xpose.msra.mxu0 0
        %2258 = vmatprep.subr.bf16.mxu0 0
        %2259 = vmatpush1.bf16.xpose.msra.mxu0 0
        %2260 = vmatprep.subr.bf16.mxu0 0
        %2261 = vmatpush1.bf16.xpose.msra.mxu0 0
        %2262 = vmatprep.subr.bf16.mxu0 0
        %2263 = vmatpush1.bf16.xpose.msra.mxu0 0
        %2264 = vmatprep.subr.bf16.mxu0 0
        %2265 = vmatpush1.bf16.xpose.msra.mxu0 0
        %2266 = vmatprep.subr.bf16.mxu0 0
        %2267 = vmatpush1.bf16.xpose.msra.mxu0 0
        %2268 = vmatprep.subr.bf16.mxu0 0
        %2269 = vmatpush1.bf16.xpose.msra.mxu0 0
        %2270 = vmatprep.subr.bf16.mxu0 0
        %2271 = vmatpush1.bf16.xpose.msra.mxu0 0
        %2272 = vmatprep.mubr.bf16.mxu0 0
        %2273 = vmatmul.mubr.bf16.gmra.mrb[0].mxu0 %v2217
        %v2274 = vpop.f32.mrb[0].mxu0
        %v2275 = vadd.f32 %v2192, %v2274
        %v2276 = vpop.f32.mrb[0].mxu0
        %v2277 = vpop.f32.mrb[0].mxu0
        %v2278 = vadd.f32 %v2193, %v2277
        %v2279 = vpop.f32.mrb[0].mxu0
        %2280 = vmatprep.mubr.bf16.mxu0 0
        %2281 = vmatmul.mubr.bf16.gmra.mrb[0].mxu0 %v2220
        %v2282 = vpop.f32.mrb[0].mxu0
        %v2283 = vadd.f32 %v2194, %v2282
        %v2284 = vpop.f32.mrb[0].mxu0
        %v2285 = vpop.f32.mrb[0].mxu0
        %v2286 = vadd.f32 %v2195, %v2285
        %v2287 = vpop.f32.mrb[0].mxu0
        %2288 = vmatprep.mubr.bf16.mxu0 0
        %2289 = vmatmul.mubr.bf16.gmra.mrb[0].mxu0 %v2223
        %v2290 = vpop.f32.mrb[0].mxu0
        %v2291 = vadd.f32 %v2196, %v2290
        %v2292 = vpop.f32.mrb[0].mxu0
        %v2293 = vpop.f32.mrb[0].mxu0
        %v2294 = vadd.f32 %v2197, %v2293
        %v2295 = vpop.f32.mrb[0].mxu0
        %2296 = vmatprep.mubr.bf16.mxu0 0
        %2297 = vmatmul.mubr.bf16.gmra.mrb[0].mxu0 %v2226
        %v2298 = vpop.f32.mrb[0].mxu0
        %v2299 = vadd.f32 %v2198, %v2298
        %v2300 = vpop.f32.mrb[0].mxu0
        %v2301 = vpop.f32.mrb[0].mxu0
        %v2302 = vadd.f32 %v2199, %v2301
        %v2303 = vpop.f32.mrb[0].mxu0
        %2304 = vdwg.mxu0
        %v2305 = vsel %vm699, %v2275, -inf
        %2306 = vmax.xlane.f32.xlu0 %v2305
        %v2307 = vpop.xlane.xlu0 %2306
        %v2308 = vsel %vm699, %v2278, -inf
        %2309 = vmax.xlane.f32.xlu0 %v2308
        %v2310 = vpop.xlane.xlu0 %2309
        %v2311 = vsel %vm699, %v2283, -inf
        %2312 = vmax.xlane.f32.xlu0 %v2311
        %v2313 = vpop.xlane.xlu0 %2312
        %v2314 = vsel %vm699, %v2286, -inf
        %2315 = vmax.xlane.f32.xlu0 %v2314
        %v2316 = vpop.xlane.xlu0 %2315
        %v2317 = vsel %vm699, %v2291, -inf
        %2318 = vmax.xlane.f32.xlu0 %v2317
        %v2319 = vpop.xlane.xlu0 %2318
        %v2320 = vsel %vm699, %v2294, -inf
        %2321 = vmax.xlane.f32.xlu0 %v2320
        %v2322 = vpop.xlane.xlu0 %2321
        %v2323 = vsel %vm699, %v2299, -inf
        %2324 = vmax.xlane.f32.xlu0 %v2323
        %v2325 = vpop.xlane.xlu0 %2324
        %v2326 = vsel %vm699, %v2302, -inf
        %2327 = vmax.xlane.f32.xlu0 %v2326
        %v2328 = vpop.xlane.xlu0 %2327
        %v2329 = vsub.f32 %v2275, %v2307
        %v2330 = vsub.f32 %v2278, %v2310
        %v2331 = vsub.f32 %v2283, %v2313
        %v2332 = vsub.f32 %v2286, %v2316
        %v2333 = vsub.f32 %v2291, %v2319
        %v2334 = vsub.f32 %v2294, %v2322
        %v2335 = vsub.f32 %v2299, %v2325
        %v2336 = vsub.f32 %v2302, %v2328
        %v2337 = vmul.f32 %v2329, 1.442695
        %v2338 = vpow.pop %v2337
        %v2339 = vmul.f32 %v2330, 1.442695
        %v2340 = vpow.pop %v2339
        %v2341 = vmul.f32 %v2331, 1.442695
        %v2342 = vpow.pop %v2341
        %v2343 = vmul.f32 %v2332, 1.442695
        %v2344 = vpow.pop %v2343
        %v2345 = vmul.f32 %v2333, 1.442695
        %v2346 = vpow.pop %v2345
        %v2347 = vmul.f32 %v2334, 1.442695
        %v2348 = vpow.pop %v2347
        %v2349 = vmul.f32 %v2335, 1.442695
        %v2350 = vpow.pop %v2349
        %v2351 = vmul.f32 %v2336, 1.442695
        %v2352 = vpow.pop %v2351
        %v2353 = vsel %vm699, %v2338, 0.0
        %2354 = vadd.xlane.f32.xlu0 %v2353
        %v2355 = vpop.xlane.xlu0 %2354
        %v2356 = vsel %vm699, %v2340, 0.0
        %2357 = vadd.xlane.f32.xlu0 %v2356
        %v2358 = vpop.xlane.xlu0 %2357
        %v2359 = vsel %vm699, %v2342, 0.0
        %2360 = vadd.xlane.f32.xlu0 %v2359
        %v2361 = vpop.xlane.xlu0 %2360
        %v2362 = vsel %vm699, %v2344, 0.0
        %2363 = vadd.xlane.f32.xlu0 %v2362
        %v2364 = vpop.xlane.xlu0 %2363
        %v2365 = vsel %vm699, %v2346, 0.0
        %2366 = vadd.xlane.f32.xlu0 %v2365
        %v2367 = vpop.xlane.xlu0 %2366
        %v2368 = vsel %vm699, %v2348, 0.0
        %2369 = vadd.xlane.f32.xlu0 %v2368
        %v2370 = vpop.xlane.xlu0 %2369
        %v2371 = vsel %vm699, %v2350, 0.0
        %2372 = vadd.xlane.f32.xlu0 %v2371
        %v2373 = vpop.xlane.xlu0 %2372
        %v2374 = vsel %vm699, %v2352, 0.0
        %2375 = vadd.xlane.f32.xlu0 %v2374
        %v2376 = vpop.xlane.xlu0 %2375
        %v2377 = vrcp.pop %v2355
        %v2378 = vrcp.pop %v2358
        %v2379 = vrcp.pop %v2361
        %v2380 = vrcp.pop %v2364
        %v2381 = vrcp.pop %v2367
        %v2382 = vrcp.pop %v2370
        %v2383 = vrcp.pop %v2373
        %v2384 = vrcp.pop %v2376
        %v2385 = vmul.f32 %v2338, %v2377
        %v2386 = vmul.f32 %v2340, %v2378
        %v2387 = vmul.f32 %v2342, %v2379
        %v2388 = vmul.f32 %v2344, %v2380
        %v2389 = vmul.f32 %v2346, %v2381
        %v2390 = vmul.f32 %v2348, %v2382
        %v2391 = vmul.f32 %v2350, %v2383
        %v2392 = vmul.f32 %v2352, %v2384
        %v2393 = vpack.c.bf16 %v2386, %v2385
        %v2394 = vpack.c.bf16 %v2388, %v2387
        %v2395 = vpack.c.bf16 %v2390, %v2389
        %v2396 = vpack.c.bf16 %v2392, %v2391
        %2397 = vrot.lane.b32.xlu0 %v597, 84
        %v2398 = vpop.permute.xlu0 %2397
        %2399 = vrot.lane.b32.xlu0 %v598, 84
        %v2400 = vpop.permute.xlu0 %2399
        %2401 = vrot.lane.b32.xlu0 %v599, 84
        %v2402 = vpop.permute.xlu0 %2401
        %2403 = vrot.lane.b32.xlu0 %v600, 84
        %v2404 = vpop.permute.xlu0 %2403
        %v2410 = vsel %vm699, %v2393, 0
        %v2413 = vsel %vm699, %v2394, 0
        %v2416 = vsel %vm699, %v2395, 0
        %v2419 = vsel %vm699, %v2396, 0
        %2421 = vmatprep.subr.bf16.mxu0 0
        %2422 = vmatpush1.bf16.msra.mxu0 %v2398
        %2423 = vmatprep.subr.bf16.mxu0 0
        %2424 = vmatpush1.bf16.msra.mxu0 %v2400
        %2425 = vmatprep.subr.bf16.mxu0 0
        %2426 = vmatpush1.bf16.msra.mxu0 %v2402
        %2427 = vmatprep.subr.bf16.mxu0 0
        %2428 = vmatpush1.bf16.msra.mxu0 %v2404
        %2429 = vmatprep.subr.bf16.mxu0 0
        %2430 = vmatpush1.bf16.msra.mxu0 0
        %2431 = vmatprep.subr.bf16.mxu0 0
        %2432 = vmatpush1.bf16.msra.mxu0 0
        %2433 = vmatprep.subr.bf16.mxu0 0
        %2434 = vmatpush1.bf16.msra.mxu0 0
        %2435 = vmatprep.subr.bf16.mxu0 0
        %2436 = vmatpush1.bf16.msra.mxu0 0
        %2437 = vmatprep.subr.bf16.mxu0 0
        %2438 = vmatpush1.bf16.msra.mxu0 0
        %2439 = vmatprep.subr.bf16.mxu0 0
        %2440 = vmatpush1.bf16.msra.mxu0 0
        %2441 = vmatprep.subr.bf16.mxu0 0
        %2442 = vmatpush1.bf16.msra.mxu0 0
        %2443 = vmatprep.subr.bf16.mxu0 0
        %2444 = vmatpush1.bf16.msra.mxu0 0
        %2445 = vmatprep.subr.bf16.mxu0 0
        %2446 = vmatpush1.bf16.msra.mxu0 0
        %2447 = vmatprep.subr.bf16.mxu0 0
        %2448 = vmatpush1.bf16.msra.mxu0 0
        %2449 = vmatprep.subr.bf16.mxu0 0
        %2450 = vmatpush1.bf16.msra.mxu0 0
        %2451 = vmatprep.subr.bf16.mxu0 0
        %2452 = vmatpush1.bf16.msra.mxu0 0
        %2453 = vmatprep.mubr.bf16.mxu0 0
        %2454 = vmatmul.mubr.bf16.gmra.mrb[0].mxu0 %v2410
        %v2455 = vpop.f32.mrb[0].mxu0
        %v2456 = vadd.f32 0.0, %v2455
        %v2457 = vpop.f32.mrb[0].mxu0
        %v2458 = vpop.f32.mrb[0].mxu0
        %v2459 = vadd.f32 0.0, %v2458
        %v2460 = vpop.f32.mrb[0].mxu0
        %2461 = vmatprep.mubr.bf16.mxu0 0
        %2462 = vmatmul.mubr.bf16.gmra.mrb[0].mxu0 %v2413
        %v2463 = vpop.f32.mrb[0].mxu0
        %v2464 = vadd.f32 0.0, %v2463
        %v2465 = vpop.f32.mrb[0].mxu0
        %v2466 = vpop.f32.mrb[0].mxu0
        %v2467 = vadd.f32 0.0, %v2466
        %v2468 = vpop.f32.mrb[0].mxu0
        %2469 = vmatprep.mubr.bf16.mxu0 0
        %2470 = vmatmul.mubr.bf16.gmra.mrb[0].mxu0 %v2416
        %v2471 = vpop.f32.mrb[0].mxu0
        %v2472 = vadd.f32 0.0, %v2471
        %v2473 = vpop.f32.mrb[0].mxu0
        %v2474 = vpop.f32.mrb[0].mxu0
        %v2475 = vadd.f32 0.0, %v2474
        %v2476 = vpop.f32.mrb[0].mxu0
        %2477 = vmatprep.mubr.bf16.mxu0 0
        %2478 = vmatmul.mubr.bf16.gmra.mrb[0].mxu0 %v2419
        %v2479 = vpop.f32.mrb[0].mxu0
        %v2480 = vadd.f32 0.0, %v2479
        %v2481 = vpop.f32.mrb[0].mxu0
        %v2482 = vpop.f32.mrb[0].mxu0
        %v2483 = vadd.f32 0.0, %v2482
        %v2484 = vpop.f32.mrb[0].mxu0
        %2485 = vdwg.mxu0
        %2494 = vrot.lane.b32.xlu0 %v1386, 4
        %v2495 = vpop.permute.xlu0 %2494
        %2496 = vrot.lane.b32.xlu0 %v1389, 4
        %v2497 = vpop.permute.xlu0 %2496
        %2498 = vrot.lane.b32.xlu0 %v1394, 4
        %v2499 = vpop.permute.xlu0 %2498
        %2500 = vrot.lane.b32.xlu0 %v1397, 4
        %v2501 = vpop.permute.xlu0 %2500
        %2502 = vrot.lane.b32.xlu0 %v1402, 4
        %v2503 = vpop.permute.xlu0 %2502
        %2504 = vrot.lane.b32.xlu0 %v1405, 4
        %v2505 = vpop.permute.xlu0 %2504
        %2506 = vrot.lane.b32.xlu0 %v1410, 4
        %v2507 = vpop.permute.xlu0 %2506
        %2508 = vrot.lane.b32.xlu0 %v1413, 4
        %v2509 = vpop.permute.xlu0 %2508
        %2526 = vrot.lane.b32.xlu0 %v1921, 8
        %v2527 = vpop.permute.xlu0 %2526
        %2528 = vrot.lane.b32.xlu0 %v1924, 8
        %v2529 = vpop.permute.xlu0 %2528
        %2530 = vrot.lane.b32.xlu0 %v1929, 8
        %v2531 = vpop.permute.xlu0 %2530
        %2532 = vrot.lane.b32.xlu0 %v1932, 8
        %v2533 = vpop.permute.xlu0 %2532
        %2534 = vrot.lane.b32.xlu0 %v1937, 8
        %v2535 = vpop.permute.xlu0 %2534
        %2536 = vrot.lane.b32.xlu0 %v1940, 8
        %v2537 = vpop.permute.xlu0 %2536
        %2538 = vrot.lane.b32.xlu0 %v1945, 8
        %v2539 = vpop.permute.xlu0 %2538
        %2540 = vrot.lane.b32.xlu0 %v1948, 8
        %v2541 = vpop.permute.xlu0 %2540
        %2558 = vrot.lane.b32.xlu0 %v2456, 12
        %v2559 = vpop.permute.xlu0 %2558
        %2560 = vrot.lane.b32.xlu0 %v2459, 12
        %v2561 = vpop.permute.xlu0 %2560
        %2562 = vrot.lane.b32.xlu0 %v2464, 12
        %v2563 = vpop.permute.xlu0 %2562
        %2564 = vrot.lane.b32.xlu0 %v2467, 12
        %v2565 = vpop.permute.xlu0 %2564
        %2566 = vrot.lane.b32.xlu0 %v2472, 12
        %v2567 = vpop.permute.xlu0 %2566
        %2568 = vrot.lane.b32.xlu0 %v2475, 12
        %v2569 = vpop.permute.xlu0 %2568
        %2570 = vrot.lane.b32.xlu0 %v2480, 12
        %v2571 = vpop.permute.xlu0 %2570
        %2572 = vrot.lane.b32.xlu0 %v2483, 12
        %v2573 = vpop.permute.xlu0 %2572
        %v2582 = vsel %vm609, %v851, %v2495
        %v2583 = vsel %vm609, %v854, %v2497
        %v2584 = vsel %vm609, %v859, %v2499
        %v2585 = vsel %vm609, %v862, %v2501
        %v2586 = vsel %vm609, %v867, %v2503
        %v2587 = vsel %vm609, %v870, %v2505
        %v2588 = vsel %vm609, %v875, %v2507
        %v2589 = vsel %vm609, %v878, %v2509
        %v2590 = vsel %vm518, %v2582, %v2527
        %v2591 = vsel %vm518, %v2583, %v2529
        %v2592 = vsel %vm518, %v2584, %v2531
        %v2593 = vsel %vm518, %v2585, %v2533
        %v2594 = vsel %vm518, %v2586, %v2535
        %v2595 = vsel %vm518, %v2587, %v2537
        %v2596 = vsel %vm518, %v2588, %v2539
        %v2597 = vsel %vm518, %v2589, %v2541
        %vm2598 = vcmask 97280
        %v2599 = vsel %vm2598, %v2590, %v2559
        %v2600 = vsel %vm2598, %v2591, %v2561
        %v2601 = vsel %vm2598, %v2592, %v2563
        %v2602 = vsel %vm2598, %v2593, %v2565
        %v2603 = vsel %vm2598, %v2594, %v2567
        %v2604 = vsel %vm2598, %v2595, %v2569
        %v2605 = vsel %vm2598, %v2596, %v2571
        %v2606 = vsel %vm2598, %v2597, %v2573
        %v2607 = vld [vmem:[%s3] sm:$0x1]
        %v2609 = vlaneseq
        %v2610 = vshrl.u32 %v2609, 7
        %v2611 = vsub.s32 0, %v2610
        %v2612 = vrot.slane %v2607, %v2611
        %v2614 = vmul.f32 %v2599, %v2612
        %v2615 = vmul.f32 %v2600, %v2612
        %v2616 = vmul.f32 %v2601, %v2612
        %v2617 = vmul.f32 %v2602, %v2612
        %v2618 = vmul.f32 %v2603, %v2612
        %v2619 = vmul.f32 %v2604, %v2612
        %v2620 = vmul.f32 %v2605, %v2612
        %v2621 = vmul.f32 %v2606, %v2612
        %v2622 = vld [vmem:[%s4] sm:$0x1]
        %v2624 = vlaneseq
        %v2625 = vshrl.u32 %v2624, 7
        %v2626 = vsub.s32 0, %v2625
        %v2627 = vrot.slane %v2622, %v2626
        %v2629 = vadd.f32 %v2614, %v2627
        %v2630 = vadd.f32 %v2615, %v2627
        %v2631 = vadd.f32 %v2616, %v2627
        %v2632 = vadd.f32 %v2617, %v2627
        %v2633 = vadd.f32 %v2618, %v2627
        %v2634 = vadd.f32 %v2619, %v2627
        %v2635 = vadd.f32 %v2620, %v2627
        %v2636 = vadd.f32 %v2621, %v2627
        %v2637 = vmax.f32 %v2629, 0.0
        %v2638 = vmax.f32 %v2630, 0.0
        %v2639 = vmax.f32 %v2631, 0.0
        %v2640 = vmax.f32 %v2632, 0.0
        %v2641 = vmax.f32 %v2633, 0.0
        %v2642 = vmax.f32 %v2634, 0.0
        %v2643 = vmax.f32 %v2635, 0.0
        %v2644 = vmax.f32 %v2636, 0.0
        %v2645 = vpack.c.bf16 %v2638, %v2637
        %v2646 = vpack.c.bf16 %v2640, %v2639
        %v2647 = vpack.c.bf16 %v2642, %v2641
        %v2648 = vpack.c.bf16 %v2644, %v2643
        %v2649 = vld [vmem:[%s5] sm:$0xf]
        %v2650 = vld [vmem:[%s5 + $0x4] sm:$0xf]
        %v2651 = vld [vmem:[%s6] sm:$0x1]
        %v2653 = vlaneseq
        %v2654 = vshrl.u32 %v2653, 7
        %v2655 = vsub.s32 0, %v2654
        %v2656 = vrot.slane %v2651, %v2655
        %v2660 = vunpack.c.l.b16 %v2649
        %v2661 = vunpack.c.l.b16 %v2650
        %v2662 = vpack.c.b16 %v2661, %v2660
        %v2665 = vsel %vm527, %v2645, 0
        %v2668 = vsel %vm527, %v2646, 0
        %v2671 = vsel %vm527, %v2647, 0
        %v2674 = vsel %vm527, %v2648, 0
        %2676 = vmatprep.subr.bf16.mxu0 0
        %2677 = vmatpush1.bf16.msra.mxu0 %v2662
        %2678 = vmatprep.subr.bf16.mxu0 0
        %2679 = vmatpush1.bf16.msra.mxu0 0
        %2680 = vmatprep.subr.bf16.mxu0 0
        %2681 = vmatpush1.bf16.msra.mxu0 0
        %2682 = vmatprep.subr.bf16.mxu0 0
        %2683 = vmatpush1.bf16.msra.mxu0 0
        %2684 = vmatprep.subr.bf16.mxu0 0
        %2685 = vmatpush1.bf16.msra.mxu0 0
        %2686 = vmatprep.subr.bf16.mxu0 0
        %2687 = vmatpush1.bf16.msra.mxu0 0
        %2688 = vmatprep.subr.bf16.mxu0 0
        %2689 = vmatpush1.bf16.msra.mxu0 0
        %2690 = vmatprep.subr.bf16.mxu0 0
        %2691 = vmatpush1.bf16.msra.mxu0 0
        %2692 = vmatprep.subr.bf16.mxu0 0
        %2693 = vmatpush1.bf16.msra.mxu0 0
        %2694 = vmatprep.subr.bf16.mxu0 0
        %2695 = vmatpush1.bf16.msra.mxu0 0
        %2696 = vmatprep.subr.bf16.mxu0 0
        %2697 = vmatpush1.bf16.msra.mxu0 0
        %2698 = vmatprep.subr.bf16.mxu0 0
        %2699 = vmatpush1.bf16.msra.mxu0 0
        %2700 = vmatprep.subr.bf16.mxu0 0
        %2701 = vmatpush1.bf16.msra.mxu0 0
        %2702 = vmatprep.subr.bf16.mxu0 0
        %2703 = vmatpush1.bf16.msra.mxu0 0
        %2704 = vmatprep.subr.bf16.mxu0 0
        %2705 = vmatpush1.bf16.msra.mxu0 0
        %2706 = vmatprep.subr.bf16.mxu0 0
        %2707 = vmatpush1.bf16.msra.mxu0 0
        %2708 = vmatprep.mubr.bf16.mxu0 0
        %2709 = vmatmul.mubr.bf16.gmra.mrb[0].mxu0 %v2665
        %v2710 = vpop.f32.mrb[0].mxu0
        %v2711 = vadd.f32 %v2656, %v2710
        %v2712 = vpop.f32.mrb[0].mxu0
        %v2713 = vpop.f32.mrb[0].mxu0
        %v2714 = vadd.f32 %v2656, %v2713
        %v2715 = vpop.f32.mrb[0].mxu0
        %2716 = vmatprep.mubr.bf16.mxu0 0
        %2717 = vmatmul.mubr.bf16.gmra.mrb[0].mxu0 %v2668
        %v2718 = vpop.f32.mrb[0].mxu0
        %v2719 = vadd.f32 %v2656, %v2718
        %v2720 = vpop.f32.mrb[0].mxu0
        %v2721 = vpop.f32.mrb[0].mxu0
        %v2722 = vadd.f32 %v2656, %v2721
        %v2723 = vpop.f32.mrb[0].mxu0
        %2724 = vmatprep.mubr.bf16.mxu0 0
        %2725 = vmatmul.mubr.bf16.gmra.mrb[0].mxu0 %v2671
        %v2726 = vpop.f32.mrb[0].mxu0
        %v2727 = vadd.f32 %v2656, %v2726
        %v2728 = vpop.f32.mrb[0].mxu0
        %v2729 = vpop.f32.mrb[0].mxu0
        %v2730 = vadd.f32 %v2656, %v2729
        %v2731 = vpop.f32.mrb[0].mxu0
        %2732 = vmatprep.mubr.bf16.mxu0 0
        %2733 = vmatmul.mubr.bf16.gmra.mrb[0].mxu0 %v2674
        %v2734 = vpop.f32.mrb[0].mxu0
        %v2735 = vadd.f32 %v2656, %v2734
        %v2736 = vpop.f32.mrb[0].mxu0
        %v2737 = vpop.f32.mrb[0].mxu0
        %v2738 = vadd.f32 %v2656, %v2737
        %v2739 = vpop.f32.mrb[0].mxu0
        %2740 = vdwg.mxu0
        %v2741 = vld [vmem:[%s316] sm:$0xf]
        %v2742 = vld [vmem:[%s316 + $0x4] sm:$0xf]
        %v2743 = vld [vmem:[%s316 + $0x8] sm:$0xf]
        %v2744 = vld [vmem:[%s316 + $0xc] sm:$0xf]
        %v2745 = vld [vmem:[%s316 + $0x10] sm:$0xf]
        %v2746 = vld [vmem:[%s316 + $0x14] sm:$0xf]
        %v2747 = vld [vmem:[%s316 + $0x18] sm:$0xf]
        %v2748 = vld [vmem:[%s316 + $0x1c] sm:$0xf]
        %v2749 = vunpack.c.l.bf16 %v2741
        %v2750 = vunpack.c.l.bf16 %v2742
        %v2751 = vunpack.c.l.bf16 %v2743
        %v2752 = vunpack.c.l.bf16 %v2744
        %v2753 = vunpack.c.l.bf16 %v2745
        %v2754 = vunpack.c.l.bf16 %v2746
        %v2755 = vunpack.c.l.bf16 %v2747
        %v2756 = vunpack.c.l.bf16 %v2748
        %v2757 = vadd.f32 %v2711, %v2749
        %v2758 = vadd.f32 %v2714, %v2750
        %v2759 = vadd.f32 %v2719, %v2751
        %v2760 = vadd.f32 %v2722, %v2752
        %v2761 = vadd.f32 %v2727, %v2753
        %v2762 = vadd.f32 %v2730, %v2754
        %v2763 = vadd.f32 %v2735, %v2755
        %v2764 = vadd.f32 %v2738, %v2756
        %2765 = vst.msk [vmem:[%s301] sm:$0xff] %vm699, %v2757
        %2766 = vst.msk [vmem:[%s301 + $0x8] sm:$0xff] %vm699, %v2758
        %2767 = vst.msk [vmem:[%s301 + $0x10] sm:$0xff] %vm699, %v2759
        %2768 = vst.msk [vmem:[%s301 + $0x18] sm:$0xff] %vm699, %v2760
        %2769 = vst.msk [vmem:[%s301 + $0x20] sm:$0xff] %vm699, %v2761
        %2770 = vst.msk [vmem:[%s301 + $0x28] sm:$0xff] %vm699, %v2762
        %2771 = vst.msk [vmem:[%s301 + $0x30] sm:$0xff] %vm699, %v2763
        %2772 = vst.msk [vmem:[%s301 + $0x38] sm:$0xff] %vm699, %v2764
        %s2773 = sand.u32 %s191, 1
        %s2774 = scalar_lea.sflag [#allocation3], %s2773
        %s2775 = sand.u32 %s191, 1
        %s2776 = smul.addr %s2775, 64
        %s2777 = scalar_lea.vmem [#allocation2], %s2776
        // Predicated region
        $region49: #{_lambda_.3} parent=47 // pred_check
          %p2778 = pneg %p201
        $region50: #{_lambda_.3} parent=47 // pred_check_branch
          %2780 = sbr.rel (%p2778) target = $region52
        $region51: #{_lambda_.3} parent=47 // pred_region
          %s2782 = ssub.s32 1024, 1024
          %2783 = vsyncadd %s2774, %s2782
          %s2784 = smul.addr %s21, 8
          %s2785 = smul.addr %s2784, 128
          %s2786 = scalar_lea.hbm %s7, %s2785
          %s2787 = sshll.u32 %s2777, 4
          %s2788 = int_to_ptr.vmem [resolvable:$true] %s2787
          %2793 = dma.vmem_to_hbm [thread:$0]  %s2788, 1024, %s2786, %s2774, 128, 128, 8
        $region52: #{_lambda_.3} parent=47 // pred_fallthru
          _
      $region48: #{_lambda_.3} parent=5 // pred_fallthru
        _
      %p2794 = scmp.le.s32.totalorder 2, %s16
      // Predicated region
      $region53: #{_lambda_.3} parent=5 // pred_check
        %p2795 = pneg %p2794
      $region54: #{_lambda_.3} parent=5 // pred_check_branch
        %2797 = sbr.rel (%p2795) target = $region56
      $region55: #{_lambda_.3} parent=5 // pred_region
        %s2798 = ssub.s32 %s16, 2
        // Predicated region
        $region57: #{_lambda_.3} parent=55 // pred_check
          %p2799 = pneg %p207
        $region58: #{_lambda_.3} parent=55 // pred_check_branch
          %2801 = sbr.rel (%p2799) target = $region60
        $region59: #{_lambda_.3} parent=55 // pred_region
          %s2802 = sand.u32 %s192, 1
          %s2803 = scalar_lea.sflag [#allocation3], %s2802
          %s2804 = sand.u32 %s192, 1
          %s2805 = smul.addr %s2804, 64
          %s2806 = scalar_lea.vmem [#allocation2], %s2805
          %2807 = dma.done %s2803, 1024
        $region60: #{_lambda_.3} parent=55 // pred_fallthru
          _
      $region56: #{_lambda_.3} parent=5 // pred_fallthru
        _
    $region6: #{_lambda_.3} parent=1 // loop_footer
      %s20 = sadd.s32 1, %s16
    $region7: #{_lambda_.3} parent=1 // loop_footer_branch
      %15 = sbr.rel target = $region3
    $region8: #{_lambda_.3} parent=1 // loop_exit
      _
    %2808 = vsyncpa [#allocation3], 1
    %s2809 = scalar_lea.sflag [#allocation3], 1
    %2810 = vsyncpa %s2809, 1

</llo_original>
